<compile_context>
chip_gen: v7x
topology: tpu7x:2x2x1
jax: 0.10.0
libtpu: 0.0.40
codegen_flags: <defaults>
</compile_context>

<pallas_src>
import functools
import math

import numpy as np
import jax
import jax.numpy as jnp
from jax.experimental import pallas as pl
from jax.experimental.pallas import tpu as pltpu

_EPS = 1e-5
_GROUPS = 8


def _gelu_exact(x):
    # torch.nn.functional.gelu default (erf-based, exact).
    return 0.5 * x * (1.0 + jax.lax.erf(x * (1.0 / math.sqrt(2.0))))


# --------------------------------------------------------------------------------
# The single fused kernel (one batch sample per grid step, everything phase-major).
# Phase block order everywhere: [ee | eo | oe | oo]  (block k = 2*row_parity + col_parity)
# --------------------------------------------------------------------------------
def _fused_block_kernel(x_ref, wbig_ref, p4_ref, row4_ref, upw_ref, p1_ref,
                        row1_ref, m2_ref, fc1w_ref, fc1b_ref, fc2w_ref, wsp_ref,
                        o_ref, pz_ref, psp_ref, *, groups, eps):
    f32 = jnp.float32
    _, Hp, Wp, Cin = x_ref.shape            # x is pre-padded by 1 on bottom/right
    H, W = Hp - 1, Wp - 1
    C4 = o_ref.shape[3]
    C = C4 // 4
    Cg = C // groups
    HW = H * W
    cnt = float(4 * HW * Cg)                # elements per GroupNorm group (fine grid)

    # ---------------- conv1: ConvT 3x3 s=2 p=1 op=1 (polyphase, ONE MXU dot) -------
    xp = x_ref[0].astype(f32)                                       # (H+1, W+1, Cin)
    x00 = xp[0:H, 0:W, :]
    x01 = xp[0:H, 1:W + 1, :]
    x10 = xp[1:H + 1, 0:W, :]
    x11 = xp[1:H + 1, 1:W + 1, :]
    xc = jnp.concatenate([x00, x01, x10, x11], axis=-1).reshape(HW, 4 * Cin)
    y1 = jnp.dot(xc, wbig_ref[...], preferred_element_type=f32) + row4_ref[0:1]

    # GN1 (one-pass stats via group projector) + exact GELU
    st1 = jnp.concatenate([jnp.sum(y1, axis=0, keepdims=True),
                           jnp.sum(y1 * y1, axis=0, keepdims=True)], axis=0)  # (2,4C)
    g1 = jnp.dot(st1, p4_ref[...], preferred_element_type=f32) / cnt
    mean1 = g1[0:1]
    var1 = g1[1:2] - mean1 * mean1
    h1 = _gelu_exact((y1 - mean1) * jax.lax.rsqrt(var1 + eps) * row4_ref[1:2]
                     + row4_ref[2:3])                               # (HW, 4C)

    # ---------------- residual: ConvT 1x1 s=2 op=1 + GroupNorm ---------------------
    # even-even positions = x @ W + b ; the other 3*HW positions are just the bias,
    # and they DO contribute to the GroupNorm statistics.
    upb = row1_ref[0:1]                                             # (1, C)
    v = jnp.dot(x00.reshape(HW, Cin), upw_ref[...],
                preferred_element_type=f32) + upb                   # (HW, C)
    stu = jnp.concatenate(
        [jnp.sum(v, axis=0, keepdims=True) + (3.0 * HW) * upb,
         jnp.sum(v * v, axis=0, keepdims=True) + (3.0 * HW) * upb * upb], axis=0)
    gu = jnp.dot(stu, p1_ref[...], preferred_element_type=f32) / cnt
    mean_u = gu[0:1]
    inv_u = jax.lax.rsqrt(gu[1:2] - mean_u * mean_u + eps)
    gamma_u, beta_u = row1_ref[1:2], row1_ref[2:3]
    v_n = (v - mean_u) * inv_u * gamma_u + beta_u                   # (HW, C) even-even
    b_n = (upb - mean_u) * inv_u * gamma_u + beta_u                 # (1, C)  other phases
    b_fill = jnp.broadcast_to(b_n, (HW, C))
    identity = jnp.concatenate([v_n, b_fill, b_fill, b_fill], axis=-1)  # (HW, 4C)

    # ---------------- conv2: ConvT 3x3 s=1 p=1 as a polyphase im2col dot + GN2 -----
    # pz scratch persists across grid steps: re-zero only the halo strips each step
    # (the interior is fully overwritten), which is also correct under megacore.
    pz_ref[0:1, :, :] = jnp.zeros((1, W + 2, C4), f32)
    pz_ref[H + 1:H + 2, :, :] = jnp.zeros((1, W + 2, C4), f32)
    pz_ref[1:H + 1, 0:1, :] = jnp.zeros((H, 1, C4), f32)
    pz_ref[1:H + 1, W + 1:W + 2, :] = jnp.zeros((H, 1, C4), f32)
    pz_ref[1:H + 1, 1:W + 1, :] = h1.reshape(H, W, C4)
    cols = [pz_ref[u:u + H, v:v + W, :] for u in range(3) for v in range(3)]
    patches = jnp.concatenate(cols, axis=-1).reshape(HW, 36 * C)    # K = 36*C = 1152
    y2 = jnp.dot(patches, m2_ref[...], preferred_element_type=f32) + row4_ref[3:4]

    st2 = jnp.concatenate([jnp.sum(y2, axis=0, keepdims=True),
                           jnp.sum(y2 * y2, axis=0, keepdims=True)], axis=0)
    g2 = jnp.dot(st2, p4_ref[...], preferred_element_type=f32) / cnt
    mean2 = g2[0:1]
    var2 = g2[1:2] - mean2 * mean2
    y2n = (y2 - mean2) * jax.lax.rsqrt(var2 + eps) * row4_ref[4:5] + row4_ref[5:6]

    # ---------------- CBAM channel attention ---------------------------------------
    rsum = jnp.sum(y2n, axis=0, keepdims=True)                      # (1, 4C)
    rmax = jnp.max(y2n, axis=0, keepdims=True)                      # (1, 4C)
    avg_p = (rsum[:, 0:C] + rsum[:, C:2 * C] + rsum[:, 2 * C:3 * C]
             + rsum[:, 3 * C:4 * C]) * (1.0 / float(4 * HW))
    max_p = jnp.maximum(jnp.maximum(rmax[:, 0:C], rmax[:, C:2 * C]),
                        jnp.maximum(rmax[:, 2 * C:3 * C], rmax[:, 3 * C:4 * C]))
    pooled = jnp.concatenate([avg_p, max_p], axis=0)                # (2, C)
    hmid = jnp.maximum(
        jnp.dot(pooled, fc1w_ref[...], preferred_element_type=f32) + fc1b_ref[...], 0.0)
    att = jnp.dot(hmid, fc2w_ref[...], preferred_element_type=f32) + row1_ref[3:4]
    ch = jax.nn.sigmoid(att[0:1, :] + att[1:2, :])                  # (1, C)
    ch4 = jnp.concatenate([ch, ch, ch, ch], axis=-1)                # (1, 4C)
    xca = y2n * ch4                                                 # channel-attended map

    # ---------------- CBAM spatial attention: 7x7 conv as a polyphase MXU dot ------
    # 8 coarse planes: per-phase channel-mean and channel-max of xca.
    planes = [jnp.mean(xca[:, k * C:(k + 1) * C], axis=-1, keepdims=True)
              for k in range(4)]
    planes += [jnp.max(xca[:, k * C:(k + 1) * C], axis=-1, keepdims=True)
               for k in range(4)]
    pl8 = jnp.concatenate(planes, axis=-1)                          # (HW, 8)
    psp_ref[0:2, :, :] = jnp.zeros((2, W + 4, 8), f32)
    psp_ref[H + 2:H + 4, :, :] = jnp.zeros((2, W + 4, 8), f32)
    psp_ref[2:H + 2, 0:2, :] = jnp.zeros((H, 2, 8), f32)
    psp_ref[2:H + 2, W + 2:W + 4, :] = jnp.zeros((H, 2, 8), f32)
    psp_ref[2:H + 2, 2:W + 2, :] = pl8.reshape(H, W, 8)
    spc = [psp_ref[u:u + H, v:v + W, :] for u in range(5) for v in range(5)]
    sp_patch = jnp.concatenate(spc, axis=-1).reshape(HW, 25 * 8)
    sp_patch = jnp.concatenate([sp_patch, jnp.ones((HW, 1), f32)], axis=-1)  # +bias col
    # Reference applies Sigmoid inside the spatial Sequential AND an outer
    # torch.sigmoid -> the double sigmoid is intentional.
    sp = jax.nn.sigmoid(jax.nn.sigmoid(
        jnp.dot(sp_patch, wsp_ref[...], preferred_element_type=f32)))       # (HW, 4)
    xsa = jnp.concatenate([xca[:, k * C:(k + 1) * C] * sp[:, k:k + 1]
                           for k in range(4)], axis=-1)                      # (HW, 4C)

    # ---------------- residual add + GELU, store lane-dense phase-major ------------
    out = _gelu_exact(xsa + identity)
    o_ref[0] = out.reshape(H, W, C4).astype(o_ref.dtype)


# ----------------------------- weight repacking (thin XLA glue) -----------------------------

def _group_projector(n, C, groups):
    # P[i, j] = 1 iff channels (i mod C) and (j mod C) are in the same GroupNorm group.
    grp = (jnp.arange(n) % C) // (C // groups)
    return (grp[:, None] == grp[None, :]).astype(jnp.float32)


def _build_conv1_phase_weight(w_t):
    # torch ConvTranspose2d weight (Cin, Cout, 3, 3), stride 2, pad 1, out_pad 1
    # -> (4*Cin, 4*Cout) polyphase matrix; input blocks [x00|x01|x10|x11],
    # output blocks [ee|eo|oe|oo].
    Cin, Cout = w_t.shape[0], w_t.shape[1]
    Wk = lambda kh, kw: w_t[:, :, kh, kw]
    Z = jnp.zeros((Cin, Cout), w_t.dtype)
    rows = [
        jnp.concatenate([Wk(1, 1), Wk(1, 2), Wk(2, 1), Wk(2, 2)], axis=1),  # x00
        jnp.concatenate([Z,        Wk(1, 0), Z,        Wk(2, 0)], axis=1),  # x01
        jnp.concatenate([Z,        Z,        Wk(0, 1), Wk(0, 2)], axis=1),  # x10
        jnp.concatenate([Z,        Z,        Z,        Wk(0, 0)], axis=1),  # x11
    ]
    return jnp.concatenate(rows, axis=0)


def _build_conv2_polyphase_weight(w_t):
    # torch ConvTranspose2d weight (C, C, 3, 3), stride 1, pad 1, operating directly on
    # the phase-major coarse grid:
    #   out_phase(a,b)[h,w,co] = b + sum_{dh,dw in [-1,1]} z[2h+a+dh, 2w+b+dw, ci] *
    #                                 w_t[ci, co, 1-dh, 1-dw]
    # Rows = (window u,v in {0,1,2}) x (input phase p,q); cols = output phase (a,b).
    C = w_t.shape[0]
    Z = jnp.zeros((C, C), w_t.dtype)
    cols = []
    for a in range(2):
        for b in range(2):
            blocks = []
            for u in range(3):
                for v in range(3):
                    for p in range(2):
                        for q in range(2):
                            dh = 2 * (u - 1) + p - a
                            dw = 2 * (v - 1) + q - b
                            if -1 <= dh <= 1 and -1 <= dw <= 1:
                                blocks.append(w_t[:, :, 1 - dh, 1 - dw])
                            else:
                                blocks.append(Z)
            cols.append(jnp.concatenate(blocks, axis=0))            # (36C, C)
    return jnp.concatenate(cols, axis=1)                            # (36C, 4C)


def _build_spatial_polyphase_weight(sp_w, sp_b):
    # sp_w: (7, 7, 2, 1) = (ky, kx, [mean, max], 1); sp_b: (1,).
    # Returns (25*8 + 1, 4): rows = coarse window offsets (u,v in {0..4}) x 8 planes
    # [mean_ee..mean_oo, max_ee..max_oo] + bias row; cols = output phase [ee,eo,oe,oo].
    idx = np.zeros((200, 4), np.int32)      # static tap-placement (built in numpy)
    msk = np.zeros((200, 4), np.float32)
    for a in range(2):
        for b in range(2):
            col = 2 * a + b
            for u in range(5):
                for v in range(5):
                    for m in range(2):
                        for p in range(2):
                            for q in range(2):
                                dy = 2 * (u - 2) + p - a
                                dx = 2 * (v - 2) + q - b
                                row = (u * 5 + v) * 8 + m * 4 + 2 * p + q
                                if -3 <= dy <= 3 and -3 <= dx <= 3:
                                    idx[row, col] = (dy + 3) * 14 + (dx + 3) * 2 + m
                                    msk[row, col] = 1.0
    wflat = sp_w.reshape(-1).astype(jnp.float32)                     # (98,)
    main = wflat[jnp.asarray(idx)] * jnp.asarray(msk)                # (200, 4)
    bias_row = jnp.broadcast_to(sp_b.reshape(1, 1).astype(jnp.float32), (1, 4))
    return jnp.concatenate([main, bias_row], axis=0)                 # (201, 4)


def enhanced_conv_transpose2d_block(x_nchw, params, *, groups=_GROUPS, eps=_EPS):
    x = jnp.transpose(x_nchw, (0, 2, 3, 1)).astype(jnp.float32)      # NCHW -> NHWC
    N, H, W, Cin = x.shape
    C = params["conv1_b"].shape[0]
    Cr = params["fc1_w"].shape[1]

    # one-shot weight repacking (XLA side, tiny)
    wbig = _build_conv1_phase_weight(params["conv1_w"])              # (4Cin, 4C)
    p4 = _group_projector(4 * C, C, groups)                          # (4C, 4C)
    p1 = _group_projector(C, C, groups)                              # (C, C)
    row4 = jnp.stack([jnp.tile(params["conv1_b"], 4),
                      jnp.tile(params["gn1_g"], 4),
                      jnp.tile(params["gn1_b"], 4),
                      jnp.tile(params["conv2_b"], 4),
                      jnp.tile(params["gn2_g"], 4),
                      jnp.tile(params["gn2_b"], 4)], axis=0)          # (6, 4C)
    row1 = jnp.stack([params["up_b"], params["up_gn_g"],
                      params["up_gn_b"], params["fc2_b"]], axis=0)    # (4, C)
    upw = params["up_w"][:, :, 0, 0]                                  # (Cin, C)
    m2 = _build_conv2_polyphase_weight(params["conv2_w"])             # (36C, 4C)
    wsp = _build_spatial_polyphase_weight(params["sp_w"], params["sp_b"])  # (201, 4)
    fc1b = params["fc1_b"].reshape(1, Cr)
    xpad = jnp.pad(x, ((0, 0), (0, 1), (0, 1), (0, 0)))               # shifted taps

    def vm(shape):
        r = len(shape)
        return pl.BlockSpec(shape, lambda n, _r=r: (0,) * _r)

    out_ph = pl.pallas_call(
        functools.partial(_fused_block_kernel, groups=groups, eps=eps),
        out_shape=jax.ShapeDtypeStruct((N, H, W, 4 * C), jnp.float32),
        grid_spec=pltpu.PrefetchScalarGridSpec(
            num_scalar_prefetch=0, grid=(N,),
            in_specs=[pl.BlockSpec((1, H + 1, W + 1, Cin), lambda n: (n, 0, 0, 0)),
                      vm(wbig.shape), vm(p4.shape), vm(row4.shape),
                      vm(upw.shape), vm(p1.shape), vm(row1.shape),
                      vm(m2.shape), vm(params["fc1_w"].shape), vm(fc1b.shape),
                      vm(params["fc2_w"].shape), vm(wsp.shape)],
            out_specs=pl.BlockSpec((1, H, W, 4 * C), lambda n: (n, 0, 0, 0)),
            scratch_shapes=[pltpu.VMEM((H + 2, W + 2, 4 * C), jnp.float32),
                            pltpu.VMEM((H + 4, W + 4, 8), jnp.float32)]),
        compiler_params=pltpu.CompilerParams(
            dimension_semantics=("parallel",),
            vmem_limit_bytes=32 * 1024 * 1024),
    )(xpad, wbig, p4, row4, upw, p1, row1, m2,
      params["fc1_w"], fc1b, params["fc2_w"], wsp)

    # phase-major (N,H,W,[ee|eo|oe|oo]*C) -> NCHW.  This single transpose also absorbs
    # the 2x2 sub-pixel interleave (no separate interleave pass).
    y = out_ph.reshape(N, H, W, 2, 2, C)
    y = jnp.transpose(y, (0, 5, 1, 3, 2, 4))
    out = y.reshape(N, C, 2 * H, 2 * W)
    # TODO(synk): nn.Dropout2d(0.1) is stochastic only in training mode; eval-mode identity here.
    # TODO(synk): for production sizes: batch-block the grid / add a row-block axis (v7x 2 TCs)
    #             and optionally cast MXU operands to bf16 (stats kept in f32).
    return out


# ----------------------------- params / main -----------------------------

def init_params(key, cin, cout):
    cr = cout // 8
    ks = jax.random.split(key, 16)
    s = 0.1
    n = lambda k, shape: s * jax.random.normal(k, shape, jnp.float32)
    return {
        "conv1_w": n(ks[0], (cin, cout, 3, 3)),   # torch ConvTranspose2d weight layout
        "conv1_b": n(ks[1], (cout,)),
        "gn1_g": jnp.ones((cout,), jnp.float32) + n(ks[2], (cout,)),
        "gn1_b": n(ks[3], (cout,)),
        "conv2_w": n(ks[4], (cout, cout, 3, 3)),
        "conv2_b": n(ks[5], (cout,)),
        "gn2_g": jnp.ones((cout,), jnp.float32) + n(ks[6], (cout,)),
        "gn2_b": n(ks[7], (cout,)),
        "fc1_w": n(ks[8], (cout, cr)),            # CBAM fc 1x1 conv C -> C//8 (as matmul)
        "fc1_b": n(ks[9], (cr,)),
        "fc2_w": n(ks[10], (cr, cout)),           # CBAM fc 1x1 conv C//8 -> C
        "fc2_b": n(ks[11], (cout,)),
        "sp_w": n(ks[12], (7, 7, 2, 1)),          # CBAM spatial 7x7 conv (KH,KW,[avg,max],1)
        "sp_b": n(ks[13], (1,)),
        "up_w": n(ks[14], (cin, cout, 1, 1)),     # residual upsample ConvT 1x1 stride2
        "up_b": n(ks[15], (cout,)),
        "up_gn_g": jnp.ones((cout,), jnp.float32),
        "up_gn_b": jnp.zeros((cout,), jnp.float32),
    }


if __name__ == "__main__":
    key = jax.random.PRNGKey(0)
    kp, kx = jax.random.split(key)
    N, CIN, COUT, H, W = 2, 16, 32, 8, 8
    params = init_params(kp, CIN, COUT)
    x = jax.random.normal(kx, (N, CIN, H, W), jnp.float32)   # NCHW, like the torch module
    fwd = jax.jit(enhanced_conv_transpose2d_block)
    out = jax.block_until_ready(fwd(x, params))
    assert out.shape == (N, COUT, 2 * H, 2 * W), out.shape
    assert bool(jnp.all(jnp.isfinite(out)))
    print("KERNEL_OK")
</pallas_src>

<mosaic_0001>
module attributes {stable_mosaic.version = 11 : i64} {
  func.func @_fused_block_kernel(%arg0: i32, %arg1: memref<1x9x9x16xf32, #tpu.memory_space<vmem>>, %arg2: memref<64x128xf32, #tpu.memory_space<vmem>>, %arg3: memref<128x128xf32, #tpu.memory_space<vmem>>, %arg4: memref<6x128xf32, #tpu.memory_space<vmem>>, %arg5: memref<16x32xf32, #tpu.memory_space<vmem>>, %arg6: memref<32x32xf32, #tpu.memory_space<vmem>>, %arg7: memref<4x32xf32, #tpu.memory_space<vmem>>, %arg8: memref<1152x128xf32, #tpu.memory_space<vmem>>, %arg9: memref<32x4xf32, #tpu.memory_space<vmem>>, %arg10: memref<1x4xf32, #tpu.memory_space<vmem>>, %arg11: memref<4x32xf32, #tpu.memory_space<vmem>>, %arg12: memref<201x4xf32, #tpu.memory_space<vmem>>, %arg13: memref<1x8x8x128xf32, #tpu.memory_space<vmem>>, %arg14: memref<10x10x128xf32, #tpu.memory_space<vmem>>, %arg15: memref<12x12x8xf32, #tpu.memory_space<vmem>>) attributes {dimension_semantics = [#tpu.dimension_semantics<parallel>], iteration_bounds = array<i64: 2>, scalar_prefetch = 0 : i64, scratch_operands = 2 : i64, tpu.core_type = #tpu.core_type<tc>, window_params = [{transform_indices = @transform_0, window_bounds = array<i64: 1, 9, 9, 16>}, {pipeline_mode = #tpu.pipeline_mode<synchronous>, transform_indices = @transform_1, window_bounds = array<i64: 64, 128>}, {pipeline_mode = #tpu.pipeline_mode<synchronous>, transform_indices = @transform_2, window_bounds = array<i64: 128, 128>}, {pipeline_mode = #tpu.pipeline_mode<synchronous>, transform_indices = @transform_3, window_bounds = array<i64: 6, 128>}, {pipeline_mode = #tpu.pipeline_mode<synchronous>, transform_indices = @transform_4, window_bounds = array<i64: 16, 32>}, {pipeline_mode = #tpu.pipeline_mode<synchronous>, transform_indices = @transform_5, window_bounds = array<i64: 32, 32>}, {pipeline_mode = #tpu.pipeline_mode<synchronous>, transform_indices = @transform_6, window_bounds = array<i64: 4, 32>}, {pipeline_mode = #tpu.pipeline_mode<synchronous>, transform_indices = @transform_7, window_bounds = array<i64: 1152, 128>}, {pipeline_mode = #tpu.pipeline_mode<synchronous>, transform_indices = @transform_8, window_bounds = array<i64: 32, 4>}, {pipeline_mode = #tpu.pipeline_mode<synchronous>, transform_indices = @transform_9, window_bounds = array<i64: 1, 4>}, {pipeline_mode = #tpu.pipeline_mode<synchronous>, transform_indices = @transform_10, window_bounds = array<i64: 4, 32>}, {pipeline_mode = #tpu.pipeline_mode<synchronous>, transform_indices = @transform_11, window_bounds = array<i64: 201, 4>}, {transform_indices = @transform_12, window_bounds = array<i64: 1, 8, 8, 128>}]} {
    %c0 = arith.constant 0 : index
    %c0_0 = arith.constant 0 : index
    %c0_1 = arith.constant 0 : index
    %c0_2 = arith.constant 0 : index
    %0 = vector.load %arg1[%c0, %c0_0, %c0_1, %c0_2] : memref<1x9x9x16xf32, #tpu.memory_space<vmem>>, vector<1x9x9x16xf32>
    %1 = vector.shape_cast %0 : vector<1x9x9x16xf32> to vector<9x9x16xf32>
    %2 = vector.extract_strided_slice %1 {offsets = [0, 0, 0], sizes = [8, 8, 16], strides = [1, 1, 1]} : vector<9x9x16xf32> to vector<8x8x16xf32>
    %3 = vector.extract_strided_slice %1 {offsets = [0, 1, 0], sizes = [8, 8, 16], strides = [1, 1, 1]} : vector<9x9x16xf32> to vector<8x8x16xf32>
    %4 = vector.extract_strided_slice %1 {offsets = [1, 0, 0], sizes = [8, 8, 16], strides = [1, 1, 1]} : vector<9x9x16xf32> to vector<8x8x16xf32>
    %5 = vector.extract_strided_slice %1 {offsets = [1, 1, 0], sizes = [8, 8, 16], strides = [1, 1, 1]} : vector<9x9x16xf32> to vector<8x8x16xf32>
    %6 = tpu.concatenate %2, %3, %4, %5 in 2 : vector<8x8x16xf32>, vector<8x8x16xf32>, vector<8x8x16xf32>, vector<8x8x16xf32> -> vector<8x8x64xf32>
    %7 = vector.shape_cast %6 : vector<8x8x64xf32> to vector<64x64xf32>
    %c0_3 = arith.constant 0 : index
    %c0_4 = arith.constant 0 : index
    %8 = vector.load %arg2[%c0_3, %c0_4] : memref<64x128xf32, #tpu.memory_space<vmem>>, vector<64x128xf32>
    %cst = arith.constant dense<0.000000e+00> : vector<64x128xf32>
    %9 = tpu.matmul %7, %8, %cst {dimension_numbers = #tpu.dot_dimension_numbers<[1], [0], [0], [1], [0, 0, 1, 1], [], []>} : vector<64x64xf32>, vector<64x128xf32>, vector<64x128xf32> -> vector<64x128xf32>
    %c0_5 = arith.constant 0 : index
    %c0_6 = arith.constant 0 : index
    %10 = vector.load %arg4[%c0_5, %c0_6] : memref<6x128xf32, #tpu.memory_space<vmem>>, vector<1x128xf32>
    %11 = vector.broadcast %10 : vector<1x128xf32> to vector<64x128xf32>
    %12 = arith.addf %9, %11 : vector<64x128xf32>
    %cst_7 = arith.constant dense<0.000000e+00> : vector<128xf32>
    %13 = vector.multi_reduction <add>, %12, %cst_7 [0] : vector<64x128xf32> to vector<128xf32>
    %14 = vector.shape_cast %13 : vector<128xf32> to vector<1x128xf32>
    %15 = arith.mulf %12, %12 : vector<64x128xf32>
    %cst_8 = arith.constant dense<0.000000e+00> : vector<128xf32>
    %16 = vector.multi_reduction <add>, %15, %cst_8 [0] : vector<64x128xf32> to vector<128xf32>
    %17 = vector.shape_cast %16 : vector<128xf32> to vector<1x128xf32>
    %18 = tpu.concatenate %14, %17 in 0 : vector<1x128xf32>, vector<1x128xf32> -> vector<2x128xf32>
    %c0_9 = arith.constant 0 : index
    %c0_10 = arith.constant 0 : index
    %19 = vector.load %arg3[%c0_9, %c0_10] : memref<128x128xf32, #tpu.memory_space<vmem>>, vector<128x128xf32>
    %cst_11 = arith.constant dense<0.000000e+00> : vector<2x128xf32>
    %20 = tpu.matmul %18, %19, %cst_11 {dimension_numbers = #tpu.dot_dimension_numbers<[1], [0], [0], [1], [0, 0, 1, 1], [], []>} : vector<2x128xf32>, vector<128x128xf32>, vector<2x128xf32> -> vector<2x128xf32>
    %cst_12 = arith.constant 1.024000e+03 : f32
    %21 = vector.broadcast %cst_12 : f32 to vector<2x128xf32>
    %22 = arith.divf %20, %21 : vector<2x128xf32>
    %23 = vector.extract_strided_slice %22 {offsets = [0, 0], sizes = [1, 128], strides = [1, 1]} : vector<2x128xf32> to vector<1x128xf32>
    %24 = vector.extract_strided_slice %22 {offsets = [1, 0], sizes = [1, 128], strides = [1, 1]} : vector<2x128xf32> to vector<1x128xf32>
    %25 = arith.mulf %23, %23 : vector<1x128xf32>
    %26 = arith.subf %24, %25 : vector<1x128xf32>
    %27 = vector.broadcast %23 : vector<1x128xf32> to vector<64x128xf32>
    %28 = arith.subf %12, %27 : vector<64x128xf32>
    %cst_13 = arith.constant 9.99999974E-6 : f32
    %29 = vector.broadcast %cst_13 : f32 to vector<1x128xf32>
    %30 = arith.addf %26, %29 : vector<1x128xf32>
    %31 = math.rsqrt %30 : vector<1x128xf32>
    %32 = vector.broadcast %31 : vector<1x128xf32> to vector<64x128xf32>
    %33 = arith.mulf %28, %32 : vector<64x128xf32>
    %c1 = arith.constant 1 : index
    %c0_14 = arith.constant 0 : index
    %34 = vector.load %arg4[%c1, %c0_14] : memref<6x128xf32, #tpu.memory_space<vmem>>, vector<1x128xf32>
    %35 = vector.broadcast %34 : vector<1x128xf32> to vector<64x128xf32>
    %36 = arith.mulf %33, %35 : vector<64x128xf32>
    %c2 = arith.constant 2 : index
    %c0_15 = arith.constant 0 : index
    %37 = vector.load %arg4[%c2, %c0_15] : memref<6x128xf32, #tpu.memory_space<vmem>>, vector<1x128xf32>
    %38 = vector.broadcast %37 : vector<1x128xf32> to vector<64x128xf32>
    %39 = arith.addf %36, %38 : vector<64x128xf32>
    %cst_16 = arith.constant 5.000000e-01 : f32
    %40 = vector.broadcast %cst_16 : f32 to vector<64x128xf32>
    %41 = arith.mulf %40, %39 : vector<64x128xf32>
    %cst_17 = arith.constant 0.707106769 : f32
    %42 = vector.broadcast %cst_17 : f32 to vector<64x128xf32>
    %43 = arith.mulf %39, %42 : vector<64x128xf32>
    %44 = math.erf %43 : vector<64x128xf32>
    %cst_18 = arith.constant 1.000000e+00 : f32
    %45 = vector.broadcast %cst_18 : f32 to vector<64x128xf32>
    %46 = arith.addf %45, %44 : vector<64x128xf32>
    %47 = arith.mulf %41, %46 : vector<64x128xf32>
    %c0_19 = arith.constant 0 : index
    %c0_20 = arith.constant 0 : index
    %48 = vector.load %arg7[%c0_19, %c0_20] : memref<4x32xf32, #tpu.memory_space<vmem>>, vector<1x32xf32>
    %49 = vector.shape_cast %2 : vector<8x8x16xf32> to vector<64x16xf32>
    %c0_21 = arith.constant 0 : index
    %c0_22 = arith.constant 0 : index
    %50 = vector.load %arg5[%c0_21, %c0_22] : memref<16x32xf32, #tpu.memory_space<vmem>>, vector<16x32xf32>
    %cst_23 = arith.constant dense<0.000000e+00> : vector<64x32xf32>
    %51 = tpu.matmul %49, %50, %cst_23 {dimension_numbers = #tpu.dot_dimension_numbers<[1], [0], [0], [1], [0, 0, 1, 1], [], []>} : vector<64x16xf32>, vector<16x32xf32>, vector<64x32xf32> -> vector<64x32xf32>
    %52 = vector.broadcast %48 : vector<1x32xf32> to vector<64x32xf32>
    %53 = arith.addf %51, %52 : vector<64x32xf32>
    %cst_24 = arith.constant dense<0.000000e+00> : vector<32xf32>
    %54 = vector.multi_reduction <add>, %53, %cst_24 [0] : vector<64x32xf32> to vector<32xf32>
    %55 = vector.shape_cast %54 : vector<32xf32> to vector<1x32xf32>
    %cst_25 = arith.constant 1.920000e+02 : f32
    %56 = vector.broadcast %cst_25 : f32 to vector<1x32xf32>
    %57 = arith.mulf %56, %48 : vector<1x32xf32>
    %58 = arith.addf %55, %57 : vector<1x32xf32>
    %59 = arith.mulf %53, %53 : vector<64x32xf32>
    %cst_26 = arith.constant dense<0.000000e+00> : vector<32xf32>
    %60 = vector.multi_reduction <add>, %59, %cst_26 [0] : vector<64x32xf32> to vector<32xf32>
    %61 = vector.shape_cast %60 : vector<32xf32> to vector<1x32xf32>
    %cst_27 = arith.constant 1.920000e+02 : f32
    %62 = vector.broadcast %cst_27 : f32 to vector<1x32xf32>
    %63 = arith.mulf %62, %48 : vector<1x32xf32>
    %64 = arith.mulf %63, %48 : vector<1x32xf32>
    %65 = arith.addf %61, %64 : vector<1x32xf32>
    %66 = tpu.concatenate %58, %65 in 0 : vector<1x32xf32>, vector<1x32xf32> -> vector<2x32xf32>
    %c0_28 = arith.constant 0 : index
    %c0_29 = arith.constant 0 : index
    %67 = vector.load %arg6[%c0_28, %c0_29] : memref<32x32xf32, #tpu.memory_space<vmem>>, vector<32x32xf32>
    %cst_30 = arith.constant dense<0.000000e+00> : vector<2x32xf32>
    %68 = tpu.matmul %66, %67, %cst_30 {dimension_numbers = #tpu.dot_dimension_numbers<[1], [0], [0], [1], [0, 0, 1, 1], [], []>} : vector<2x32xf32>, vector<32x32xf32>, vector<2x32xf32> -> vector<2x32xf32>
    %cst_31 = arith.constant 1.024000e+03 : f32
    %69 = vector.broadcast %cst_31 : f32 to vector<2x32xf32>
    %70 = arith.divf %68, %69 : vector<2x32xf32>
    %71 = vector.extract_strided_slice %70 {offsets = [0, 0], sizes = [1, 32], strides = [1, 1]} : vector<2x32xf32> to vector<1x32xf32>
    %72 = vector.extract_strided_slice %70 {offsets = [1, 0], sizes = [1, 32], strides = [1, 1]} : vector<2x32xf32> to vector<1x32xf32>
    %73 = arith.mulf %71, %71 : vector<1x32xf32>
    %74 = arith.subf %72, %73 : vector<1x32xf32>
    %cst_32 = arith.constant 9.99999974E-6 : f32
    %75 = vector.broadcast %cst_32 : f32 to vector<1x32xf32>
    %76 = arith.addf %74, %75 : vector<1x32xf32>
    %77 = math.rsqrt %76 : vector<1x32xf32>
    %c1_33 = arith.constant 1 : index
    %c0_34 = arith.constant 0 : index
    %78 = vector.load %arg7[%c1_33, %c0_34] : memref<4x32xf32, #tpu.memory_space<vmem>>, vector<1x32xf32>
    %c2_35 = arith.constant 2 : index
    %c0_36 = arith.constant 0 : index
    %79 = vector.load %arg7[%c2_35, %c0_36] : memref<4x32xf32, #tpu.memory_space<vmem>>, vector<1x32xf32>
    %80 = vector.broadcast %71 : vector<1x32xf32> to vector<64x32xf32>
    %81 = arith.subf %53, %80 : vector<64x32xf32>
    %82 = vector.broadcast %77 : vector<1x32xf32> to vector<64x32xf32>
    %83 = arith.mulf %81, %82 : vector<64x32xf32>
    %84 = vector.broadcast %78 : vector<1x32xf32> to vector<64x32xf32>
    %85 = arith.mulf %83, %84 : vector<64x32xf32>
    %86 = vector.broadcast %79 : vector<1x32xf32> to vector<64x32xf32>
    %87 = arith.addf %85, %86 : vector<64x32xf32>
    %88 = arith.subf %48, %71 : vector<1x32xf32>
    %89 = arith.mulf %88, %77 : vector<1x32xf32>
    %90 = arith.mulf %89, %78 : vector<1x32xf32>
    %91 = arith.addf %90, %79 : vector<1x32xf32>
    %92 = vector.shape_cast %91 : vector<1x32xf32> to vector<1x32xf32>
    %93 = vector.broadcast %92 : vector<1x32xf32> to vector<64x32xf32>
    %94 = tpu.concatenate %87, %93, %93, %93 in 1 : vector<64x32xf32>, vector<64x32xf32>, vector<64x32xf32>, vector<64x32xf32> -> vector<64x128xf32>
    %cst_37 = arith.constant 0.000000e+00 : f32
    %95 = vector.broadcast %cst_37 : f32 to vector<1x10x128xf32>
    %c0_38 = arith.constant 0 : index
    %c0_39 = arith.constant 0 : index
    %c0_40 = arith.constant 0 : index
    %96 = vector.load %arg14[%c0_38, %c0_39, %c0_40] : memref<10x10x128xf32, #tpu.memory_space<vmem>>, vector<1x10x128xf32>
    tpu.vector_store %arg14[%c0_38, %c0_39, %c0_40], %95 {strides = array<i32>} : memref<10x10x128xf32, #tpu.memory_space<vmem>>, vector<1x10x128xf32>,
    %cst_41 = arith.constant 0.000000e+00 : f32
    %97 = vector.broadcast %cst_41 : f32 to vector<1x10x128xf32>
    %c9 = arith.constant 9 : index
    %c0_42 = arith.constant 0 : index
    %c0_43 = arith.constant 0 : index
    %98 = vector.load %arg14[%c9, %c0_42, %c0_43] : memref<10x10x128xf32, #tpu.memory_space<vmem>>, vector<1x10x128xf32>
    tpu.vector_store %arg14[%c9, %c0_42, %c0_43], %97 {strides = array<i32>} : memref<10x10x128xf32, #tpu.memory_space<vmem>>, vector<1x10x128xf32>,
    %cst_44 = arith.constant 0.000000e+00 : f32
    %99 = vector.broadcast %cst_44 : f32 to vector<8x1x128xf32>
    %c1_45 = arith.constant 1 : index
    %c0_46 = arith.constant 0 : index
    %c0_47 = arith.constant 0 : index
    %100 = vector.load %arg14[%c1_45, %c0_46, %c0_47] : memref<10x10x128xf32, #tpu.memory_space<vmem>>, vector<8x1x128xf32>
    tpu.vector_store %arg14[%c1_45, %c0_46, %c0_47], %99 {strides = array<i32>} : memref<10x10x128xf32, #tpu.memory_space<vmem>>, vector<8x1x128xf32>,
    %cst_48 = arith.constant 0.000000e+00 : f32
    %101 = vector.broadcast %cst_48 : f32 to vector<8x1x128xf32>
    %c1_49 = arith.constant 1 : index
    %c9_50 = arith.constant 9 : index
    %c0_51 = arith.constant 0 : index
    %102 = vector.load %arg14[%c1_49, %c9_50, %c0_51] : memref<10x10x128xf32, #tpu.memory_space<vmem>>, vector<8x1x128xf32>
    tpu.vector_store %arg14[%c1_49, %c9_50, %c0_51], %101 {strides = array<i32>} : memref<10x10x128xf32, #tpu.memory_space<vmem>>, vector<8x1x128xf32>,
    %103 = vector.shape_cast %47 : vector<64x128xf32> to vector<8x8x128xf32>
    %c1_52 = arith.constant 1 : index
    %c1_53 = arith.constant 1 : index
    %c0_54 = arith.constant 0 : index
    %104 = vector.load %arg14[%c1_52, %c1_53, %c0_54] : memref<10x10x128xf32, #tpu.memory_space<vmem>>, vector<8x8x128xf32>
    tpu.vector_store %arg14[%c1_52, %c1_53, %c0_54], %103 {strides = array<i32>} : memref<10x10x128xf32, #tpu.memory_space<vmem>>, vector<8x8x128xf32>,
    %c0_55 = arith.constant 0 : index
    %c0_56 = arith.constant 0 : index
    %c0_57 = arith.constant 0 : index
    %105 = vector.load %arg14[%c0_55, %c0_56, %c0_57] : memref<10x10x128xf32, #tpu.memory_space<vmem>>, vector<8x8x128xf32>
    %c0_58 = arith.constant 0 : index
    %c1_59 = arith.constant 1 : index
    %c0_60 = arith.constant 0 : index
    %106 = vector.load %arg14[%c0_58, %c1_59, %c0_60] : memref<10x10x128xf32, #tpu.memory_space<vmem>>, vector<8x8x128xf32>
    %c0_61 = arith.constant 0 : index
    %c2_62 = arith.constant 2 : index
    %c0_63 = arith.constant 0 : index
    %107 = vector.load %arg14[%c0_61, %c2_62, %c0_63] : memref<10x10x128xf32, #tpu.memory_space<vmem>>, vector<8x8x128xf32>
    %c1_64 = arith.constant 1 : index
    %c0_65 = arith.constant 0 : index
    %c0_66 = arith.constant 0 : index
    %108 = vector.load %arg14[%c1_64, %c0_65, %c0_66] : memref<10x10x128xf32, #tpu.memory_space<vmem>>, vector<8x8x128xf32>
    %c1_67 = arith.constant 1 : index
    %c1_68 = arith.constant 1 : index
    %c0_69 = arith.constant 0 : index
    %109 = vector.load %arg14[%c1_67, %c1_68, %c0_69] : memref<10x10x128xf32, #tpu.memory_space<vmem>>, vector<8x8x128xf32>
    %c1_70 = arith.constant 1 : index
    %c2_71 = arith.constant 2 : index
    %c0_72 = arith.constant 0 : index
    %110 = vector.load %arg14[%c1_70, %c2_71, %c0_72] : memref<10x10x128xf32, #tpu.memory_space<vmem>>, vector<8x8x128xf32>
    %c2_73 = arith.constant 2 : index
    %c0_74 = arith.constant 0 : index
    %c0_75 = arith.constant 0 : index
    %111 = vector.load %arg14[%c2_73, %c0_74, %c0_75] : memref<10x10x128xf32, #tpu.memory_space<vmem>>, vector<8x8x128xf32>
    %c2_76 = arith.constant 2 : index
    %c1_77 = arith.constant 1 : index
    %c0_78 = arith.constant 0 : index
    %112 = vector.load %arg14[%c2_76, %c1_77, %c0_78] : memref<10x10x128xf32, #tpu.memory_space<vmem>>, vector<8x8x128xf32>
    %c2_79 = arith.constant 2 : index
    %c2_80 = arith.constant 2 : index
    %c0_81 = arith.constant 0 : index
    %113 = vector.load %arg14[%c2_79, %c2_80, %c0_81] : memref<10x10x128xf32, #tpu.memory_space<vmem>>, vector<8x8x128xf32>
    %114 = tpu.concatenate %105, %106, %107, %108, %109, %110, %111, %112, %113 in 2 : vector<8x8x128xf32>, vector<8x8x128xf32>, vector<8x8x128xf32>, vector<8x8x128xf32>, vector<8x8x128xf32>, vector<8x8x128xf32>, vector<8x8x128xf32>, vector<8x8x128xf32>, vector<8x8x128xf32> -> vector<8x8x1152xf32>
    %115 = vector.shape_cast %114 : vector<8x8x1152xf32> to vector<64x1152xf32>
    %c0_82 = arith.constant 0 : index
    %c0_83 = arith.constant 0 : index
    %116 = vector.load %arg8[%c0_82, %c0_83] : memref<1152x128xf32, #tpu.memory_space<vmem>>, vector<1152x128xf32>
    %cst_84 = arith.constant dense<0.000000e+00> : vector<64x128xf32>
    %117 = tpu.matmul %115, %116, %cst_84 {dimension_numbers = #tpu.dot_dimension_numbers<[1], [0], [0], [1], [0, 0, 1, 1], [], []>} : vector<64x1152xf32>, vector<1152x128xf32>, vector<64x128xf32> -> vector<64x128xf32>
    %c3 = arith.constant 3 : index
    %c0_85 = arith.constant 0 : index
    %118 = vector.load %arg4[%c3, %c0_85] : memref<6x128xf32, #tpu.memory_space<vmem>>, vector<1x128xf32>
    %119 = vector.broadcast %118 : vector<1x128xf32> to vector<64x128xf32>
    %120 = arith.addf %117, %119 : vector<64x128xf32>
    %cst_86 = arith.constant dense<0.000000e+00> : vector<128xf32>
    %121 = vector.multi_reduction <add>, %120, %cst_86 [0] : vector<64x128xf32> to vector<128xf32>
    %122 = vector.shape_cast %121 : vector<128xf32> to vector<1x128xf32>
    %123 = arith.mulf %120, %120 : vector<64x128xf32>
    %cst_87 = arith.constant dense<0.000000e+00> : vector<128xf32>
    %124 = vector.multi_reduction <add>, %123, %cst_87 [0] : vector<64x128xf32> to vector<128xf32>
    %125 = vector.shape_cast %124 : vector<128xf32> to vector<1x128xf32>
    %126 = tpu.concatenate %122, %125 in 0 : vector<1x128xf32>, vector<1x128xf32> -> vector<2x128xf32>
    %c0_88 = arith.constant 0 : index
    %c0_89 = arith.constant 0 : index
    %127 = vector.load %arg3[%c0_88, %c0_89] : memref<128x128xf32, #tpu.memory_space<vmem>>, vector<128x128xf32>
    %cst_90 = arith.constant dense<0.000000e+00> : vector<2x128xf32>
    %128 = tpu.matmul %126, %127, %cst_90 {dimension_numbers = #tpu.dot_dimension_numbers<[1], [0], [0], [1], [0, 0, 1, 1], [], []>} : vector<2x128xf32>, vector<128x128xf32>, vector<2x128xf32> -> vector<2x128xf32>
    %cst_91 = arith.constant 1.024000e+03 : f32
    %129 = vector.broadcast %cst_91 : f32 to vector<2x128xf32>
    %130 = arith.divf %128, %129 : vector<2x128xf32>
    %131 = vector.extract_strided_slice %130 {offsets = [0, 0], sizes = [1, 128], strides = [1, 1]} : vector<2x128xf32> to vector<1x128xf32>
    %132 = vector.extract_strided_slice %130 {offsets = [1, 0], sizes = [1, 128], strides = [1, 1]} : vector<2x128xf32> to vector<1x128xf32>
    %133 = arith.mulf %131, %131 : vector<1x128xf32>
    %134 = arith.subf %132, %133 : vector<1x128xf32>
    %135 = vector.broadcast %131 : vector<1x128xf32> to vector<64x128xf32>
    %136 = arith.subf %120, %135 : vector<64x128xf32>
    %cst_92 = arith.constant 9.99999974E-6 : f32
    %137 = vector.broadcast %cst_92 : f32 to vector<1x128xf32>
    %138 = arith.addf %134, %137 : vector<1x128xf32>
    %139 = math.rsqrt %138 : vector<1x128xf32>
    %140 = vector.broadcast %139 : vector<1x128xf32> to vector<64x128xf32>
    %141 = arith.mulf %136, %140 : vector<64x128xf32>
    %c4 = arith.constant 4 : index
    %c0_93 = arith.constant 0 : index
    %142 = vector.load %arg4[%c4, %c0_93] : memref<6x128xf32, #tpu.memory_space<vmem>>, vector<1x128xf32>
    %143 = vector.broadcast %142 : vector<1x128xf32> to vector<64x128xf32>
    %144 = arith.mulf %141, %143 : vector<64x128xf32>
    %c5 = arith.constant 5 : index
    %c0_94 = arith.constant 0 : index
    %145 = vector.load %arg4[%c5, %c0_94] : memref<6x128xf32, #tpu.memory_space<vmem>>, vector<1x128xf32>
    %146 = vector.broadcast %145 : vector<1x128xf32> to vector<64x128xf32>
    %147 = arith.addf %144, %146 : vector<64x128xf32>
    %cst_95 = arith.constant dense<0.000000e+00> : vector<128xf32>
    %148 = vector.multi_reduction <add>, %147, %cst_95 [0] : vector<64x128xf32> to vector<128xf32>
    %149 = vector.shape_cast %148 : vector<128xf32> to vector<1x128xf32>
    %cst_96 = arith.constant dense<0xFF800000> : vector<128xf32>
    %150 = vector.multi_reduction <maximumf>, %147, %cst_96 [0] : vector<64x128xf32> to vector<128xf32>
    %151 = vector.shape_cast %150 : vector<128xf32> to vector<1x128xf32>
    %152 = vector.extract_strided_slice %149 {offsets = [0, 0], sizes = [1, 32], strides = [1, 1]} : vector<1x128xf32> to vector<1x32xf32>
    %153 = vector.extract_strided_slice %149 {offsets = [0, 32], sizes = [1, 32], strides = [1, 1]} : vector<1x128xf32> to vector<1x32xf32>
    %154 = arith.addf %152, %153 : vector<1x32xf32>
    %155 = vector.extract_strided_slice %149 {offsets = [0, 64], sizes = [1, 32], strides = [1, 1]} : vector<1x128xf32> to vector<1x32xf32>
    %156 = arith.addf %154, %155 : vector<1x32xf32>
    %157 = vector.extract_strided_slice %149 {offsets = [0, 96], sizes = [1, 32], strides = [1, 1]} : vector<1x128xf32> to vector<1x32xf32>
    %158 = arith.addf %156, %157 : vector<1x32xf32>
    %cst_97 = arith.constant 3.906250e-03 : f32
    %159 = vector.broadcast %cst_97 : f32 to vector<1x32xf32>
    %160 = arith.mulf %158, %159 : vector<1x32xf32>
    %161 = vector.extract_strided_slice %151 {offsets = [0, 0], sizes = [1, 32], strides = [1, 1]} : vector<1x128xf32> to vector<1x32xf32>
    %162 = vector.extract_strided_slice %151 {offsets = [0, 32], sizes = [1, 32], strides = [1, 1]} : vector<1x128xf32> to vector<1x32xf32>
    %163 = arith.maximumf %161, %162 : vector<1x32xf32>
    %164 = vector.extract_strided_slice %151 {offsets = [0, 64], sizes = [1, 32], strides = [1, 1]} : vector<1x128xf32> to vector<1x32xf32>
    %165 = vector.extract_strided_slice %151 {offsets = [0, 96], sizes = [1, 32], strides = [1, 1]} : vector<1x128xf32> to vector<1x32xf32>
    %166 = arith.maximumf %164, %165 : vector<1x32xf32>
    %167 = arith.maximumf %163, %166 : vector<1x32xf32>
    %168 = tpu.concatenate %160, %167 in 0 : vector<1x32xf32>, vector<1x32xf32> -> vector<2x32xf32>
    %c0_98 = arith.constant 0 : index
    %c0_99 = arith.constant 0 : index
    %169 = vector.load %arg9[%c0_98, %c0_99] : memref<32x4xf32, #tpu.memory_space<vmem>>, vector<32x4xf32>
    %cst_100 = arith.constant dense<0.000000e+00> : vector<2x4xf32>
    %170 = tpu.matmul %168, %169, %cst_100 {dimension_numbers = #tpu.dot_dimension_numbers<[1], [0], [0], [1], [0, 0, 1, 1], [], []>} : vector<2x32xf32>, vector<32x4xf32>, vector<2x4xf32> -> vector<2x4xf32>
    %c0_101 = arith.constant 0 : index
    %c0_102 = arith.constant 0 : index
    %171 = vector.load %arg10[%c0_101, %c0_102] : memref<1x4xf32, #tpu.memory_space<vmem>>, vector<1x4xf32>
    %172 = vector.broadcast %171 : vector<1x4xf32> to vector<2x4xf32>
    %173 = arith.addf %170, %172 : vector<2x4xf32>
    %cst_103 = arith.constant 0.000000e+00 : f32
    %174 = vector.broadcast %cst_103 : f32 to vector<2x4xf32>
    %175 = arith.maximumf %173, %174 : vector<2x4xf32>
    %c0_104 = arith.constant 0 : index
    %c0_105 = arith.constant 0 : index
    %176 = vector.load %arg11[%c0_104, %c0_105] : memref<4x32xf32, #tpu.memory_space<vmem>>, vector<4x32xf32>
    %cst_106 = arith.constant dense<0.000000e+00> : vector<2x32xf32>
    %177 = tpu.matmul %175, %176, %cst_106 {dimension_numbers = #tpu.dot_dimension_numbers<[1], [0], [0], [1], [0, 0, 1, 1], [], []>} : vector<2x4xf32>, vector<4x32xf32>, vector<2x32xf32> -> vector<2x32xf32>
    %c3_107 = arith.constant 3 : index
    %c0_108 = arith.constant 0 : index
    %178 = vector.load %arg7[%c3_107, %c0_108] : memref<4x32xf32, #tpu.memory_space<vmem>>, vector<1x32xf32>
    %179 = vector.broadcast %178 : vector<1x32xf32> to vector<2x32xf32>
    %180 = arith.addf %177, %179 : vector<2x32xf32>
    %181 = vector.extract_strided_slice %180 {offsets = [0, 0], sizes = [1, 32], strides = [1, 1]} : vector<2x32xf32> to vector<1x32xf32>
    %182 = vector.extract_strided_slice %180 {offsets = [1, 0], sizes = [1, 32], strides = [1, 1]} : vector<2x32xf32> to vector<1x32xf32>
    %183 = arith.addf %181, %182 : vector<1x32xf32>
    %184 = arith.negf %183 : vector<1x32xf32>
    %185 = math.exp %184 : vector<1x32xf32>
    %cst_109 = arith.constant 1.000000e+00 : f32
    %186 = vector.broadcast %cst_109 : f32 to vector<1x32xf32>
    %187 = arith.addf %186, %185 : vector<1x32xf32>
    %188 = arith.divf %186, %187 : vector<1x32xf32>
    %189 = tpu.concatenate %188, %188, %188, %188 in 1 : vector<1x32xf32>, vector<1x32xf32>, vector<1x32xf32>, vector<1x32xf32> -> vector<1x128xf32>
    %190 = vector.broadcast %189 : vector<1x128xf32> to vector<64x128xf32>
    %191 = arith.mulf %147, %190 : vector<64x128xf32>
    %192 = vector.extract_strided_slice %191 {offsets = [0, 0], sizes = [64, 32], strides = [1, 1]} : vector<64x128xf32> to vector<64x32xf32>
    %cst_110 = arith.constant dense<0.000000e+00> : vector<64xf32>
    %193 = vector.multi_reduction <add>, %192, %cst_110 [1] : vector<64x32xf32> to vector<64xf32>
    %194 = vector.shape_cast %193 : vector<64xf32> to vector<64x1xf32>
    %cst_111 = arith.constant 3.200000e+01 : f32
    %195 = vector.broadcast %cst_111 : f32 to vector<64x1xf32>
    %196 = arith.divf %194, %195 : vector<64x1xf32>
    %197 = vector.extract_strided_slice %191 {offsets = [0, 32], sizes = [64, 32], strides = [1, 1]} : vector<64x128xf32> to vector<64x32xf32>
    %cst_112 = arith.constant dense<0.000000e+00> : vector<64xf32>
    %198 = vector.multi_reduction <add>, %197, %cst_112 [1] : vector<64x32xf32> to vector<64xf32>
    %199 = vector.shape_cast %198 : vector<64xf32> to vector<64x1xf32>
    %cst_113 = arith.constant 3.200000e+01 : f32
    %200 = vector.broadcast %cst_113 : f32 to vector<64x1xf32>
    %201 = arith.divf %199, %200 : vector<64x1xf32>
    %202 = vector.extract_strided_slice %191 {offsets = [0, 64], sizes = [64, 32], strides = [1, 1]} : vector<64x128xf32> to vector<64x32xf32>
    %cst_114 = arith.constant dense<0.000000e+00> : vector<64xf32>
    %203 = vector.multi_reduction <add>, %202, %cst_114 [1] : vector<64x32xf32> to vector<64xf32>
    %204 = vector.shape_cast %203 : vector<64xf32> to vector<64x1xf32>
    %cst_115 = arith.constant 3.200000e+01 : f32
    %205 = vector.broadcast %cst_115 : f32 to vector<64x1xf32>
    %206 = arith.divf %204, %205 : vector<64x1xf32>
    %207 = vector.extract_strided_slice %191 {offsets = [0, 96], sizes = [64, 32], strides = [1, 1]} : vector<64x128xf32> to vector<64x32xf32>
    %cst_116 = arith.constant dense<0.000000e+00> : vector<64xf32>
    %208 = vector.multi_reduction <add>, %207, %cst_116 [1] : vector<64x32xf32> to vector<64xf32>
    %209 = vector.shape_cast %208 : vector<64xf32> to vector<64x1xf32>
    %cst_117 = arith.constant 3.200000e+01 : f32
    %210 = vector.broadcast %cst_117 : f32 to vector<64x1xf32>
    %211 = arith.divf %209, %210 : vector<64x1xf32>
    %212 = vector.extract_strided_slice %191 {offsets = [0, 0], sizes = [64, 32], strides = [1, 1]} : vector<64x128xf32> to vector<64x32xf32>
    %cst_118 = arith.constant dense<0xFF800000> : vector<64xf32>
    %213 = vector.multi_reduction <maximumf>, %212, %cst_118 [1] : vector<64x32xf32> to vector<64xf32>
    %214 = vector.shape_cast %213 : vector<64xf32> to vector<64x1xf32>
    %215 = vector.extract_strided_slice %191 {offsets = [0, 32], sizes = [64, 32], strides = [1, 1]} : vector<64x128xf32> to vector<64x32xf32>
    %cst_119 = arith.constant dense<0xFF800000> : vector<64xf32>
    %216 = vector.multi_reduction <maximumf>, %215, %cst_119 [1] : vector<64x32xf32> to vector<64xf32>
    %217 = vector.shape_cast %216 : vector<64xf32> to vector<64x1xf32>
    %218 = vector.extract_strided_slice %191 {offsets = [0, 64], sizes = [64, 32], strides = [1, 1]} : vector<64x128xf32> to vector<64x32xf32>
    %cst_120 = arith.constant dense<0xFF800000> : vector<64xf32>
    %219 = vector.multi_reduction <maximumf>, %218, %cst_120 [1] : vector<64x32xf32> to vector<64xf32>
    %220 = vector.shape_cast %219 : vector<64xf32> to vector<64x1xf32>
    %221 = vector.extract_strided_slice %191 {offsets = [0, 96], sizes = [64, 32], strides = [1, 1]} : vector<64x128xf32> to vector<64x32xf32>
    %cst_121 = arith.constant dense<0xFF800000> : vector<64xf32>
    %222 = vector.multi_reduction <maximumf>, %221, %cst_121 [1] : vector<64x32xf32> to vector<64xf32>
    %223 = vector.shape_cast %222 : vector<64xf32> to vector<64x1xf32>
    %224 = tpu.concatenate %196, %201, %206, %211, %214, %217, %220, %223 in 1 : vector<64x1xf32>, vector<64x1xf32>, vector<64x1xf32>, vector<64x1xf32>, vector<64x1xf32>, vector<64x1xf32>, vector<64x1xf32>, vector<64x1xf32> -> vector<64x8xf32>
    %cst_122 = arith.constant 0.000000e+00 : f32
    %225 = vector.broadcast %cst_122 : f32 to vector<2x12x8xf32>
    %c0_123 = arith.constant 0 : index
    %c0_124 = arith.constant 0 : index
    %c0_125 = arith.constant 0 : index
    %226 = vector.load %arg15[%c0_123, %c0_124, %c0_125] : memref<12x12x8xf32, #tpu.memory_space<vmem>>, vector<2x12x8xf32>
    tpu.vector_store %arg15[%c0_123, %c0_124, %c0_125], %225 {strides = array<i32>} : memref<12x12x8xf32, #tpu.memory_space<vmem>>, vector<2x12x8xf32>,
    %cst_126 = arith.constant 0.000000e+00 : f32
    %227 = vector.broadcast %cst_126 : f32 to vector<2x12x8xf32>
    %c10 = arith.constant 10 : index
    %c0_127 = arith.constant 0 : index
    %c0_128 = arith.constant 0 : index
    %228 = vector.load %arg15[%c10, %c0_127, %c0_128] : memref<12x12x8xf32, #tpu.memory_space<vmem>>, vector<2x12x8xf32>
    tpu.vector_store %arg15[%c10, %c0_127, %c0_128], %227 {strides = array<i32>} : memref<12x12x8xf32, #tpu.memory_space<vmem>>, vector<2x12x8xf32>,
    %cst_129 = arith.constant 0.000000e+00 : f32
    %229 = vector.broadcast %cst_129 : f32 to vector<8x2x8xf32>
    %c2_130 = arith.constant 2 : index
    %c0_131 = arith.constant 0 : index
    %c0_132 = arith.constant 0 : index
    %230 = vector.load %arg15[%c2_130, %c0_131, %c0_132] : memref<12x12x8xf32, #tpu.memory_space<vmem>>, vector<8x2x8xf32>
    tpu.vector_store %arg15[%c2_130, %c0_131, %c0_132], %229 {strides = array<i32>} : memref<12x12x8xf32, #tpu.memory_space<vmem>>, vector<8x2x8xf32>,
    %cst_133 = arith.constant 0.000000e+00 : f32
    %231 = vector.broadcast %cst_133 : f32 to vector<8x2x8xf32>
    %c2_134 = arith.constant 2 : index
    %c10_135 = arith.constant 10 : index
    %c0_136 = arith.constant 0 : index
    %232 = vector.load %arg15[%c2_134, %c10_135, %c0_136] : memref<12x12x8xf32, #tpu.memory_space<vmem>>, vector<8x2x8xf32>
    tpu.vector_store %arg15[%c2_134, %c10_135, %c0_136], %231 {strides = array<i32>} : memref<12x12x8xf32, #tpu.memory_space<vmem>>, vector<8x2x8xf32>,
    %233 = vector.shape_cast %224 : vector<64x8xf32> to vector<8x8x8xf32>
    %c2_137 = arith.constant 2 : index
    %c2_138 = arith.constant 2 : index
    %c0_139 = arith.constant 0 : index
    %234 = vector.load %arg15[%c2_137, %c2_138, %c0_139] : memref<12x12x8xf32, #tpu.memory_space<vmem>>, vector<8x8x8xf32>
    tpu.vector_store %arg15[%c2_137, %c2_138, %c0_139], %233 {strides = array<i32>} : memref<12x12x8xf32, #tpu.memory_space<vmem>>, vector<8x8x8xf32>,
    %c0_140 = arith.constant 0 : index
    %c0_141 = arith.constant 0 : index
    %c0_142 = arith.constant 0 : index
    %235 = vector.load %arg15[%c0_140, %c0_141, %c0_142] : memref<12x12x8xf32, #tpu.memory_space<vmem>>, vector<8x8x8xf32>
    %c0_143 = arith.constant 0 : index
    %c1_144 = arith.constant 1 : index
    %c0_145 = arith.constant 0 : index
    %236 = vector.load %arg15[%c0_143, %c1_144, %c0_145] : memref<12x12x8xf32, #tpu.memory_space<vmem>>, vector<8x8x8xf32>
    %c0_146 = arith.constant 0 : index
    %c2_147 = arith.constant 2 : index
    %c0_148 = arith.constant 0 : index
    %237 = vector.load %arg15[%c0_146, %c2_147, %c0_148] : memref<12x12x8xf32, #tpu.memory_space<vmem>>, vector<8x8x8xf32>
    %c0_149 = arith.constant 0 : index
    %c3_150 = arith.constant 3 : index
    %c0_151 = arith.constant 0 : index
    %238 = vector.load %arg15[%c0_149, %c3_150, %c0_151] : memref<12x12x8xf32, #tpu.memory_space<vmem>>, vector<8x8x8xf32>
    %c0_152 = arith.constant 0 : index
    %c4_153 = arith.constant 4 : index
    %c0_154 = arith.constant 0 : index
    %239 = vector.load %arg15[%c0_152, %c4_153, %c0_154] : memref<12x12x8xf32, #tpu.memory_space<vmem>>, vector<8x8x8xf32>
    %c1_155 = arith.constant 1 : index
    %c0_156 = arith.constant 0 : index
    %c0_157 = arith.constant 0 : index
    %240 = vector.load %arg15[%c1_155, %c0_156, %c0_157] : memref<12x12x8xf32, #tpu.memory_space<vmem>>, vector<8x8x8xf32>
    %c1_158 = arith.constant 1 : index
    %c1_159 = arith.constant 1 : index
    %c0_160 = arith.constant 0 : index
    %241 = vector.load %arg15[%c1_158, %c1_159, %c0_160] : memref<12x12x8xf32, #tpu.memory_space<vmem>>, vector<8x8x8xf32>
    %c1_161 = arith.constant 1 : index
    %c2_162 = arith.constant 2 : index
    %c0_163 = arith.constant 0 : index
    %242 = vector.load %arg15[%c1_161, %c2_162, %c0_163] : memref<12x12x8xf32, #tpu.memory_space<vmem>>, vector<8x8x8xf32>
    %c1_164 = arith.constant 1 : index
    %c3_165 = arith.constant 3 : index
    %c0_166 = arith.constant 0 : index
    %243 = vector.load %arg15[%c1_164, %c3_165, %c0_166] : memref<12x12x8xf32, #tpu.memory_space<vmem>>, vector<8x8x8xf32>
    %c1_167 = arith.constant 1 : index
    %c4_168 = arith.constant 4 : index
    %c0_169 = arith.constant 0 : index
    %244 = vector.load %arg15[%c1_167, %c4_168, %c0_169] : memref<12x12x8xf32, #tpu.memory_space<vmem>>, vector<8x8x8xf32>
    %c2_170 = arith.constant 2 : index
    %c0_171 = arith.constant 0 : index
    %c0_172 = arith.constant 0 : index
    %245 = vector.load %arg15[%c2_170, %c0_171, %c0_172] : memref<12x12x8xf32, #tpu.memory_space<vmem>>, vector<8x8x8xf32>
    %c2_173 = arith.constant 2 : index
    %c1_174 = arith.constant 1 : index
    %c0_175 = arith.constant 0 : index
    %246 = vector.load %arg15[%c2_173, %c1_174, %c0_175] : memref<12x12x8xf32, #tpu.memory_space<vmem>>, vector<8x8x8xf32>
    %c2_176 = arith.constant 2 : index
    %c2_177 = arith.constant 2 : index
    %c0_178 = arith.constant 0 : index
    %247 = vector.load %arg15[%c2_176, %c2_177, %c0_178] : memref<12x12x8xf32, #tpu.memory_space<vmem>>, vector<8x8x8xf32>
    %c2_179 = arith.constant 2 : index
    %c3_180 = arith.constant 3 : index
    %c0_181 = arith.constant 0 : index
    %248 = vector.load %arg15[%c2_179, %c3_180, %c0_181] : memref<12x12x8xf32, #tpu.memory_space<vmem>>, vector<8x8x8xf32>
    %c2_182 = arith.constant 2 : index
    %c4_183 = arith.constant 4 : index
    %c0_184 = arith.constant 0 : index
    %249 = vector.load %arg15[%c2_182, %c4_183, %c0_184] : memref<12x12x8xf32, #tpu.memory_space<vmem>>, vector<8x8x8xf32>
    %c3_185 = arith.constant 3 : index
    %c0_186 = arith.constant 0 : index
    %c0_187 = arith.constant 0 : index
    %250 = vector.load %arg15[%c3_185, %c0_186, %c0_187] : memref<12x12x8xf32, #tpu.memory_space<vmem>>, vector<8x8x8xf32>
    %c3_188 = arith.constant 3 : index
    %c1_189 = arith.constant 1 : index
    %c0_190 = arith.constant 0 : index
    %251 = vector.load %arg15[%c3_188, %c1_189, %c0_190] : memref<12x12x8xf32, #tpu.memory_space<vmem>>, vector<8x8x8xf32>
    %c3_191 = arith.constant 3 : index
    %c2_192 = arith.constant 2 : index
    %c0_193 = arith.constant 0 : index
    %252 = vector.load %arg15[%c3_191, %c2_192, %c0_193] : memref<12x12x8xf32, #tpu.memory_space<vmem>>, vector<8x8x8xf32>
    %c3_194 = arith.constant 3 : index
    %c3_195 = arith.constant 3 : index
    %c0_196 = arith.constant 0 : index
    %253 = vector.load %arg15[%c3_194, %c3_195, %c0_196] : memref<12x12x8xf32, #tpu.memory_space<vmem>>, vector<8x8x8xf32>
    %c3_197 = arith.constant 3 : index
    %c4_198 = arith.constant 4 : index
    %c0_199 = arith.constant 0 : index
    %254 = vector.load %arg15[%c3_197, %c4_198, %c0_199] : memref<12x12x8xf32, #tpu.memory_space<vmem>>, vector<8x8x8xf32>
    %c4_200 = arith.constant 4 : index
    %c0_201 = arith.constant 0 : index
    %c0_202 = arith.constant 0 : index
    %255 = vector.load %arg15[%c4_200, %c0_201, %c0_202] : memref<12x12x8xf32, #tpu.memory_space<vmem>>, vector<8x8x8xf32>
    %c4_203 = arith.constant 4 : index
    %c1_204 = arith.constant 1 : index
    %c0_205 = arith.constant 0 : index
    %256 = vector.load %arg15[%c4_203, %c1_204, %c0_205] : memref<12x12x8xf32, #tpu.memory_space<vmem>>, vector<8x8x8xf32>
    %c4_206 = arith.constant 4 : index
    %c2_207 = arith.constant 2 : index
    %c0_208 = arith.constant 0 : index
    %257 = vector.load %arg15[%c4_206, %c2_207, %c0_208] : memref<12x12x8xf32, #tpu.memory_space<vmem>>, vector<8x8x8xf32>
    %c4_209 = arith.constant 4 : index
    %c3_210 = arith.constant 3 : index
    %c0_211 = arith.constant 0 : index
    %258 = vector.load %arg15[%c4_209, %c3_210, %c0_211] : memref<12x12x8xf32, #tpu.memory_space<vmem>>, vector<8x8x8xf32>
    %c4_212 = arith.constant 4 : index
    %c4_213 = arith.constant 4 : index
    %c0_214 = arith.constant 0 : index
    %259 = vector.load %arg15[%c4_212, %c4_213, %c0_214] : memref<12x12x8xf32, #tpu.memory_space<vmem>>, vector<8x8x8xf32>
    %260 = tpu.concatenate %235, %236, %237, %238, %239, %240, %241, %242, %243, %244, %245, %246, %247, %248, %249, %250 in 2 : vector<8x8x8xf32>, vector<8x8x8xf32>, vector<8x8x8xf32>, vector<8x8x8xf32>, vector<8x8x8xf32>, vector<8x8x8xf32>, vector<8x8x8xf32>, vector<8x8x8xf32>, vector<8x8x8xf32>, vector<8x8x8xf32>, vector<8x8x8xf32>, vector<8x8x8xf32>, vector<8x8x8xf32>, vector<8x8x8xf32>, vector<8x8x8xf32>, vector<8x8x8xf32> -> vector<8x8x128xf32>
    %261 = tpu.concatenate %251, %252, %253, %254, %255, %256, %257, %258, %259 in 2 : vector<8x8x8xf32>, vector<8x8x8xf32>, vector<8x8x8xf32>, vector<8x8x8xf32>, vector<8x8x8xf32>, vector<8x8x8xf32>, vector<8x8x8xf32>, vector<8x8x8xf32>, vector<8x8x8xf32> -> vector<8x8x72xf32>
    %262 = tpu.concatenate %260, %261 in 2 : vector<8x8x128xf32>, vector<8x8x72xf32> -> vector<8x8x200xf32>
    %263 = vector.shape_cast %262 : vector<8x8x200xf32> to vector<64x200xf32>
    %cst_215 = arith.constant 1.000000e+00 : f32
    %264 = vector.broadcast %cst_215 : f32 to vector<64x1xf32>
    %265 = tpu.concatenate %263, %264 in 1 : vector<64x200xf32>, vector<64x1xf32> -> vector<64x201xf32>
    %c0_216 = arith.constant 0 : index
    %c0_217 = arith.constant 0 : index
    %266 = vector.load %arg12[%c0_216, %c0_217] : memref<201x4xf32, #tpu.memory_space<vmem>>, vector<201x4xf32>
    %cst_218 = arith.constant dense<0.000000e+00> : vector<64x4xf32>
    %267 = tpu.matmul %265, %266, %cst_218 {dimension_numbers = #tpu.dot_dimension_numbers<[1], [0], [0], [1], [0, 0, 1, 1], [], []>} : vector<64x201xf32>, vector<201x4xf32>, vector<64x4xf32> -> vector<64x4xf32>
    %268 = arith.negf %267 : vector<64x4xf32>
    %269 = math.exp %268 : vector<64x4xf32>
    %cst_219 = arith.constant 1.000000e+00 : f32
    %270 = vector.broadcast %cst_219 : f32 to vector<64x4xf32>
    %271 = arith.addf %270, %269 : vector<64x4xf32>
    %272 = arith.divf %270, %271 : vector<64x4xf32>
    %273 = arith.negf %272 : vector<64x4xf32>
    %274 = math.exp %273 : vector<64x4xf32>
    %cst_220 = arith.constant 1.000000e+00 : f32
    %275 = vector.broadcast %cst_220 : f32 to vector<64x4xf32>
    %276 = arith.addf %275, %274 : vector<64x4xf32>
    %277 = arith.divf %275, %276 : vector<64x4xf32>
    %278 = vector.extract_strided_slice %191 {offsets = [0, 0], sizes = [64, 32], strides = [1, 1]} : vector<64x128xf32> to vector<64x32xf32>
    %279 = vector.extract_strided_slice %277 {offsets = [0, 0], sizes = [64, 1], strides = [1, 1]} : vector<64x4xf32> to vector<64x1xf32>
    %280 = vector.broadcast %279 : vector<64x1xf32> to vector<64x32xf32>
    %281 = arith.mulf %278, %280 : vector<64x32xf32>
    %282 = vector.extract_strided_slice %191 {offsets = [0, 32], sizes = [64, 32], strides = [1, 1]} : vector<64x128xf32> to vector<64x32xf32>
    %283 = vector.extract_strided_slice %277 {offsets = [0, 1], sizes = [64, 1], strides = [1, 1]} : vector<64x4xf32> to vector<64x1xf32>
    %284 = vector.broadcast %283 : vector<64x1xf32> to vector<64x32xf32>
    %285 = arith.mulf %282, %284 : vector<64x32xf32>
    %286 = vector.extract_strided_slice %191 {offsets = [0, 64], sizes = [64, 32], strides = [1, 1]} : vector<64x128xf32> to vector<64x32xf32>
    %287 = vector.extract_strided_slice %277 {offsets = [0, 2], sizes = [64, 1], strides = [1, 1]} : vector<64x4xf32> to vector<64x1xf32>
    %288 = vector.broadcast %287 : vector<64x1xf32> to vector<64x32xf32>
    %289 = arith.mulf %286, %288 : vector<64x32xf32>
    %290 = vector.extract_strided_slice %191 {offsets = [0, 96], sizes = [64, 32], strides = [1, 1]} : vector<64x128xf32> to vector<64x32xf32>
    %291 = vector.extract_strided_slice %277 {offsets = [0, 3], sizes = [64, 1], strides = [1, 1]} : vector<64x4xf32> to vector<64x1xf32>
    %292 = vector.broadcast %291 : vector<64x1xf32> to vector<64x32xf32>
    %293 = arith.mulf %290, %292 : vector<64x32xf32>
    %294 = tpu.concatenate %281, %285, %289, %293 in 1 : vector<64x32xf32>, vector<64x32xf32>, vector<64x32xf32>, vector<64x32xf32> -> vector<64x128xf32>
    %295 = arith.addf %294, %94 : vector<64x128xf32>
    %cst_221 = arith.constant 5.000000e-01 : f32
    %296 = vector.broadcast %cst_221 : f32 to vector<64x128xf32>
    %297 = arith.mulf %296, %295 : vector<64x128xf32>
    %cst_222 = arith.constant 0.707106769 : f32
    %298 = vector.broadcast %cst_222 : f32 to vector<64x128xf32>
    %299 = arith.mulf %295, %298 : vector<64x128xf32>
    %300 = math.erf %299 : vector<64x128xf32>
    %cst_223 = arith.constant 1.000000e+00 : f32
    %301 = vector.broadcast %cst_223 : f32 to vector<64x128xf32>
    %302 = arith.addf %301, %300 : vector<64x128xf32>
    %303 = arith.mulf %297, %302 : vector<64x128xf32>
    %304 = vector.shape_cast %303 : vector<64x128xf32> to vector<8x8x128xf32>
    %c0_224 = arith.constant 0 : index
    %c0_225 = arith.constant 0 : index
    %c0_226 = arith.constant 0 : index
    %c0_227 = arith.constant 0 : index
    %305 = vector.load %arg13[%c0_224, %c0_225, %c0_226, %c0_227] : memref<1x8x8x128xf32, #tpu.memory_space<vmem>>, vector<1x8x8x128xf32>
    %306 = vector.shape_cast %305 : vector<1x8x8x128xf32> to vector<8x8x128xf32>
    %307 = vector.shape_cast %304 : vector<8x8x128xf32> to vector<1x8x8x128xf32>
    tpu.vector_store %arg13[%c0_224, %c0_225, %c0_226, %c0_227], %307 {strides = array<i32>} : memref<1x8x8x128xf32, #tpu.memory_space<vmem>>, vector<1x8x8x128xf32>,
    return
  }
  func.func @transform_0(%arg0: i32) -> (i32, i32, i32, i32) {
    %c0_i32 = arith.constant 0 : i32
    %c0_i32_0 = arith.constant 0 : i32
    %c0_i32_1 = arith.constant 0 : i32
    %c0_i32_2 = arith.constant 0 : i32
    return %arg0, %c0_i32, %c0_i32_0, %c0_i32_1 : i32, i32, i32, i32
  }
  func.func @transform_1(%arg0: i32) -> (i32, i32) {
    %c0_i32 = arith.constant 0 : i32
    %c0_i32_0 = arith.constant 0 : i32
    %c0_i32_1 = arith.constant 0 : i32
    return %c0_i32, %c0_i32_0 : i32, i32
  }
  func.func @transform_2(%arg0: i32) -> (i32, i32) {
    %c0_i32 = arith.constant 0 : i32
    %c0_i32_0 = arith.constant 0 : i32
    %c0_i32_1 = arith.constant 0 : i32
    return %c0_i32, %c0_i32_0 : i32, i32
  }
  func.func @transform_3(%arg0: i32) -> (i32, i32) {
    %c0_i32 = arith.constant 0 : i32
    %c0_i32_0 = arith.constant 0 : i32
    %c0_i32_1 = arith.constant 0 : i32
    return %c0_i32, %c0_i32_0 : i32, i32
  }
  func.func @transform_4(%arg0: i32) -> (i32, i32) {
    %c0_i32 = arith.constant 0 : i32
    %c0_i32_0 = arith.constant 0 : i32
    %c0_i32_1 = arith.constant 0 : i32
    return %c0_i32, %c0_i32_0 : i32, i32
  }
  func.func @transform_5(%arg0: i32) -> (i32, i32) {
    %c0_i32 = arith.constant 0 : i32
    %c0_i32_0 = arith.constant 0 : i32
    %c0_i32_1 = arith.constant 0 : i32
    return %c0_i32, %c0_i32_0 : i32, i32
  }
  func.func @transform_6(%arg0: i32) -> (i32, i32) {
    %c0_i32 = arith.constant 0 : i32
    %c0_i32_0 = arith.constant 0 : i32
    %c0_i32_1 = arith.constant 0 : i32
    return %c0_i32, %c0_i32_0 : i32, i32
  }
  func.func @transform_7(%arg0: i32) -> (i32, i32) {
    %c0_i32 = arith.constant 0 : i32
    %c0_i32_0 = arith.constant 0 : i32
    %c0_i32_1 = arith.constant 0 : i32
    return %c0_i32, %c0_i32_0 : i32, i32
  }
  func.func @transform_8(%arg0: i32) -> (i32, i32) {
    %c0_i32 = arith.constant 0 : i32
    %c0_i32_0 = arith.constant 0 : i32
    %c0_i32_1 = arith.constant 0 : i32
    return %c0_i32, %c0_i32_0 : i32, i32
  }
  func.func @transform_9(%arg0: i32) -> (i32, i32) {
    %c0_i32 = arith.constant 0 : i32
    %c0_i32_0 = arith.constant 0 : i32
    %c0_i32_1 = arith.constant 0 : i32
    return %c0_i32, %c0_i32_0 : i32, i32
  }
  func.func @transform_10(%arg0: i32) -> (i32, i32) {
    %c0_i32 = arith.constant 0 : i32
    %c0_i32_0 = arith.constant 0 : i32
    %c0_i32_1 = arith.constant 0 : i32
    return %c0_i32, %c0_i32_0 : i32, i32
  }
  func.func @transform_11(%arg0: i32) -> (i32, i32) {
    %c0_i32 = arith.constant 0 : i32
    %c0_i32_0 = arith.constant 0 : i32
    %c0_i32_1 = arith.constant 0 : i32
    return %c0_i32, %c0_i32_0 : i32, i32
  }
  func.func @transform_12(%arg0: i32) -> (i32, i32, i32, i32) {
    %c0_i32 = arith.constant 0 : i32
    %c0_i32_0 = arith.constant 0 : i32
    %c0_i32_1 = arith.constant 0 : i32
    %c0_i32_2 = arith.constant 0 : i32
    return %arg0, %c0_i32, %c0_i32_0, %c0_i32_1 : i32, i32, i32, i32
  }
}

</mosaic_0001>

<llo_original>
// kernel: mul.0
$region0: #{mul.0}
  #allocation0 [shape = 's32[1]{0}', space=sflag, size = 0x4, scoped, tag = 'scoped memory for mul.0']
  %s0 = inlined_call_operand.vmem [shape: f32[800], index: 0, kind: input, shape index: {}]
  %s1 = inlined_call_operand.vmem [shape: f32[800], index: 1, kind: input, shape index: {}]
  %s2 = inlined_call_operand.vmem [shape: f32[800], index: 2, kind: output, shape index: {}]
  %v3 = vld [vmem:[%s0] sm:$0x7f]
  %v4 = vld [vmem:[%s1] sm:$0x7f]
  %5 = xla_tuple %v3, %v4
  %6 = xla_tuple %5
  %v7 = vmul.f32 %v3, %v4
  %8 = xla_tuple %v7
  %9 = vst [vmem:[%s2] sm:$0xff] %v7

// kernel: tile.33
$region0: #{tile.33}
  #allocation0 [shape = 's32[1]{0}', space=sflag, size = 0x4, scoped, tag = 'scoped memory for tile.33']
  %s0 = inlined_call_operand.vmem [shape: f32[32], index: 0, kind: input, shape index: {}]
  %s1 = inlined_call_operand.vmem [shape: f32[4,32], index: 1, kind: output, shape index: {}]
  // Predicated region
  $region2: #{tile.33} parent=0 // pred_check
    _
  $region3: #{tile.33} parent=0 // pred_check_branch
    %3 = sbr.rel (0) target = $region5
  $region4: #{tile.33} parent=0 // pred_region
    _
  $region5: #{tile.33} parent=0 // pred_fallthru
    _
  %v4 = vld [vmem:[%s0] ss:$0 sm:$0xff]
  %5 = vst [vmem:[%s1] sm:$0xf] %v4

// kernel: tile.54
$region0: #{tile.54}
  %s0 = inlined_call_operand.vmem [shape: f32[4,32], index: 0, kind: input, shape index: {}]
  %s1 = inlined_call_operand.vmem [shape: f32[1,128], index: 1, kind: output, shape index: {}]
  $region1: #{tile.54} parent=0
    #allocation0 [shape = 'u8[4096]{0}', space=vmem, size = 0x1000, scoped, tag = 'scoped mem for output reshape']
    #allocation1 [shape = 'u8[4096]{0}', space=vmem, size = 0x1000, scoped, tag = 'scoped mem for input reshape']
    %s3 = sshllo.u32 0, 4
    %v4 = vld [vmem:[%s0] sm:%s3]
    %5 = vst [vmem:[#allocation1] sm:%s3] %v4
    %v6 = vld [vmem:[#allocation1] sm:$0x1]
    %vm7 = vcmask 261120
    %8 = vst.msk [vmem:[#allocation0] sm:$0x1] %vm7, %v6
    %s9 = scalar_lea.vmem [#allocation1], 3
    %v10 = vld [vmem:[%s9] sm:$0x1]
    %11 = vrot.lane.b32.xlu0 %v10, 96
    %v12 = vpop.permute.xlu0 %11
    %vm13 = vcmask 1048320
    %14 = vst.msk [vmem:[#allocation0] sm:$0x1] %vm13, %v12
    %s15 = scalar_lea.vmem [#allocation1], 2
    %v16 = vld [vmem:[%s15] sm:$0x1]
    %17 = vrot.lane.b32.xlu0 %v16, 64
    %v18 = vpop.permute.xlu0 %17
    %vm19 = vcmask 785920
    %20 = vst.msk [vmem:[#allocation0] sm:$0x1] %vm19, %v18
    %s21 = scalar_lea.vmem [#allocation1], 1
    %v22 = vld [vmem:[%s21] sm:$0x1]
    %23 = vrot.lane.b32.xlu0 %v22, 32
    %v24 = vpop.permute.xlu0 %23
    %vm25 = vcmask 523520
    %26 = vst.msk [vmem:[#allocation0] sm:$0x1] %vm25, %v24
    %s28 = sshllo.u32 0, 1
    %v30 = vld [vmem:[#allocation0] sm:%s28]
    %s31 = sshllo.u32 0, 1
    %32 = vst [vmem:[%s1] sm:%s31] %v30

// kernel: enhanced_conv_transpose2d_block.1
$region0: #{enhanced_conv_transpose2d_block.1}
  #allocation0 [shape = 'u32[]', space=smem, size = 0x4, offset = 0x4, fixed_abs, tag = 'smem constant byte address 0x4 - core index']
  #allocation1 [shape = 'u32[144,128]{1,0:T(1,128)}', space=vmem, size = 0x12000, scoped, tag = 'internal scratch']
  #allocation2 [shape = 'f32[10,10,128]{2,1,0:T(8,128)}', space=vmem, size = 0x14000, scoped, tag = 'scratch operand']
  #allocation3 [shape = 'f32[12,12,8]{2,1,0:T(8,128)}', space=vmem, size = 0x18000, scoped, tag = 'scratch operand']
  %s0 = inlined_call_operand.vmem [shape: f32[2,9,9,16], index: 0, kind: input, shape index: {}]
  %s1 = inlined_call_operand.vmem [shape: f32[64,128], index: 1, kind: input, shape index: {}]
  %s2 = inlined_call_operand.vmem [shape: f32[128,128], index: 2, kind: input, shape index: {}]
  %s3 = inlined_call_operand.vmem [shape: f32[6,128], index: 3, kind: input, shape index: {}]
  %s4 = inlined_call_operand.vmem [shape: f32[16,32], index: 4, kind: input, shape index: {}]
  %s5 = inlined_call_operand.vmem [shape: f32[32,32], index: 5, kind: input, shape index: {}]
  %s6 = inlined_call_operand.vmem [shape: f32[4,32], index: 6, kind: input, shape index: {}]
  %s7 = inlined_call_operand.vmem [shape: f32[1152,128], index: 7, kind: input, shape index: {}]
  %s8 = inlined_call_operand.vmem [shape: f32[32,4], index: 8, kind: input, shape index: {}]
  %s9 = inlined_call_operand.vmem [shape: f32[1,4], index: 9, kind: input, shape index: {}]
  %s10 = inlined_call_operand.vmem [shape: f32[4,32], index: 10, kind: input, shape index: {}]
  %s11 = inlined_call_operand.vmem [shape: f32[201,4], index: 11, kind: input, shape index: {}]
  %s12 = inlined_call_operand.vmem [shape: f32[2,8,8,128], index: 12, kind: output, shape index: {}]
  %s13 = sld [smem:[#allocation0]]
  $region81: #{enhanced_conv_transpose2d_block.1} parent=0
    _
  %s15 = ssub.s32 1, %s13
  %s16 = scalar_select 0, %s15, %s13
  loop: start=0, step=1, limit=4
  $region2: #{enhanced_conv_transpose2d_block.1} parent=0 // loop_pre_header
    _
  $region3: #{enhanced_conv_transpose2d_block.1} parent=0 // loop_header
    %s18 = sphi 0, %s22
    %p19 = scmp.ge.s32.totalorder %s18, 4
    %s28 = sphi 0, %s30
    %s31 = sphi 0, %s28
    %s32 = sphi 0, %s31
    %s48 = sphi 0, %s32
    %s52 = sphi 0, %s52
    %s54 = sphi 0, %s52
    %s55 = sphi 0, %s54
    %s69 = sphi 0, %s55
    %s73 = sphi 0, %s73
    %s75 = sphi 0, %s73
    %s76 = sphi 0, %s75
    %s90 = sphi 0, %s76
    %s94 = sphi 0, %s94
    %s96 = sphi 0, %s94
    %s97 = sphi 0, %s96
    %s111 = sphi 0, %s97
    %s115 = sphi 0, %s115
    %s117 = sphi 0, %s115
    %s118 = sphi 0, %s117
    %s132 = sphi 0, %s118
    %s136 = sphi 0, %s136
    %s138 = sphi 0, %s136
    %s139 = sphi 0, %s138
    %s153 = sphi 0, %s139
    %s157 = sphi 0, %s157
    %s159 = sphi 0, %s157
    %s160 = sphi 0, %s159
    %s174 = sphi 0, %s160
    %s178 = sphi 0, %s178
    %s180 = sphi 0, %s178
    %s181 = sphi 0, %s180
    %s195 = sphi 0, %s181
    %s199 = sphi 0, %s199
    %s201 = sphi 0, %s199
    %s202 = sphi 0, %s201
    %s216 = sphi 0, %s202
    %s220 = sphi 0, %s220
    %s222 = sphi 0, %s220
    %s223 = sphi 0, %s222
    %s237 = sphi 0, %s223
    %s241 = sphi 0, %s241
    %s243 = sphi 0, %s241
    %s244 = sphi 0, %s243
    %s258 = sphi 0, %s244
    %s262 = sphi 0, %s262
    %s264 = sphi 0, %s262
    %s265 = sphi 0, %s264
    %s279 = sphi 0, %s265
    %s285 = sphi 0, %s287
    %s288 = sphi 0, %s285
    %s289 = sphi 0, %s288
    %s305 = sphi 0, %s289
  $region4: #{enhanced_conv_transpose2d_block.1} parent=0 // loop_header_branch
    %21 = sbr.rel (%p19) target = $region8
  $region5: #{enhanced_conv_transpose2d_block.1} parent=0 // loop_body
    %s23 = ssub.s32 %s18, 1
    %s24 = ssub.s32 %s18, 2
    %s25 = sadd.s32 %s18, 1
    %s26 = ssub.s32 %s18, %s25
    %p27 = scmp.eq.s32.totalorder %s26, 0
    %s29 = sadd.s32 %s28, 1
    %s30 = scalar_select %p27, %s28, %s29
    %p33 = pneg %p27
    %p34 = scmp.eq.s32.totalorder %s18, 1
    %p35 = por %p33, %p34
    %p36 = scmp.ne.s32.totalorder %s28, %s31
    %p37 = scmp.eq.s32.totalorder %s18, 0
    %p38 = por %p36, %p37
    %p39 = scmp.ne.s32.totalorder %s28, %s31
    %p40 = scmp.eq.s32.totalorder %s23, 1
    %p41 = por %p39, %p40
    %p42 = scmp.ne.s32.totalorder %s31, %s32
    %p43 = scmp.eq.s32.totalorder %s23, 0
    %p44 = por %p42, %p43
    %p45 = scmp.ne.s32.totalorder %s31, %s32
    %p46 = scmp.eq.s32.totalorder %s24, 1
    %p47 = por %p45, %p46
    %p49 = scmp.ne.s32.totalorder %s32, %s48
    %p50 = scmp.eq.s32.totalorder %s24, 0
    %p51 = por %p49, %p50
    %s53 = sadd.s32 %s52, 1
    %p56 = scmp.eq.s32.totalorder %s18, 1
    %p57 = scmp.ne.s32.totalorder %s52, %s54
    %p58 = scmp.eq.s32.totalorder %s18, 0
    %p59 = por %p57, %p58
    %p60 = scmp.ne.s32.totalorder %s52, %s54
    %p61 = scmp.eq.s32.totalorder %s23, 1
    %p62 = por %p60, %p61
    %p63 = scmp.ne.s32.totalorder %s54, %s55
    %p64 = scmp.eq.s32.totalorder %s23, 0
    %p65 = por %p63, %p64
    %p66 = scmp.ne.s32.totalorder %s54, %s55
    %p67 = scmp.eq.s32.totalorder %s24, 1
    %p68 = por %p66, %p67
    %p70 = scmp.ne.s32.totalorder %s55, %s69
    %p71 = scmp.eq.s32.totalorder %s24, 0
    %p72 = por %p70, %p71
    %s74 = sadd.s32 %s73, 1
    %p77 = scmp.eq.s32.totalorder %s18, 1
    %p78 = scmp.ne.s32.totalorder %s73, %s75
    %p79 = scmp.eq.s32.totalorder %s18, 0
    %p80 = por %p78, %p79
    %p81 = scmp.ne.s32.totalorder %s73, %s75
    %p82 = scmp.eq.s32.totalorder %s23, 1
    %p83 = por %p81, %p82
    %p84 = scmp.ne.s32.totalorder %s75, %s76
    %p85 = scmp.eq.s32.totalorder %s23, 0
    %p86 = por %p84, %p85
    %p87 = scmp.ne.s32.totalorder %s75, %s76
    %p88 = scmp.eq.s32.totalorder %s24, 1
    %p89 = por %p87, %p88
    %p91 = scmp.ne.s32.totalorder %s76, %s90
    %p92 = scmp.eq.s32.totalorder %s24, 0
    %p93 = por %p91, %p92
    %s95 = sadd.s32 %s94, 1
    %p98 = scmp.eq.s32.totalorder %s18, 1
    %p99 = scmp.ne.s32.totalorder %s94, %s96
    %p100 = scmp.eq.s32.totalorder %s18, 0
    %p101 = por %p99, %p100
    %p102 = scmp.ne.s32.totalorder %s94, %s96
    %p103 = scmp.eq.s32.totalorder %s23, 1
    %p104 = por %p102, %p103
    %p105 = scmp.ne.s32.totalorder %s96, %s97
    %p106 = scmp.eq.s32.totalorder %s23, 0
    %p107 = por %p105, %p106
    %p108 = scmp.ne.s32.totalorder %s96, %s97
    %p109 = scmp.eq.s32.totalorder %s24, 1
    %p110 = por %p108, %p109
    %p112 = scmp.ne.s32.totalorder %s97, %s111
    %p113 = scmp.eq.s32.totalorder %s24, 0
    %p114 = por %p112, %p113
    %s116 = sadd.s32 %s115, 1
    %p119 = scmp.eq.s32.totalorder %s18, 1
    %p120 = scmp.ne.s32.totalorder %s115, %s117
    %p121 = scmp.eq.s32.totalorder %s18, 0
    %p122 = por %p120, %p121
    %p123 = scmp.ne.s32.totalorder %s115, %s117
    %p124 = scmp.eq.s32.totalorder %s23, 1
    %p125 = por %p123, %p124
    %p126 = scmp.ne.s32.totalorder %s117, %s118
    %p127 = scmp.eq.s32.totalorder %s23, 0
    %p128 = por %p126, %p127
    %p129 = scmp.ne.s32.totalorder %s117, %s118
    %p130 = scmp.eq.s32.totalorder %s24, 1
    %p131 = por %p129, %p130
    %p133 = scmp.ne.s32.totalorder %s118, %s132
    %p134 = scmp.eq.s32.totalorder %s24, 0
    %p135 = por %p133, %p134
    %s137 = sadd.s32 %s136, 1
    %p140 = scmp.eq.s32.totalorder %s18, 1
    %p141 = scmp.ne.s32.totalorder %s136, %s138
    %p142 = scmp.eq.s32.totalorder %s18, 0
    %p143 = por %p141, %p142
    %p144 = scmp.ne.s32.totalorder %s136, %s138
    %p145 = scmp.eq.s32.totalorder %s23, 1
    %p146 = por %p144, %p145
    %p147 = scmp.ne.s32.totalorder %s138, %s139
    %p148 = scmp.eq.s32.totalorder %s23, 0
    %p149 = por %p147, %p148
    %p150 = scmp.ne.s32.totalorder %s138, %s139
    %p151 = scmp.eq.s32.totalorder %s24, 1
    %p152 = por %p150, %p151
    %p154 = scmp.ne.s32.totalorder %s139, %s153
    %p155 = scmp.eq.s32.totalorder %s24, 0
    %p156 = por %p154, %p155
    %s158 = sadd.s32 %s157, 1
    %p161 = scmp.eq.s32.totalorder %s18, 1
    %p162 = scmp.ne.s32.totalorder %s157, %s159
    %p163 = scmp.eq.s32.totalorder %s18, 0
    %p164 = por %p162, %p163
    %p165 = scmp.ne.s32.totalorder %s157, %s159
    %p166 = scmp.eq.s32.totalorder %s23, 1
    %p167 = por %p165, %p166
    %p168 = scmp.ne.s32.totalorder %s159, %s160
    %p169 = scmp.eq.s32.totalorder %s23, 0
    %p170 = por %p168, %p169
    %p171 = scmp.ne.s32.totalorder %s159, %s160
    %p172 = scmp.eq.s32.totalorder %s24, 1
    %p173 = por %p171, %p172
    %p175 = scmp.ne.s32.totalorder %s160, %s174
    %p176 = scmp.eq.s32.totalorder %s24, 0
    %p177 = por %p175, %p176
    %s179 = sadd.s32 %s178, 1
    %p182 = scmp.eq.s32.totalorder %s18, 1
    %p183 = scmp.ne.s32.totalorder %s178, %s180
    %p184 = scmp.eq.s32.totalorder %s18, 0
    %p185 = por %p183, %p184
    %p186 = scmp.ne.s32.totalorder %s178, %s180
    %p187 = scmp.eq.s32.totalorder %s23, 1
    %p188 = por %p186, %p187
    %p189 = scmp.ne.s32.totalorder %s180, %s181
    %p190 = scmp.eq.s32.totalorder %s23, 0
    %p191 = por %p189, %p190
    %p192 = scmp.ne.s32.totalorder %s180, %s181
    %p193 = scmp.eq.s32.totalorder %s24, 1
    %p194 = por %p192, %p193
    %p196 = scmp.ne.s32.totalorder %s181, %s195
    %p197 = scmp.eq.s32.totalorder %s24, 0
    %p198 = por %p196, %p197
    %s200 = sadd.s32 %s199, 1
    %p203 = scmp.eq.s32.totalorder %s18, 1
    %p204 = scmp.ne.s32.totalorder %s199, %s201
    %p205 = scmp.eq.s32.totalorder %s18, 0
    %p206 = por %p204, %p205
    %p207 = scmp.ne.s32.totalorder %s199, %s201
    %p208 = scmp.eq.s32.totalorder %s23, 1
    %p209 = por %p207, %p208
    %p210 = scmp.ne.s32.totalorder %s201, %s202
    %p211 = scmp.eq.s32.totalorder %s23, 0
    %p212 = por %p210, %p211
    %p213 = scmp.ne.s32.totalorder %s201, %s202
    %p214 = scmp.eq.s32.totalorder %s24, 1
    %p215 = por %p213, %p214
    %p217 = scmp.ne.s32.totalorder %s202, %s216
    %p218 = scmp.eq.s32.totalorder %s24, 0
    %p219 = por %p217, %p218
    %s221 = sadd.s32 %s220, 1
    %p224 = scmp.eq.s32.totalorder %s18, 1
    %p225 = scmp.ne.s32.totalorder %s220, %s222
    %p226 = scmp.eq.s32.totalorder %s18, 0
    %p227 = por %p225, %p226
    %p228 = scmp.ne.s32.totalorder %s220, %s222
    %p229 = scmp.eq.s32.totalorder %s23, 1
    %p230 = por %p228, %p229
    %p231 = scmp.ne.s32.totalorder %s222, %s223
    %p232 = scmp.eq.s32.totalorder %s23, 0
    %p233 = por %p231, %p232
    %p234 = scmp.ne.s32.totalorder %s222, %s223
    %p235 = scmp.eq.s32.totalorder %s24, 1
    %p236 = por %p234, %p235
    %p238 = scmp.ne.s32.totalorder %s223, %s237
    %p239 = scmp.eq.s32.totalorder %s24, 0
    %p240 = por %p238, %p239
    %s242 = sadd.s32 %s241, 1
    %p245 = scmp.eq.s32.totalorder %s18, 1
    %p246 = scmp.ne.s32.totalorder %s241, %s243
    %p247 = scmp.eq.s32.totalorder %s18, 0
    %p248 = por %p246, %p247
    %p249 = scmp.ne.s32.totalorder %s241, %s243
    %p250 = scmp.eq.s32.totalorder %s23, 1
    %p251 = por %p249, %p250
    %p252 = scmp.ne.s32.totalorder %s243, %s244
    %p253 = scmp.eq.s32.totalorder %s23, 0
    %p254 = por %p252, %p253
    %p255 = scmp.ne.s32.totalorder %s243, %s244
    %p256 = scmp.eq.s32.totalorder %s24, 1
    %p257 = por %p255, %p256
    %p259 = scmp.ne.s32.totalorder %s244, %s258
    %p260 = scmp.eq.s32.totalorder %s24, 0
    %p261 = por %p259, %p260
    %s263 = sadd.s32 %s262, 1
    %p266 = scmp.eq.s32.totalorder %s18, 1
    %p267 = scmp.ne.s32.totalorder %s262, %s264
    %p268 = scmp.eq.s32.totalorder %s18, 0
    %p269 = por %p267, %p268
    %p270 = scmp.ne.s32.totalorder %s262, %s264
    %p271 = scmp.eq.s32.totalorder %s23, 1
    %p272 = por %p270, %p271
    %p273 = scmp.ne.s32.totalorder %s264, %s265
    %p274 = scmp.eq.s32.totalorder %s23, 0
    %p275 = por %p273, %p274
    %p276 = scmp.ne.s32.totalorder %s264, %s265
    %p277 = scmp.eq.s32.totalorder %s24, 1
    %p278 = por %p276, %p277
    %p280 = scmp.ne.s32.totalorder %s265, %s279
    %p281 = scmp.eq.s32.totalorder %s24, 0
    %p282 = por %p280, %p281
    %s283 = ssub.s32 %s18, %s25
    %p284 = scmp.eq.s32.totalorder %s283, 0
    %s286 = sadd.s32 %s285, 1
    %s287 = scalar_select %p284, %s285, %s286
    %p290 = pneg %p284
    %p291 = scmp.eq.s32.totalorder %s18, 1
    %p292 = por %p290, %p291
    %p293 = scmp.ne.s32.totalorder %s285, %s288
    %p294 = scmp.eq.s32.totalorder %s18, 0
    %p295 = por %p293, %p294
    %p296 = scmp.ne.s32.totalorder %s285, %s288
    %p297 = scmp.eq.s32.totalorder %s23, 1
    %p298 = por %p296, %p297
    %p299 = scmp.ne.s32.totalorder %s288, %s289
    %p300 = scmp.eq.s32.totalorder %s23, 0
    %p301 = por %p299, %p300
    %p302 = scmp.ne.s32.totalorder %s288, %s289
    %p303 = scmp.eq.s32.totalorder %s24, 1
    %p304 = por %p302, %p303
    %p306 = scmp.ne.s32.totalorder %s289, %s305
    %p307 = scmp.eq.s32.totalorder %s24, 0
    %p308 = por %p306, %p307
    %p309 = scmp.le.s32.totalorder 1, %s18
    %p310 = scmp.lt.s32.totalorder %s18, 3
    %p311 = pnand %p309, %p310
    %p312 = pneg %p311
    // Predicated region
    $region9: #{enhanced_conv_transpose2d_block.1} parent=5 // pred_check
      _
    $region10: #{enhanced_conv_transpose2d_block.1} parent=5 // pred_check_branch
      %314 = sbr.rel (%p311) target = $region12
    $region11: #{enhanced_conv_transpose2d_block.1} parent=5 // pred_region
      %s315 = ssub.s32 %s18, 1
      // Predicated region
      $region13: #{enhanced_conv_transpose2d_block.1} parent=11 // pred_check
        %p316 = pneg %p65
      $region14: #{enhanced_conv_transpose2d_block.1} parent=11 // pred_check_branch
        %318 = sbr.rel (%p316) target = $region16
      $region15: #{enhanced_conv_transpose2d_block.1} parent=11 // pred_region
        _
      $region16: #{enhanced_conv_transpose2d_block.1} parent=11 // pred_fallthru
        _
      // Predicated region
      $region17: #{enhanced_conv_transpose2d_block.1} parent=11 // pred_check
        %p319 = pneg %p86
      $region18: #{enhanced_conv_transpose2d_block.1} parent=11 // pred_check_branch
        %321 = sbr.rel (%p319) target = $region20
      $region19: #{enhanced_conv_transpose2d_block.1} parent=11 // pred_region
        _
      $region20: #{enhanced_conv_transpose2d_block.1} parent=11 // pred_fallthru
        _
      // Predicated region
      $region21: #{enhanced_conv_transpose2d_block.1} parent=11 // pred_check
        %p322 = pneg %p107
      $region22: #{enhanced_conv_transpose2d_block.1} parent=11 // pred_check_branch
        %324 = sbr.rel (%p322) target = $region24
      $region23: #{enhanced_conv_transpose2d_block.1} parent=11 // pred_region
        _
      $region24: #{enhanced_conv_transpose2d_block.1} parent=11 // pred_fallthru
        _
      // Predicated region
      $region25: #{enhanced_conv_transpose2d_block.1} parent=11 // pred_check
        %p325 = pneg %p128
      $region26: #{enhanced_conv_transpose2d_block.1} parent=11 // pred_check_branch
        %327 = sbr.rel (%p325) target = $region28
      $region27: #{enhanced_conv_transpose2d_block.1} parent=11 // pred_region
        _
      $region28: #{enhanced_conv_transpose2d_block.1} parent=11 // pred_fallthru
        _
      // Predicated region
      $region29: #{enhanced_conv_transpose2d_block.1} parent=11 // pred_check
        %p328 = pneg %p149
      $region30: #{enhanced_conv_transpose2d_block.1} parent=11 // pred_check_branch
        %330 = sbr.rel (%p328) target = $region32
      $region31: #{enhanced_conv_transpose2d_block.1} parent=11 // pred_region
        _
      $region32: #{enhanced_conv_transpose2d_block.1} parent=11 // pred_fallthru
        _
      // Predicated region
      $region33: #{enhanced_conv_transpose2d_block.1} parent=11 // pred_check
        %p331 = pneg %p170
      $region34: #{enhanced_conv_transpose2d_block.1} parent=11 // pred_check_branch
        %333 = sbr.rel (%p331) target = $region36
      $region35: #{enhanced_conv_transpose2d_block.1} parent=11 // pred_region
        _
      $region36: #{enhanced_conv_transpose2d_block.1} parent=11 // pred_fallthru
        _
      // Predicated region
      $region37: #{enhanced_conv_transpose2d_block.1} parent=11 // pred_check
        %p334 = pneg %p191
      $region38: #{enhanced_conv_transpose2d_block.1} parent=11 // pred_check_branch
        %336 = sbr.rel (%p334) target = $region40
      $region39: #{enhanced_conv_transpose2d_block.1} parent=11 // pred_region
        _
      $region40: #{enhanced_conv_transpose2d_block.1} parent=11 // pred_fallthru
        _
      // Predicated region
      $region41: #{enhanced_conv_transpose2d_block.1} parent=11 // pred_check
        %p337 = pneg %p212
      $region42: #{enhanced_conv_transpose2d_block.1} parent=11 // pred_check_branch
        %339 = sbr.rel (%p337) target = $region44
      $region43: #{enhanced_conv_transpose2d_block.1} parent=11 // pred_region
        _
      $region44: #{enhanced_conv_transpose2d_block.1} parent=11 // pred_fallthru
        _
      // Predicated region
      $region45: #{enhanced_conv_transpose2d_block.1} parent=11 // pred_check
        %p340 = pneg %p233
      $region46: #{enhanced_conv_transpose2d_block.1} parent=11 // pred_check_branch
        %342 = sbr.rel (%p340) target = $region48
      $region47: #{enhanced_conv_transpose2d_block.1} parent=11 // pred_region
        _
      $region48: #{enhanced_conv_transpose2d_block.1} parent=11 // pred_fallthru
        _
      // Predicated region
      $region49: #{enhanced_conv_transpose2d_block.1} parent=11 // pred_check
        %p343 = pneg %p254
      $region50: #{enhanced_conv_transpose2d_block.1} parent=11 // pred_check_branch
        %345 = sbr.rel (%p343) target = $region52
      $region51: #{enhanced_conv_transpose2d_block.1} parent=11 // pred_region
        _
      $region52: #{enhanced_conv_transpose2d_block.1} parent=11 // pred_fallthru
        _
      // Predicated region
      $region53: #{enhanced_conv_transpose2d_block.1} parent=11 // pred_check
        %p346 = pneg %p275
      $region54: #{enhanced_conv_transpose2d_block.1} parent=11 // pred_check_branch
        %348 = sbr.rel (%p346) target = $region56
      $region55: #{enhanced_conv_transpose2d_block.1} parent=11 // pred_region
        _
      $region56: #{enhanced_conv_transpose2d_block.1} parent=11 // pred_fallthru
        _
    $region12: #{enhanced_conv_transpose2d_block.1} parent=5 // pred_fallthru
      _
    %p349 = scmp.lt.s32.totalorder %s18, 2
    // Predicated region
    $region57: #{enhanced_conv_transpose2d_block.1} parent=5 // pred_check
      %p350 = pneg %p349
    $region58: #{enhanced_conv_transpose2d_block.1} parent=5 // pred_check_branch
      %352 = sbr.rel (%p350) target = $region60
    $region59: #{enhanced_conv_transpose2d_block.1} parent=5 // pred_region
      // Predicated region
      $region61: #{enhanced_conv_transpose2d_block.1} parent=59 // pred_check
        %p353 = pneg %p38
      $region62: #{enhanced_conv_transpose2d_block.1} parent=59 // pred_check_branch
        %355 = sbr.rel (%p353) target = $region64
      $region63: #{enhanced_conv_transpose2d_block.1} parent=59 // pred_region
        %p356 = scmp.lt.s32.totalorder %s18, 1
        %s357 = scalar_select %p356, %s18, 1
        %s358 = smul.addr %s357, 18
        %s359 = smul.addr %s358, 8
        %s360 = scalar_lea.vmem %s0, %s359
      $region64: #{enhanced_conv_transpose2d_block.1} parent=59 // pred_fallthru
        _
    $region60: #{enhanced_conv_transpose2d_block.1} parent=5 // pred_fallthru
      _
    %p361 = scmp.le.s32.totalorder 1, %s18
    %p362 = scmp.lt.s32.totalorder %s18, 3
    %p363 = pnand %p361, %p362
    %p364 = pneg %p363
    // Predicated region
    $region65: #{enhanced_conv_transpose2d_block.1} parent=5 // pred_check
      _
    $region66: #{enhanced_conv_transpose2d_block.1} parent=5 // pred_check_branch
      %366 = sbr.rel (%p363) target = $region68
    $region67: #{enhanced_conv_transpose2d_block.1} parent=5 // pred_region
      %s367 = ssub.s32 %s18, 1
      %p368 = scmp.lt.s32.totalorder %s23, 1
      %s369 = scalar_select %p368, %s23, 1
      %s370 = smul.addr %s369, 18
      %s371 = smul.addr %s370, 8
      %s372 = scalar_lea.vmem %s0, %s371
      %p373 = pneg %p44
      %p374 = pneg %p41
      %p375 = pneg %p65
      %p376 = pneg %p62
      %p377 = pneg %p86
      %p378 = pneg %p83
      %p379 = pneg %p107
      %p380 = pneg %p104
      %p381 = pneg %p128
      %p382 = pneg %p125
      %p383 = pneg %p149
      %p384 = pneg %p146
      %p385 = pneg %p170
      %p386 = pneg %p167
      %p387 = pneg %p191
      %p388 = pneg %p188
      %p389 = pneg %p212
      %p390 = pneg %p209
      %p391 = pneg %p233
      %p392 = pneg %p230
      %p393 = pneg %p254
      %p394 = pneg %p251
      %p395 = pneg %p275
      %p396 = pneg %p272
      %p397 = pneg %p301
      %p398 = pneg %p298
      %p399 = scmp.lt.s32.totalorder %s23, 1
      %s400 = scalar_select %p399, %s23, 1
      %s401 = smul.addr %s400, 8
      %s402 = smul.addr %s401, 8
      %s403 = scalar_lea.vmem %s12, %s402
      %p404 = scmp.lt.s32.totalorder %s23, 1
      %s405 = scalar_select %p404, %s23, 1
      %s406 = smul.addr %s405, 18
      %s407 = smul.addr %s406, 8
      %s408 = scalar_lea.vmem %s0, %s407
      %p409 = scmp.lt.s32.totalorder %s23, 1
      %s410 = scalar_select %p409, %s23, 1
      %s411 = smul.addr %s410, 8
      %s412 = smul.addr %s411, 8
      %s413 = scalar_lea.vmem %s12, %s412
      %v414 = vld [vmem:[%s408] sm:$0xff]
      %v415 = vld [vmem:[%s408 + $0x8] sm:$0x1]
      %v416 = vld [vmem:[%s408 + $0x10] sm:$0xff]
      %v417 = vld [vmem:[%s408 + $0x18] sm:$0x1]
      %v418 = vld [vmem:[%s408 + $0x20] sm:$0xff]
      %v419 = vld [vmem:[%s408 + $0x28] sm:$0x1]
      %v420 = vld [vmem:[%s408 + $0x30] sm:$0xff]
      %v421 = vld [vmem:[%s408 + $0x38] sm:$0x1]
      %v422 = vld [vmem:[%s408 + $0x40] sm:$0xff]
      %v423 = vld [vmem:[%s408 + $0x48] sm:$0x1]
      %v424 = vld [vmem:[%s408 + $0x50] sm:$0xff]
      %v425 = vld [vmem:[%s408 + $0x58] sm:$0x1]
      %v426 = vld [vmem:[%s408 + $0x60] sm:$0xff]
      %v427 = vld [vmem:[%s408 + $0x68] sm:$0x1]
      %v428 = vld [vmem:[%s408 + $0x70] sm:$0xff]
      %v429 = vld [vmem:[%s408 + $0x78] sm:$0x1]
      %v430 = vld [vmem:[%s408 + $0x80] sm:$0xff]
      %v431 = vld [vmem:[%s408 + $0x88] sm:$0x1]
      %vm448 = vcmask 1046528
      %v449 = vrot.slane %v414, 1
      %v450 = vrot.slane %v415, 1
      %v451 = vsel %vm448, %v449, %v450
      %v452 = vrot.slane %v416, 1
      %v453 = vrot.slane %v417, 1
      %v454 = vsel %vm448, %v452, %v453
      %v455 = vrot.slane %v418, 1
      %v456 = vrot.slane %v419, 1
      %v457 = vsel %vm448, %v455, %v456
      %v458 = vrot.slane %v420, 1
      %v459 = vrot.slane %v421, 1
      %v460 = vsel %vm448, %v458, %v459
      %v461 = vrot.slane %v422, 1
      %v462 = vrot.slane %v423, 1
      %v463 = vsel %vm448, %v461, %v462
      %v464 = vrot.slane %v424, 1
      %v465 = vrot.slane %v425, 1
      %v466 = vsel %vm448, %v464, %v465
      %v467 = vrot.slane %v426, 1
      %v468 = vrot.slane %v427, 1
      %v469 = vsel %vm448, %v467, %v468
      %v470 = vrot.slane %v428, 1
      %v471 = vrot.slane %v429, 1
      %v472 = vsel %vm448, %v470, %v471
      %473 = vrot.lane.b32.xlu0 %v451, 16
      %v474 = vpop.permute.xlu0 %473
      %475 = vrot.lane.b32.xlu0 %v454, 16
      %v476 = vpop.permute.xlu0 %475
      %477 = vrot.lane.b32.xlu0 %v457, 16
      %v478 = vpop.permute.xlu0 %477
      %479 = vrot.lane.b32.xlu0 %v460, 16
      %v480 = vpop.permute.xlu0 %479
      %481 = vrot.lane.b32.xlu0 %v463, 16
      %v482 = vpop.permute.xlu0 %481
      %483 = vrot.lane.b32.xlu0 %v466, 16
      %v484 = vpop.permute.xlu0 %483
      %485 = vrot.lane.b32.xlu0 %v469, 16
      %v486 = vpop.permute.xlu0 %485
      %487 = vrot.lane.b32.xlu0 %v472, 16
      %v488 = vpop.permute.xlu0 %487
      %498 = vrot.lane.b32.xlu0 %v416, 32
      %v499 = vpop.permute.xlu0 %498
      %500 = vrot.lane.b32.xlu0 %v418, 32
      %v501 = vpop.permute.xlu0 %500
      %502 = vrot.lane.b32.xlu0 %v420, 32
      %v503 = vpop.permute.xlu0 %502
      %504 = vrot.lane.b32.xlu0 %v422, 32
      %v505 = vpop.permute.xlu0 %504
      %506 = vrot.lane.b32.xlu0 %v424, 32
      %v507 = vpop.permute.xlu0 %506
      %508 = vrot.lane.b32.xlu0 %v426, 32
      %v509 = vpop.permute.xlu0 %508
      %510 = vrot.lane.b32.xlu0 %v428, 32
      %v511 = vpop.permute.xlu0 %510
      %512 = vrot.lane.b32.xlu0 %v430, 32
      %v513 = vpop.permute.xlu0 %512
      %v523 = vrot.slane %v430, 1
      %v524 = vrot.slane %v431, 1
      %v525 = vsel %vm448, %v523, %v524
      %526 = vrot.lane.b32.xlu0 %v454, 48
      %v527 = vpop.permute.xlu0 %526
      %528 = vrot.lane.b32.xlu0 %v457, 48
      %v529 = vpop.permute.xlu0 %528
      %530 = vrot.lane.b32.xlu0 %v460, 48
      %v531 = vpop.permute.xlu0 %530
      %532 = vrot.lane.b32.xlu0 %v463, 48
      %v533 = vpop.permute.xlu0 %532
      %534 = vrot.lane.b32.xlu0 %v466, 48
      %v535 = vpop.permute.xlu0 %534
      %536 = vrot.lane.b32.xlu0 %v469, 48
      %v537 = vpop.permute.xlu0 %536
      %538 = vrot.lane.b32.xlu0 %v472, 48
      %v539 = vpop.permute.xlu0 %538
      %540 = vrot.lane.b32.xlu0 %v525, 48
      %v541 = vpop.permute.xlu0 %540
      %vm550 = vcmask 130048
      %v551 = vsel %vm550, %v414, %v474
      %v552 = vsel %vm550, %v416, %v476
      %v553 = vsel %vm550, %v418, %v478
      %v554 = vsel %vm550, %v420, %v480
      %v555 = vsel %vm550, %v422, %v482
      %v556 = vsel %vm550, %v424, %v484
      %v557 = vsel %vm550, %v426, %v486
      %v558 = vsel %vm550, %v428, %v488
      %vm559 = vcmask 261120
      %v560 = vsel %vm559, %v551, %v499
      %v561 = vsel %vm559, %v552, %v501
      %v562 = vsel %vm559, %v553, %v503
      %v563 = vsel %vm559, %v554, %v505
      %v564 = vsel %vm559, %v555, %v507
      %v565 = vsel %vm559, %v556, %v509
      %v566 = vsel %vm559, %v557, %v511
      %v567 = vsel %vm559, %v558, %v513
      %vm568 = vcmask 392192
      %v569 = vsel %vm568, %v560, %v527
      %v570 = vsel %vm568, %v561, %v529
      %v571 = vsel %vm568, %v562, %v531
      %v572 = vsel %vm568, %v563, %v533
      %v573 = vsel %vm568, %v564, %v535
      %v574 = vsel %vm568, %v565, %v537
      %v575 = vsel %vm568, %v566, %v539
      %v576 = vsel %vm568, %v567, %v541
      %v577 = vld [vmem:[%s1] sm:$0xff]
      %v578 = vld [vmem:[%s1 + $0x8] sm:$0xff]
      %v579 = vld [vmem:[%s1 + $0x10] sm:$0xff]
      %v580 = vld [vmem:[%s1 + $0x18] sm:$0xff]
      %v581 = vld [vmem:[%s1 + $0x20] sm:$0xff]
      %v582 = vld [vmem:[%s1 + $0x28] sm:$0xff]
      %v583 = vld [vmem:[%s1 + $0x30] sm:$0xff]
      %v584 = vld [vmem:[%s1 + $0x38] sm:$0xff]
      %v585 = vld [vmem:[%s3] sm:$0x1]
      %v586 = vlaneseq
      %v587 = vshrl.u32 %v586, 7
      %v588 = vsub.s32 0, %v587
      %v589 = vrot.slane %v585, %v588
      %vm590 = vcmask 523264
      %v592 = vsel %vm590, %v569, 0
      %v595 = vsel %vm590, %v570, 0
      %v598 = vsel %vm590, %v571, 0
      %v601 = vsel %vm590, %v572, 0
      %v604 = vsel %vm590, %v573, 0
      %v607 = vsel %vm590, %v574, 0
      %v610 = vsel %vm590, %v575, 0
      %v613 = vsel %vm590, %v576, 0
      %615 = vmatprep.subr.mxu0 0.0
      %616 = vmatpush1.msra.mxu0 %v577
      %617 = vmatprep.subr.mxu0 0.0
      %618 = vmatpush1.msra.mxu0 %v578
      %619 = vmatprep.subr.mxu0 0.0
      %620 = vmatpush1.msra.mxu0 %v579
      %621 = vmatprep.subr.mxu0 0.0
      %622 = vmatpush1.msra.mxu0 %v580
      %623 = vmatprep.subr.mxu0 0.0
      %624 = vmatpush1.msra.mxu0 %v581
      %625 = vmatprep.subr.mxu0 0.0
      %626 = vmatpush1.msra.mxu0 %v582
      %627 = vmatprep.subr.mxu0 0.0
      %628 = vmatpush1.msra.mxu0 %v583
      %629 = vmatprep.subr.mxu0 0.0
      %630 = vmatpush1.msra.mxu0 %v584
      %631 = vmatprep.subr.mxu0 0.0
      %632 = vmatpush1.msra.mxu0 0.0
      %633 = vmatprep.subr.mxu0 0.0
      %634 = vmatpush1.msra.mxu0 0.0
      %635 = vmatprep.subr.mxu0 0.0
      %636 = vmatpush1.msra.mxu0 0.0
      %637 = vmatprep.subr.mxu0 0.0
      %638 = vmatpush1.msra.mxu0 0.0
      %639 = vmatprep.subr.mxu0 0.0
      %640 = vmatpush1.msra.mxu0 0.0
      %641 = vmatprep.subr.mxu0 0.0
      %642 = vmatpush1.msra.mxu0 0.0
      %643 = vmatprep.subr.mxu0 0.0
      %644 = vmatpush1.msra.mxu0 0.0
      %645 = vmatprep.subr.mxu0 0.0
      %646 = vmatpush1.msra.mxu0 0.0
      %647 = vmatprep.subr.mxu0 0.0
      %648 = vmatpush1.msra.mxu0 0.0
      %649 = vmatprep.subr.mxu0 0.0
      %650 = vmatpush1.msra.mxu0 0.0
      %651 = vmatprep.subr.mxu0 0.0
      %652 = vmatpush1.msra.mxu0 0.0
      %653 = vmatprep.subr.mxu0 0.0
      %654 = vmatpush1.msra.mxu0 0.0
      %655 = vmatprep.subr.mxu0 0.0
      %656 = vmatpush1.msra.mxu0 0.0
      %657 = vmatprep.subr.mxu0 0.0
      %658 = vmatpush1.msra.mxu0 0.0
      %659 = vmatprep.subr.mxu0 0.0
      %660 = vmatpush1.msra.mxu0 0.0
      %661 = vmatprep.subr.mxu0 0.0
      %662 = vmatpush1.msra.mxu0 0.0
      %663 = vmatprep.subr.mxu0 0.0
      %664 = vmatpush1.msra.mxu0 0.0
      %665 = vmatprep.subr.mxu0 0.0
      %666 = vmatpush1.msra.mxu0 0.0
      %667 = vmatprep.subr.mxu0 0.0
      %668 = vmatpush1.msra.mxu0 0.0
      %669 = vmatprep.subr.mxu0 0.0
      %670 = vmatpush1.msra.mxu0 0.0
      %671 = vmatprep.subr.mxu0 0.0
      %672 = vmatpush1.msra.mxu0 0.0
      %673 = vmatprep.subr.mxu0 0.0
      %674 = vmatpush1.msra.mxu0 0.0
      %675 = vmatprep.subr.mxu0 0.0
      %676 = vmatpush1.msra.mxu0 0.0
      %677 = vmatprep.subr.mxu0 0.0
      %678 = vmatpush1.msra.mxu0 0.0
      %679 = vmatprep.mubr.f32.mxu0 0.0
      %680 = vmatmul.mubr.f32.gmra.mrb[0].mxu0 %v592
      %v681 = vpop.f32.mrb[0].mxu0
      %v682 = vadd.f32 %v589, %v681
      %v683 = vpop.f32.mrb[0].mxu0
      %684 = vmatprep.mubr.f32.mxu0 0.0
      %685 = vmatmul.mubr.f32.gmra.mrb[0].mxu0 %v595
      %v686 = vpop.f32.mrb[0].mxu0
      %v687 = vadd.f32 %v589, %v686
      %v688 = vpop.f32.mrb[0].mxu0
      %689 = vmatprep.mubr.f32.mxu0 0.0
      %690 = vmatmul.mubr.f32.gmra.mrb[0].mxu0 %v598
      %v691 = vpop.f32.mrb[0].mxu0
      %v692 = vadd.f32 %v589, %v691
      %v693 = vpop.f32.mrb[0].mxu0
      %694 = vmatprep.mubr.f32.mxu0 0.0
      %695 = vmatmul.mubr.f32.gmra.mrb[0].mxu0 %v601
      %v696 = vpop.f32.mrb[0].mxu0
      %v697 = vadd.f32 %v589, %v696
      %v698 = vpop.f32.mrb[0].mxu0
      %699 = vmatprep.mubr.f32.mxu0 0.0
      %700 = vmatmul.mubr.f32.gmra.mrb[0].mxu0 %v604
      %v701 = vpop.f32.mrb[0].mxu0
      %v702 = vadd.f32 %v589, %v701
      %v703 = vpop.f32.mrb[0].mxu0
      %704 = vmatprep.mubr.f32.mxu0 0.0
      %705 = vmatmul.mubr.f32.gmra.mrb[0].mxu0 %v607
      %v706 = vpop.f32.mrb[0].mxu0
      %v707 = vadd.f32 %v589, %v706
      %v708 = vpop.f32.mrb[0].mxu0
      %709 = vmatprep.mubr.f32.mxu0 0.0
      %710 = vmatmul.mubr.f32.gmra.mrb[0].mxu0 %v610
      %v711 = vpop.f32.mrb[0].mxu0
      %v712 = vadd.f32 %v589, %v711
      %v713 = vpop.f32.mrb[0].mxu0
      %714 = vmatprep.mubr.f32.mxu0 0.0
      %715 = vmatmul.mubr.f32.gmra.mrb[0].mxu0 %v613
      %v716 = vpop.f32.mrb[0].mxu0
      %v717 = vadd.f32 %v589, %v716
      %v718 = vpop.f32.mrb[0].mxu0
      %719 = vdwg.mxu0
      %v720 = vadd.f32 %v682, %v687
      %v721 = vadd.f32 %v720, %v692
      %v722 = vadd.f32 %v721, %v697
      %v723 = vadd.f32 %v722, %v702
      %v724 = vadd.f32 %v723, %v707
      %v725 = vadd.f32 %v724, %v712
      %v726 = vadd.f32 %v725, %v717
      %v727 = vrot.slane %v726, 4
      %v728 = vadd.f32 %v726, %v727
      %v729 = vrot.slane %v728, 2
      %v730 = vadd.f32 %v728, %v729
      %v731 = vrot.slane %v730, 1
      %v732 = vadd.f32 %v730, %v731
      %v733 = vmul.f32 %v682, %v682
      %v734 = vmul.f32 %v687, %v687
      %v735 = vmul.f32 %v692, %v692
      %v736 = vmul.f32 %v697, %v697
      %v737 = vmul.f32 %v702, %v702
      %v738 = vmul.f32 %v707, %v707
      %v739 = vmul.f32 %v712, %v712
      %v740 = vmul.f32 %v717, %v717
      %v741 = vadd.f32 %v733, %v734
      %v742 = vadd.f32 %v741, %v735
      %v743 = vadd.f32 %v742, %v736
      %v744 = vadd.f32 %v743, %v737
      %v745 = vadd.f32 %v744, %v738
      %v746 = vadd.f32 %v745, %v739
      %v747 = vadd.f32 %v746, %v740
      %v748 = vrot.slane %v747, 4
      %v749 = vadd.f32 %v747, %v748
      %v750 = vrot.slane %v749, 2
      %v751 = vadd.f32 %v749, %v750
      %v752 = vrot.slane %v751, 1
      %v753 = vadd.f32 %v751, %v752
      %vm754 = vcmask 1040384
      %v755 = vsel %vm754, %v732, %v753
      %v756 = vld [vmem:[%s2] sm:$0xff]
      %v757 = vld [vmem:[%s2 + $0x8] sm:$0xff]
      %v758 = vld [vmem:[%s2 + $0x10] sm:$0xff]
      %v759 = vld [vmem:[%s2 + $0x18] sm:$0xff]
      %v760 = vld [vmem:[%s2 + $0x20] sm:$0xff]
      %v761 = vld [vmem:[%s2 + $0x28] sm:$0xff]
      %v762 = vld [vmem:[%s2 + $0x30] sm:$0xff]
      %v763 = vld [vmem:[%s2 + $0x38] sm:$0xff]
      %v764 = vld [vmem:[%s2 + $0x40] sm:$0xff]
      %v765 = vld [vmem:[%s2 + $0x48] sm:$0xff]
      %v766 = vld [vmem:[%s2 + $0x50] sm:$0xff]
      %v767 = vld [vmem:[%s2 + $0x58] sm:$0xff]
      %v768 = vld [vmem:[%s2 + $0x60] sm:$0xff]
      %v769 = vld [vmem:[%s2 + $0x68] sm:$0xff]
      %v770 = vld [vmem:[%s2 + $0x70] sm:$0xff]
      %v771 = vld [vmem:[%s2 + $0x78] sm:$0xff]
      %772 = vmatprep.subr.mxu0 0.0
      %773 = vmatpush1.msra.mxu0 %v756
      %774 = vmatprep.subr.mxu0 0.0
      %775 = vmatpush1.msra.mxu0 %v757
      %776 = vmatprep.subr.mxu0 0.0
      %777 = vmatpush1.msra.mxu0 %v758
      %778 = vmatprep.subr.mxu0 0.0
      %779 = vmatpush1.msra.mxu0 %v759
      %780 = vmatprep.subr.mxu0 0.0
      %781 = vmatpush1.msra.mxu0 %v760
      %782 = vmatprep.subr.mxu0 0.0
      %783 = vmatpush1.msra.mxu0 %v761
      %784 = vmatprep.subr.mxu0 0.0
      %785 = vmatpush1.msra.mxu0 %v762
      %786 = vmatprep.subr.mxu0 0.0
      %787 = vmatpush1.msra.mxu0 %v763
      %788 = vmatprep.subr.mxu0 0.0
      %789 = vmatpush1.msra.mxu0 %v764
      %790 = vmatprep.subr.mxu0 0.0
      %791 = vmatpush1.msra.mxu0 %v765
      %792 = vmatprep.subr.mxu0 0.0
      %793 = vmatpush1.msra.mxu0 %v766
      %794 = vmatprep.subr.mxu0 0.0
      %795 = vmatpush1.msra.mxu0 %v767
      %796 = vmatprep.subr.mxu0 0.0
      %797 = vmatpush1.msra.mxu0 %v768
      %798 = vmatprep.subr.mxu0 0.0
      %799 = vmatpush1.msra.mxu0 %v769
      %800 = vmatprep.subr.mxu0 0.0
      %801 = vmatpush1.msra.mxu0 %v770
      %802 = vmatprep.subr.mxu0 0.0
      %803 = vmatpush1.msra.mxu0 %v771
      %804 = vmatprep.subr.mxu0 0.0
      %805 = vmatpush1.msra.mxu0 0.0
      %806 = vmatprep.subr.mxu0 0.0
      %807 = vmatpush1.msra.mxu0 0.0
      %808 = vmatprep.subr.mxu0 0.0
      %809 = vmatpush1.msra.mxu0 0.0
      %810 = vmatprep.subr.mxu0 0.0
      %811 = vmatpush1.msra.mxu0 0.0
      %812 = vmatprep.subr.mxu0 0.0
      %813 = vmatpush1.msra.mxu0 0.0
      %814 = vmatprep.subr.mxu0 0.0
      %815 = vmatpush1.msra.mxu0 0.0
      %816 = vmatprep.subr.mxu0 0.0
      %817 = vmatpush1.msra.mxu0 0.0
      %818 = vmatprep.subr.mxu0 0.0
      %819 = vmatpush1.msra.mxu0 0.0
      %820 = vmatprep.subr.mxu0 0.0
      %821 = vmatpush1.msra.mxu0 0.0
      %822 = vmatprep.subr.mxu0 0.0
      %823 = vmatpush1.msra.mxu0 0.0
      %824 = vmatprep.subr.mxu0 0.0
      %825 = vmatpush1.msra.mxu0 0.0
      %826 = vmatprep.subr.mxu0 0.0
      %827 = vmatpush1.msra.mxu0 0.0
      %828 = vmatprep.subr.mxu0 0.0
      %829 = vmatpush1.msra.mxu0 0.0
      %830 = vmatprep.subr.mxu0 0.0
      %831 = vmatpush1.msra.mxu0 0.0
      %832 = vmatprep.subr.mxu0 0.0
      %833 = vmatpush1.msra.mxu0 0.0
      %834 = vmatprep.subr.mxu0 0.0
      %835 = vmatpush1.msra.mxu0 0.0
      %836 = vmatprep.mubr.f32.mxu0 0.0
      %837 = vmatmul.mubr.f32.gmra.mrb[0].mxu0 %v755
      %v838 = vpop.f32.mrb[0].mxu0
      %v839 = vadd.f32 0.0, %v838
      %v840 = vpop.f32.mrb[0].mxu0
      %841 = vdwg.mxu0
      %v842 = vrcp.pop 1024.0
      %v843 = vmul.f32 %v839, %v842
      %v844 = vmul.f32 %v843, %v843
      %v846 = vrot.slane %v844, 7
      %v848 = vsub.f32 %v843, %v846
      %v849 = vlaneseq
      %v850 = vshrl.u32 %v849, 7
      %v851 = vsub.s32 0, %v850
      %v852 = vrot.slane %v843, %v851
      %v853 = vsub.f32 %v682, %v852
      %v854 = vsub.f32 %v687, %v852
      %v855 = vsub.f32 %v692, %v852
      %v856 = vsub.f32 %v697, %v852
      %v857 = vsub.f32 %v702, %v852
      %v858 = vsub.f32 %v707, %v852
      %v859 = vsub.f32 %v712, %v852
      %v860 = vsub.f32 %v717, %v852
      %v861 = vadd.f32 %v848, 1e-05
      %v862 = vrsqrt.pop %v861
      %v863 = vlaneseq
      %v864 = vshrl.u32 %v863, 7
      %v865 = vsub.s32 1, %v864
      %v866 = vrot.slane %v862, %v865
      %v867 = vmul.f32 %v853, %v866
      %v868 = vmul.f32 %v854, %v866
      %v869 = vmul.f32 %v855, %v866
      %v870 = vmul.f32 %v856, %v866
      %v871 = vmul.f32 %v857, %v866
      %v872 = vmul.f32 %v858, %v866
      %v873 = vmul.f32 %v859, %v866
      %v874 = vmul.f32 %v860, %v866
      %v875 = vld [vmem:[%s3 + $0x1] sm:$0x1]
      %v876 = vlaneseq
      %v877 = vshrl.u32 %v876, 7
      %v878 = vsub.s32 0, %v877
      %v879 = vrot.slane %v875, %v878
      %v880 = vmul.f32 %v867, %v879
      %v881 = vmul.f32 %v868, %v879
      %v882 = vmul.f32 %v869, %v879
      %v883 = vmul.f32 %v870, %v879
      %v884 = vmul.f32 %v871, %v879
      %v885 = vmul.f32 %v872, %v879
      %v886 = vmul.f32 %v873, %v879
      %v887 = vmul.f32 %v874, %v879
      %v888 = vld [vmem:[%s3 + $0x2] sm:$0x1]
      %v889 = vlaneseq
      %v890 = vshrl.u32 %v889, 7
      %v891 = vsub.s32 0, %v890
      %v892 = vrot.slane %v888, %v891
      %v893 = vadd.f32 %v880, %v892
      %v894 = vadd.f32 %v881, %v892
      %v895 = vadd.f32 %v882, %v892
      %v896 = vadd.f32 %v883, %v892
      %v897 = vadd.f32 %v884, %v892
      %v898 = vadd.f32 %v885, %v892
      %v899 = vadd.f32 %v886, %v892
      %v900 = vadd.f32 %v887, %v892
      %v901 = vmul.f32 %v893, 0.5
      %v902 = vmul.f32 %v894, 0.5
      %v903 = vmul.f32 %v895, 0.5
      %v904 = vmul.f32 %v896, 0.5
      %v905 = vmul.f32 %v897, 0.5
      %v906 = vmul.f32 %v898, 0.5
      %v907 = vmul.f32 %v899, 0.5
      %v908 = vmul.f32 %v900, 0.5
      %v909 = vmul.f32 %v893, 0.70710677
      %v910 = vmul.f32 %v894, 0.70710677
      %v911 = vmul.f32 %v895, 0.70710677
      %v912 = vmul.f32 %v896, 0.70710677
      %v913 = vmul.f32 %v897, 0.70710677
      %v914 = vmul.f32 %v898, 0.70710677
      %v915 = vmul.f32 %v899, 0.70710677
      %v916 = vmul.f32 %v900, 0.70710677
      %v917 = verf.f32.pop %v909
      %v918 = verf.f32.pop %v910
      %v919 = verf.f32.pop %v911
      %v920 = verf.f32.pop %v912
      %v921 = verf.f32.pop %v913
      %v922 = verf.f32.pop %v914
      %v923 = verf.f32.pop %v915
      %v924 = verf.f32.pop %v916
      %v925 = vadd.f32 %v917, 1.0
      %v926 = vadd.f32 %v918, 1.0
      %v927 = vadd.f32 %v919, 1.0
      %v928 = vadd.f32 %v920, 1.0
      %v929 = vadd.f32 %v921, 1.0
      %v930 = vadd.f32 %v922, 1.0
      %v931 = vadd.f32 %v923, 1.0
      %v932 = vadd.f32 %v924, 1.0
      %v933 = vmul.f32 %v901, %v925
      %v934 = vmul.f32 %v902, %v926
      %v935 = vmul.f32 %v903, %v927
      %v936 = vmul.f32 %v904, %v928
      %v937 = vmul.f32 %v905, %v929
      %v938 = vmul.f32 %v906, %v930
      %v939 = vmul.f32 %v907, %v931
      %v940 = vmul.f32 %v908, %v932
      %v941 = vld [vmem:[%s6] sm:$0x1]
      %v942 = vld [vmem:[%s4] sm:$0xff]
      %v943 = vld [vmem:[%s4 + $0x8] sm:$0xff]
      %v944 = vlaneseq
      %v945 = vshrl.u32 %v944, 7
      %v946 = vsub.s32 0, %v945
      %v947 = vrot.slane %v941, %v946
      %v948 = vsel %vm550, %v414, 0
      %v950 = vsel %vm550, %v416, 0
      %v952 = vsel %vm550, %v418, 0
      %v954 = vsel %vm550, %v420, 0
      %v956 = vsel %vm550, %v422, 0
      %v958 = vsel %vm550, %v424, 0
      %v960 = vsel %vm550, %v426, 0
      %v962 = vsel %vm550, %v428, 0
      %964 = vmatprep.subr.mxu0 0.0
      %965 = vmatpush1.msra.mxu0 %v942
      %966 = vmatprep.subr.mxu0 0.0
      %967 = vmatpush1.msra.mxu0 %v943
      %968 = vmatprep.subr.mxu0 0.0
      %969 = vmatpush1.msra.mxu0 0.0
      %970 = vmatprep.subr.mxu0 0.0
      %971 = vmatpush1.msra.mxu0 0.0
      %972 = vmatprep.subr.mxu0 0.0
      %973 = vmatpush1.msra.mxu0 0.0
      %974 = vmatprep.subr.mxu0 0.0
      %975 = vmatpush1.msra.mxu0 0.0
      %976 = vmatprep.subr.mxu0 0.0
      %977 = vmatpush1.msra.mxu0 0.0
      %978 = vmatprep.subr.mxu0 0.0
      %979 = vmatpush1.msra.mxu0 0.0
      %980 = vmatprep.subr.mxu0 0.0
      %981 = vmatpush1.msra.mxu0 0.0
      %982 = vmatprep.subr.mxu0 0.0
      %983 = vmatpush1.msra.mxu0 0.0
      %984 = vmatprep.subr.mxu0 0.0
      %985 = vmatpush1.msra.mxu0 0.0
      %986 = vmatprep.subr.mxu0 0.0
      %987 = vmatpush1.msra.mxu0 0.0
      %988 = vmatprep.subr.mxu0 0.0
      %989 = vmatpush1.msra.mxu0 0.0
      %990 = vmatprep.subr.mxu0 0.0
      %991 = vmatpush1.msra.mxu0 0.0
      %992 = vmatprep.subr.mxu0 0.0
      %993 = vmatpush1.msra.mxu0 0.0
      %994 = vmatprep.subr.mxu0 0.0
      %995 = vmatpush1.msra.mxu0 0.0
      %996 = vmatprep.subr.mxu0 0.0
      %997 = vmatpush1.msra.mxu0 0.0
      %998 = vmatprep.subr.mxu0 0.0
      %999 = vmatpush1.msra.mxu0 0.0
      %1000 = vmatprep.subr.mxu0 0.0
      %1001 = vmatpush1.msra.mxu0 0.0
      %1002 = vmatprep.subr.mxu0 0.0
      %1003 = vmatpush1.msra.mxu0 0.0
      %1004 = vmatprep.subr.mxu0 0.0
      %1005 = vmatpush1.msra.mxu0 0.0
      %1006 = vmatprep.subr.mxu0 0.0
      %1007 = vmatpush1.msra.mxu0 0.0
      %1008 = vmatprep.subr.mxu0 0.0
      %1009 = vmatpush1.msra.mxu0 0.0
      %1010 = vmatprep.subr.mxu0 0.0
      %1011 = vmatpush1.msra.mxu0 0.0
      %1012 = vmatprep.subr.mxu0 0.0
      %1013 = vmatpush1.msra.mxu0 0.0
      %1014 = vmatprep.subr.mxu0 0.0
      %1015 = vmatpush1.msra.mxu0 0.0
      %1016 = vmatprep.subr.mxu0 0.0
      %1017 = vmatpush1.msra.mxu0 0.0
      %1018 = vmatprep.subr.mxu0 0.0
      %1019 = vmatpush1.msra.mxu0 0.0
      %1020 = vmatprep.subr.mxu0 0.0
      %1021 = vmatpush1.msra.mxu0 0.0
      %1022 = vmatprep.subr.mxu0 0.0
      %1023 = vmatpush1.msra.mxu0 0.0
      %1024 = vmatprep.subr.mxu0 0.0
      %1025 = vmatpush1.msra.mxu0 0.0
      %1026 = vmatprep.subr.mxu0 0.0
      %1027 = vmatpush1.msra.mxu0 0.0
      %1028 = vmatprep.mubr.f32.mxu0 0.0
      %1029 = vmatmul.mubr.f32.gmra.mrb[0].mxu0 %v948
      %v1030 = vpop.f32.mrb[0].mxu0
      %v1031 = vadd.f32 %v947, %v1030
      %v1032 = vpop.f32.mrb[0].mxu0
      %1033 = vmatprep.mubr.f32.mxu0 0.0
      %1034 = vmatmul.mubr.f32.gmra.mrb[0].mxu0 %v950
      %v1035 = vpop.f32.mrb[0].mxu0
      %v1036 = vadd.f32 %v947, %v1035
      %v1037 = vpop.f32.mrb[0].mxu0
      %1038 = vmatprep.mubr.f32.mxu0 0.0
      %1039 = vmatmul.mubr.f32.gmra.mrb[0].mxu0 %v952
      %v1040 = vpop.f32.mrb[0].mxu0
      %v1041 = vadd.f32 %v947, %v1040
      %v1042 = vpop.f32.mrb[0].mxu0
      %1043 = vmatprep.mubr.f32.mxu0 0.0
      %1044 = vmatmul.mubr.f32.gmra.mrb[0].mxu0 %v954
      %v1045 = vpop.f32.mrb[0].mxu0
      %v1046 = vadd.f32 %v947, %v1045
      %v1047 = vpop.f32.mrb[0].mxu0
      %1048 = vmatprep.mubr.f32.mxu0 0.0
      %1049 = vmatmul.mubr.f32.gmra.mrb[0].mxu0 %v956
      %v1050 = vpop.f32.mrb[0].mxu0
      %v1051 = vadd.f32 %v947, %v1050
      %v1052 = vpop.f32.mrb[0].mxu0
      %1053 = vmatprep.mubr.f32.mxu0 0.0
      %1054 = vmatmul.mubr.f32.gmra.mrb[0].mxu0 %v958
      %v1055 = vpop.f32.mrb[0].mxu0
      %v1056 = vadd.f32 %v947, %v1055
      %v1057 = vpop.f32.mrb[0].mxu0
      %1058 = vmatprep.mubr.f32.mxu0 0.0
      %1059 = vmatmul.mubr.f32.gmra.mrb[0].mxu0 %v960
      %v1060 = vpop.f32.mrb[0].mxu0
      %v1061 = vadd.f32 %v947, %v1060
      %v1062 = vpop.f32.mrb[0].mxu0
      %1063 = vmatprep.mubr.f32.mxu0 0.0
      %1064 = vmatmul.mubr.f32.gmra.mrb[0].mxu0 %v962
      %v1065 = vpop.f32.mrb[0].mxu0
      %v1066 = vadd.f32 %v947, %v1065
      %v1067 = vpop.f32.mrb[0].mxu0
      %1068 = vdwg.mxu0
      %v1069 = vsel %vm559, %v1031, 0.0
      %v1070 = vsel %vm559, %v1036, 0.0
      %v1071 = vadd.f32 %v1069, %v1070
      %v1072 = vsel %vm559, %v1041, 0.0
      %v1073 = vadd.f32 %v1071, %v1072
      %v1074 = vsel %vm559, %v1046, 0.0
      %v1075 = vadd.f32 %v1073, %v1074
      %v1076 = vsel %vm559, %v1051, 0.0
      %v1077 = vadd.f32 %v1075, %v1076
      %v1078 = vsel %vm559, %v1056, 0.0
      %v1079 = vadd.f32 %v1077, %v1078
      %v1080 = vsel %vm559, %v1061, 0.0
      %v1081 = vadd.f32 %v1079, %v1080
      %v1082 = vsel %vm559, %v1066, 0.0
      %v1083 = vadd.f32 %v1081, %v1082
      %v1084 = vrot.slane %v1083, 4
      %v1085 = vadd.f32 %v1083, %v1084
      %v1086 = vrot.slane %v1085, 2
      %v1087 = vadd.f32 %v1085, %v1086
      %v1088 = vrot.slane %v1087, 1
      %v1089 = vadd.f32 %v1087, %v1088
      %v1090 = vmul.f32 %v941, 192.0
      %v1091 = vadd.f32 %v1089, %v1090
      %v1092 = vmul.f32 %v1031, %v1031
      %v1093 = vmul.f32 %v1036, %v1036
      %v1094 = vmul.f32 %v1041, %v1041
      %v1095 = vmul.f32 %v1046, %v1046
      %v1096 = vmul.f32 %v1051, %v1051
      %v1097 = vmul.f32 %v1056, %v1056
      %v1098 = vmul.f32 %v1061, %v1061
      %v1099 = vmul.f32 %v1066, %v1066
      %v1100 = vsel %vm559, %v1092, 0.0
      %v1101 = vsel %vm559, %v1093, 0.0
      %v1102 = vadd.f32 %v1100, %v1101
      %v1103 = vsel %vm559, %v1094, 0.0
      %v1104 = vadd.f32 %v1102, %v1103
      %v1105 = vsel %vm559, %v1095, 0.0
      %v1106 = vadd.f32 %v1104, %v1105
      %v1107 = vsel %vm559, %v1096, 0.0
      %v1108 = vadd.f32 %v1106, %v1107
      %v1109 = vsel %vm559, %v1097, 0.0
      %v1110 = vadd.f32 %v1108, %v1109
      %v1111 = vsel %vm559, %v1098, 0.0
      %v1112 = vadd.f32 %v1110, %v1111
      %v1113 = vsel %vm559, %v1099, 0.0
      %v1114 = vadd.f32 %v1112, %v1113
      %v1115 = vrot.slane %v1114, 4
      %v1116 = vadd.f32 %v1114, %v1115
      %v1117 = vrot.slane %v1116, 2
      %v1118 = vadd.f32 %v1116, %v1117
      %v1119 = vrot.slane %v1118, 1
      %v1120 = vadd.f32 %v1118, %v1119
      %v1121 = vmul.f32 %v1090, %v941
      %v1122 = vadd.f32 %v1120, %v1121
      %v1124 = vrot.slane %v1122, 7
      %v1126 = vsel %vm754, %v1091, %v1124
      %v1127 = vld [vmem:[%s5] sm:$0xff]
      %v1128 = vld [vmem:[%s5 + $0x8] sm:$0xff]
      %v1129 = vld [vmem:[%s5 + $0x10] sm:$0xff]
      %v1130 = vld [vmem:[%s5 + $0x18] sm:$0xff]
      %v1132 = vsel %vm559, %v1126, 0
      %1134 = vmatprep.subr.mxu0 0.0
      %1135 = vmatpush1.msra.mxu0 %v1127
      %1136 = vmatprep.subr.mxu0 0.0
      %1137 = vmatpush1.msra.mxu0 %v1128
      %1138 = vmatprep.subr.mxu0 0.0
      %1139 = vmatpush1.msra.mxu0 %v1129
      %1140 = vmatprep.subr.mxu0 0.0
      %1141 = vmatpush1.msra.mxu0 %v1130
      %1142 = vmatprep.subr.mxu0 0.0
      %1143 = vmatpush1.msra.mxu0 0.0
      %1144 = vmatprep.subr.mxu0 0.0
      %1145 = vmatpush1.msra.mxu0 0.0
      %1146 = vmatprep.subr.mxu0 0.0
      %1147 = vmatpush1.msra.mxu0 0.0
      %1148 = vmatprep.subr.mxu0 0.0
      %1149 = vmatpush1.msra.mxu0 0.0
      %1150 = vmatprep.subr.mxu0 0.0
      %1151 = vmatpush1.msra.mxu0 0.0
      %1152 = vmatprep.subr.mxu0 0.0
      %1153 = vmatpush1.msra.mxu0 0.0
      %1154 = vmatprep.subr.mxu0 0.0
      %1155 = vmatpush1.msra.mxu0 0.0
      %1156 = vmatprep.subr.mxu0 0.0
      %1157 = vmatpush1.msra.mxu0 0.0
      %1158 = vmatprep.subr.mxu0 0.0
      %1159 = vmatpush1.msra.mxu0 0.0
      %1160 = vmatprep.subr.mxu0 0.0
      %1161 = vmatpush1.msra.mxu0 0.0
      %1162 = vmatprep.subr.mxu0 0.0
      %1163 = vmatpush1.msra.mxu0 0.0
      %1164 = vmatprep.subr.mxu0 0.0
      %1165 = vmatpush1.msra.mxu0 0.0
      %1166 = vmatprep.subr.mxu0 0.0
      %1167 = vmatpush1.msra.mxu0 0.0
      %1168 = vmatprep.subr.mxu0 0.0
      %1169 = vmatpush1.msra.mxu0 0.0
      %1170 = vmatprep.subr.mxu0 0.0
      %1171 = vmatpush1.msra.mxu0 0.0
      %1172 = vmatprep.subr.mxu0 0.0
      %1173 = vmatpush1.msra.mxu0 0.0
      %1174 = vmatprep.subr.mxu0 0.0
      %1175 = vmatpush1.msra.mxu0 0.0
      %1176 = vmatprep.subr.mxu0 0.0
      %1177 = vmatpush1.msra.mxu0 0.0
      %1178 = vmatprep.subr.mxu0 0.0
      %1179 = vmatpush1.msra.mxu0 0.0
      %1180 = vmatprep.subr.mxu0 0.0
      %1181 = vmatpush1.msra.mxu0 0.0
      %1182 = vmatprep.subr.mxu0 0.0
      %1183 = vmatpush1.msra.mxu0 0.0
      %1184 = vmatprep.subr.mxu0 0.0
      %1185 = vmatpush1.msra.mxu0 0.0
      %1186 = vmatprep.subr.mxu0 0.0
      %1187 = vmatpush1.msra.mxu0 0.0
      %1188 = vmatprep.subr.mxu0 0.0
      %1189 = vmatpush1.msra.mxu0 0.0
      %1190 = vmatprep.subr.mxu0 0.0
      %1191 = vmatpush1.msra.mxu0 0.0
      %1192 = vmatprep.subr.mxu0 0.0
      %1193 = vmatpush1.msra.mxu0 0.0
      %1194 = vmatprep.subr.mxu0 0.0
      %1195 = vmatpush1.msra.mxu0 0.0
      %1196 = vmatprep.subr.mxu0 0.0
      %1197 = vmatpush1.msra.mxu0 0.0
      %1198 = vmatprep.mubr.f32.mxu0 0.0
      %1199 = vmatmul.mubr.f32.gmra.mrb[0].mxu0 %v1132
      %v1200 = vpop.f32.mrb[0].mxu0
      %v1201 = vadd.f32 0.0, %v1200
      %v1202 = vpop.f32.mrb[0].mxu0
      %1203 = vdwg.mxu0
      %v1204 = vmul.f32 %v1201, %v842
      %v1205 = vmul.f32 %v1204, %v1204
      %v1207 = vrot.slane %v1205, 7
      %v1209 = vsub.f32 %v1204, %v1207
      %v1210 = vadd.f32 %v1209, 1e-05
      %v1211 = vrsqrt.pop %v1210
      %v1212 = vld [vmem:[%s6 + $0x1] sm:$0x1]
      %v1213 = vld [vmem:[%s6 + $0x2] sm:$0x1]
      %v1214 = vlaneseq
      %v1215 = vshrl.u32 %v1214, 7
      %v1216 = vsub.s32 0, %v1215
      %v1217 = vrot.slane %v1204, %v1216
      %v1218 = vsub.f32 %v1031, %v1217
      %v1219 = vsub.f32 %v1036, %v1217
      %v1220 = vsub.f32 %v1041, %v1217
      %v1221 = vsub.f32 %v1046, %v1217
      %v1222 = vsub.f32 %v1051, %v1217
      %v1223 = vsub.f32 %v1056, %v1217
      %v1224 = vsub.f32 %v1061, %v1217
      %v1225 = vsub.f32 %v1066, %v1217
      %v1226 = vlaneseq
      %v1227 = vshrl.u32 %v1226, 7
      %v1228 = vsub.s32 1, %v1227
      %v1229 = vrot.slane %v1211, %v1228
      %v1230 = vmul.f32 %v1218, %v1229
      %v1231 = vmul.f32 %v1219, %v1229
      %v1232 = vmul.f32 %v1220, %v1229
      %v1233 = vmul.f32 %v1221, %v1229
      %v1234 = vmul.f32 %v1222, %v1229
      %v1235 = vmul.f32 %v1223, %v1229
      %v1236 = vmul.f32 %v1224, %v1229
      %v1237 = vmul.f32 %v1225, %v1229
      %v1238 = vlaneseq
      %v1239 = vshrl.u32 %v1238, 7
      %v1240 = vsub.s32 0, %v1239
      %v1241 = vrot.slane %v1212, %v1240
      %v1242 = vmul.f32 %v1230, %v1241
      %v1243 = vmul.f32 %v1231, %v1241
      %v1244 = vmul.f32 %v1232, %v1241
      %v1245 = vmul.f32 %v1233, %v1241
      %v1246 = vmul.f32 %v1234, %v1241
      %v1247 = vmul.f32 %v1235, %v1241
      %v1248 = vmul.f32 %v1236, %v1241
      %v1249 = vmul.f32 %v1237, %v1241
      %v1250 = vlaneseq
      %v1251 = vshrl.u32 %v1250, 7
      %v1252 = vsub.s32 0, %v1251
      %v1253 = vrot.slane %v1213, %v1252
      %v1254 = vadd.f32 %v1242, %v1253
      %v1255 = vadd.f32 %v1243, %v1253
      %v1256 = vadd.f32 %v1244, %v1253
      %v1257 = vadd.f32 %v1245, %v1253
      %v1258 = vadd.f32 %v1246, %v1253
      %v1259 = vadd.f32 %v1247, %v1253
      %v1260 = vadd.f32 %v1248, %v1253
      %v1261 = vadd.f32 %v1249, %v1253
      %v1262 = vsub.f32 %v941, %v1204
      %v1264 = vrot.slane %v1211, 1
      %v1266 = vmul.f32 %v1262, %v1264
      %v1267 = vmul.f32 %v1266, %v1212
      %v1268 = vadd.f32 %v1267, %v1213
      %v1269 = vlaneseq
      %v1270 = vshrl.u32 %v1269, 7
      %v1271 = vsub.s32 0, %v1270
      %v1272 = vrot.slane %v1268, %v1271
      %1274 = vrot.lane.b32.xlu0 %v1272, 32
      %v1275 = vpop.permute.xlu0 %1274
      %1277 = vrot.lane.b32.xlu0 %v1272, 64
      %v1278 = vpop.permute.xlu0 %1277
      %1280 = vrot.lane.b32.xlu0 %v1272, 96
      %v1281 = vpop.permute.xlu0 %1280
      %v1283 = vsel %vm559, %v1254, %v1275
      %v1284 = vsel %vm559, %v1255, %v1275
      %v1285 = vsel %vm559, %v1256, %v1275
      %v1286 = vsel %vm559, %v1257, %v1275
      %v1287 = vsel %vm559, %v1258, %v1275
      %v1288 = vsel %vm559, %v1259, %v1275
      %v1289 = vsel %vm559, %v1260, %v1275
      %v1290 = vsel %vm559, %v1261, %v1275
      %v1291 = vsel %vm590, %v1283, %v1278
      %v1292 = vsel %vm590, %v1284, %v1278
      %v1293 = vsel %vm590, %v1285, %v1278
      %v1294 = vsel %vm590, %v1286, %v1278
      %v1295 = vsel %vm590, %v1287, %v1278
      %v1296 = vsel %vm590, %v1288, %v1278
      %v1297 = vsel %vm590, %v1289, %v1278
      %v1298 = vsel %vm590, %v1290, %v1278
      %vm1299 = vcmask 785408
      %v1300 = vsel %vm1299, %v1291, %v1281
      %v1301 = vsel %vm1299, %v1292, %v1281
      %v1302 = vsel %vm1299, %v1293, %v1281
      %v1303 = vsel %vm1299, %v1294, %v1281
      %v1304 = vsel %vm1299, %v1295, %v1281
      %v1305 = vsel %vm1299, %v1296, %v1281
      %v1306 = vsel %vm1299, %v1297, %v1281
      %v1307 = vsel %vm1299, %v1298, %v1281
      %1308 = vst [vmem:[#allocation2] sm:$0xff] 0.0
      %1309 = vst [vmem:[#allocation2 + $0x8] sm:$0x3] 0.0
      %s1310 = scalar_lea.vmem [#allocation2], 144
      %1311 = vst [vmem:[%s1310] sm:$0xff] 0.0
      %1312 = vst [vmem:[%s1310 + $0x8] sm:$0x3] 0.0
      %s1313 = scalar_lea.vmem [#allocation2], 16
      %1314 = vst [vmem:[%s1313] sm:$0x1] 0.0
      %1315 = vst [vmem:[%s1313 + $0x10] sm:$0x1] 0.0
      %1316 = vst [vmem:[%s1313 + $0x20] sm:$0x1] 0.0
      %1317 = vst [vmem:[%s1313 + $0x30] sm:$0x1] 0.0
      %1318 = vst [vmem:[%s1313 + $0x40] sm:$0x1] 0.0
      %1319 = vst [vmem:[%s1313 + $0x50] sm:$0x1] 0.0
      %1320 = vst [vmem:[%s1313 + $0x60] sm:$0x1] 0.0
      %1321 = vst [vmem:[%s1313 + $0x70] sm:$0x1] 0.0
      %1322 = vst [vmem:[%s1313 + $0x9] sm:$0x1] 0.0
      %1323 = vst [vmem:[%s1313 + $0x19] sm:$0x1] 0.0
      %1324 = vst [vmem:[%s1313 + $0x29] sm:$0x1] 0.0
      %1325 = vst [vmem:[%s1313 + $0x39] sm:$0x1] 0.0
      %1326 = vst [vmem:[%s1313 + $0x49] sm:$0x1] 0.0
      %1327 = vst [vmem:[%s1313 + $0x59] sm:$0x1] 0.0
      %1328 = vst [vmem:[%s1313 + $0x69] sm:$0x1] 0.0
      %1329 = vst [vmem:[%s1313 + $0x79] sm:$0x1] 0.0
      %1330 = vst [vmem:[%s1313 + $0x1] sm:$0xff] %v933
      %1331 = vst [vmem:[%s1313 + $0x11] sm:$0xff] %v934
      %1332 = vst [vmem:[%s1313 + $0x21] sm:$0xff] %v935
      %1333 = vst [vmem:[%s1313 + $0x31] sm:$0xff] %v936
      %1334 = vst [vmem:[%s1313 + $0x41] sm:$0xff] %v937
      %1335 = vst [vmem:[%s1313 + $0x51] sm:$0xff] %v938
      %1336 = vst [vmem:[%s1313 + $0x61] sm:$0xff] %v939
      %1337 = vst [vmem:[%s1313 + $0x71] sm:$0xff] %v940
      %v1338 = vld [vmem:[#allocation2] sm:$0xff]
      %v1339 = vld [vmem:[#allocation2 + $0x10] sm:$0xff]
      %v1340 = vld [vmem:[#allocation2 + $0x20] sm:$0xff]
      %v1341 = vld [vmem:[#allocation2 + $0x30] sm:$0xff]
      %v1342 = vld [vmem:[#allocation2 + $0x40] sm:$0xff]
      %v1343 = vld [vmem:[#allocation2 + $0x50] sm:$0xff]
      %v1344 = vld [vmem:[#allocation2 + $0x60] sm:$0xff]
      %v1345 = vld [vmem:[#allocation2 + $0x70] sm:$0xff]
      %v1346 = vld [vmem:[#allocation2 + $0x1] sm:$0xff]
      %v1347 = vld [vmem:[#allocation2 + $0x11] sm:$0xff]
      %v1348 = vld [vmem:[#allocation2 + $0x21] sm:$0xff]
      %v1349 = vld [vmem:[#allocation2 + $0x31] sm:$0xff]
      %v1350 = vld [vmem:[#allocation2 + $0x41] sm:$0xff]
      %v1351 = vld [vmem:[#allocation2 + $0x51] sm:$0xff]
      %v1352 = vld [vmem:[#allocation2 + $0x61] sm:$0xff]
      %v1353 = vld [vmem:[#allocation2 + $0x71] sm:$0xff]
      %v1354 = vld [vmem:[#allocation2 + $0x2] sm:$0xff]
      %v1355 = vld [vmem:[#allocation2 + $0x12] sm:$0xff]
      %v1356 = vld [vmem:[#allocation2 + $0x22] sm:$0xff]
      %v1357 = vld [vmem:[#allocation2 + $0x32] sm:$0xff]
      %v1358 = vld [vmem:[#allocation2 + $0x42] sm:$0xff]
      %v1359 = vld [vmem:[#allocation2 + $0x52] sm:$0xff]
      %v1360 = vld [vmem:[#allocation2 + $0x62] sm:$0xff]
      %v1361 = vld [vmem:[#allocation2 + $0x72] sm:$0xff]
      %v1362 = vld [vmem:[%s1313] sm:$0xff]
      %v1363 = vld [vmem:[%s1313 + $0x10] sm:$0xff]
      %v1364 = vld [vmem:[%s1313 + $0x20] sm:$0xff]
      %v1365 = vld [vmem:[%s1313 + $0x30] sm:$0xff]
      %v1366 = vld [vmem:[%s1313 + $0x40] sm:$0xff]
      %v1367 = vld [vmem:[%s1313 + $0x50] sm:$0xff]
      %v1368 = vld [vmem:[%s1313 + $0x60] sm:$0xff]
      %v1369 = vld [vmem:[%s1313 + $0x70] sm:$0xff]
      %v1370 = vld [vmem:[%s1313 + $0x1] sm:$0xff]
      %v1371 = vld [vmem:[%s1313 + $0x11] sm:$0xff]
      %v1372 = vld [vmem:[%s1313 + $0x21] sm:$0xff]
      %v1373 = vld [vmem:[%s1313 + $0x31] sm:$0xff]
      %v1374 = vld [vmem:[%s1313 + $0x41] sm:$0xff]
      %v1375 = vld [vmem:[%s1313 + $0x51] sm:$0xff]
      %v1376 = vld [vmem:[%s1313 + $0x61] sm:$0xff]
      %v1377 = vld [vmem:[%s1313 + $0x71] sm:$0xff]
      %v1378 = vld [vmem:[%s1313 + $0x2] sm:$0xff]
      %v1379 = vld [vmem:[%s1313 + $0x12] sm:$0xff]
      %v1380 = vld [vmem:[%s1313 + $0x22] sm:$0xff]
      %v1381 = vld [vmem:[%s1313 + $0x32] sm:$0xff]
      %v1382 = vld [vmem:[%s1313 + $0x42] sm:$0xff]
      %v1383 = vld [vmem:[%s1313 + $0x52] sm:$0xff]
      %v1384 = vld [vmem:[%s1313 + $0x62] sm:$0xff]
      %v1385 = vld [vmem:[%s1313 + $0x72] sm:$0xff]
      %s1386 = scalar_lea.vmem [#allocation2], 32
      %v1387 = vld [vmem:[%s1386] sm:$0xff]
      %v1388 = vld [vmem:[%s1386 + $0x10] sm:$0xff]
      %v1389 = vld [vmem:[%s1386 + $0x20] sm:$0xff]
      %v1390 = vld [vmem:[%s1386 + $0x30] sm:$0xff]
      %v1391 = vld [vmem:[%s1386 + $0x40] sm:$0xff]
      %v1392 = vld [vmem:[%s1386 + $0x50] sm:$0xff]
      %v1393 = vld [vmem:[%s1386 + $0x60] sm:$0xff]
      %v1394 = vld [vmem:[%s1386 + $0x70] sm:$0xff]
      %v1395 = vld [vmem:[%s1386 + $0x1] sm:$0xff]
      %v1396 = vld [vmem:[%s1386 + $0x11] sm:$0xff]
      %v1397 = vld [vmem:[%s1386 + $0x21] sm:$0xff]
      %v1398 = vld [vmem:[%s1386 + $0x31] sm:$0xff]
      %v1399 = vld [vmem:[%s1386 + $0x41] sm:$0xff]
      %v1400 = vld [vmem:[%s1386 + $0x51] sm:$0xff]
      %v1401 = vld [vmem:[%s1386 + $0x61] sm:$0xff]
      %v1402 = vld [vmem:[%s1386 + $0x71] sm:$0xff]
      %v1403 = vld [vmem:[%s1386 + $0x2] sm:$0xff]
      %v1404 = vld [vmem:[%s1386 + $0x12] sm:$0xff]
      %v1405 = vld [vmem:[%s1386 + $0x22] sm:$0xff]
      %v1406 = vld [vmem:[%s1386 + $0x32] sm:$0xff]
      %v1407 = vld [vmem:[%s1386 + $0x42] sm:$0xff]
      %v1408 = vld [vmem:[%s1386 + $0x52] sm:$0xff]
      %v1409 = vld [vmem:[%s1386 + $0x62] sm:$0xff]
      %v1410 = vld [vmem:[%s1386 + $0x72] sm:$0xff]
      %v1411 = vld [vmem:[%s7] sm:$0xff]
      %v1412 = vld [vmem:[%s7 + $0x8] sm:$0xff]
      %v1413 = vld [vmem:[%s7 + $0x10] sm:$0xff]
      %v1414 = vld [vmem:[%s7 + $0x18] sm:$0xff]
      %v1415 = vld [vmem:[%s7 + $0x20] sm:$0xff]
      %v1416 = vld [vmem:[%s7 + $0x28] sm:$0xff]
      %v1417 = vld [vmem:[%s7 + $0x30] sm:$0xff]
      %v1418 = vld [vmem:[%s7 + $0x38] sm:$0xff]
      %v1419 = vld [vmem:[%s7 + $0x40] sm:$0xff]
      %v1420 = vld [vmem:[%s7 + $0x48] sm:$0xff]
      %v1421 = vld [vmem:[%s7 + $0x50] sm:$0xff]
      %v1422 = vld [vmem:[%s7 + $0x58] sm:$0xff]
      %v1423 = vld [vmem:[%s7 + $0x60] sm:$0xff]
      %v1424 = vld [vmem:[%s7 + $0x68] sm:$0xff]
      %v1425 = vld [vmem:[%s7 + $0x70] sm:$0xff]
      %v1426 = vld [vmem:[%s7 + $0x78] sm:$0xff]
      %v1427 = vld [vmem:[%s7 + $0x80] sm:$0xff]
      %v1428 = vld [vmem:[%s7 + $0x88] sm:$0xff]
      %v1429 = vld [vmem:[%s7 + $0x90] sm:$0xff]
      %v1430 = vld [vmem:[%s7 + $0x98] sm:$0xff]
      %v1431 = vld [vmem:[%s7 + $0xa0] sm:$0xff]
      %v1432 = vld [vmem:[%s7 + $0xa8] sm:$0xff]
      %v1433 = vld [vmem:[%s7 + $0xb0] sm:$0xff]
      %v1434 = vld [vmem:[%s7 + $0xb8] sm:$0xff]
      %v1435 = vld [vmem:[%s7 + $0xc0] sm:$0xff]
      %v1436 = vld [vmem:[%s7 + $0xc8] sm:$0xff]
      %v1437 = vld [vmem:[%s7 + $0xd0] sm:$0xff]
      %v1438 = vld [vmem:[%s7 + $0xd8] sm:$0xff]
      %v1439 = vld [vmem:[%s7 + $0xe0] sm:$0xff]
      %v1440 = vld [vmem:[%s7 + $0xe8] sm:$0xff]
      %v1441 = vld [vmem:[%s7 + $0xf0] sm:$0xff]
      %v1442 = vld [vmem:[%s7 + $0xf8] sm:$0xff]
      %v1443 = vld [vmem:[%s7 + $0x100] sm:$0xff]
      %v1444 = vld [vmem:[%s7 + $0x108] sm:$0xff]
      %v1445 = vld [vmem:[%s7 + $0x110] sm:$0xff]
      %v1446 = vld [vmem:[%s7 + $0x118] sm:$0xff]
      %v1447 = vld [vmem:[%s7 + $0x120] sm:$0xff]
      %v1448 = vld [vmem:[%s7 + $0x128] sm:$0xff]
      %v1449 = vld [vmem:[%s7 + $0x130] sm:$0xff]
      %v1450 = vld [vmem:[%s7 + $0x138] sm:$0xff]
      %v1451 = vld [vmem:[%s7 + $0x140] sm:$0xff]
      %v1452 = vld [vmem:[%s7 + $0x148] sm:$0xff]
      %v1453 = vld [vmem:[%s7 + $0x150] sm:$0xff]
      %v1454 = vld [vmem:[%s7 + $0x158] sm:$0xff]
      %v1455 = vld [vmem:[%s7 + $0x160] sm:$0xff]
      %v1456 = vld [vmem:[%s7 + $0x168] sm:$0xff]
      %v1457 = vld [vmem:[%s7 + $0x170] sm:$0xff]
      %v1458 = vld [vmem:[%s7 + $0x178] sm:$0xff]
      %v1459 = vld [vmem:[%s7 + $0x180] sm:$0xff]
      %v1460 = vld [vmem:[%s7 + $0x188] sm:$0xff]
      %v1461 = vld [vmem:[%s7 + $0x190] sm:$0xff]
      %v1462 = vld [vmem:[%s7 + $0x198] sm:$0xff]
      %v1463 = vld [vmem:[%s7 + $0x1a0] sm:$0xff]
      %v1464 = vld [vmem:[%s7 + $0x1a8] sm:$0xff]
      %v1465 = vld [vmem:[%s7 + $0x1b0] sm:$0xff]
      %v1466 = vld [vmem:[%s7 + $0x1b8] sm:$0xff]
      %v1467 = vld [vmem:[%s7 + $0x1c0] sm:$0xff]
      %v1468 = vld [vmem:[%s7 + $0x1c8] sm:$0xff]
      %v1469 = vld [vmem:[%s7 + $0x1d0] sm:$0xff]
      %v1470 = vld [vmem:[%s7 + $0x1d8] sm:$0xff]
      %v1471 = vld [vmem:[%s7 + $0x1e0] sm:$0xff]
      %v1472 = vld [vmem:[%s7 + $0x1e8] sm:$0xff]
      %v1473 = vld [vmem:[%s7 + $0x1f0] sm:$0xff]
      %v1474 = vld [vmem:[%s7 + $0x1f8] sm:$0xff]
      %v1475 = vld [vmem:[%s7 + $0x200] sm:$0xff]
      %v1476 = vld [vmem:[%s7 + $0x208] sm:$0xff]
      %v1477 = vld [vmem:[%s7 + $0x210] sm:$0xff]
      %v1478 = vld [vmem:[%s7 + $0x218] sm:$0xff]
      %v1479 = vld [vmem:[%s7 + $0x220] sm:$0xff]
      %v1480 = vld [vmem:[%s7 + $0x228] sm:$0xff]
      %v1481 = vld [vmem:[%s7 + $0x230] sm:$0xff]
      %v1482 = vld [vmem:[%s7 + $0x238] sm:$0xff]
      %v1483 = vld [vmem:[%s7 + $0x240] sm:$0xff]
      %v1484 = vld [vmem:[%s7 + $0x248] sm:$0xff]
      %v1485 = vld [vmem:[%s7 + $0x250] sm:$0xff]
      %v1486 = vld [vmem:[%s7 + $0x258] sm:$0xff]
      %v1487 = vld [vmem:[%s7 + $0x260] sm:$0xff]
      %v1488 = vld [vmem:[%s7 + $0x268] sm:$0xff]
      %v1489 = vld [vmem:[%s7 + $0x270] sm:$0xff]
      %v1490 = vld [vmem:[%s7 + $0x278] sm:$0xff]
      %v1491 = vld [vmem:[%s7 + $0x280] sm:$0xff]
      %v1492 = vld [vmem:[%s7 + $0x288] sm:$0xff]
      %v1493 = vld [vmem:[%s7 + $0x290] sm:$0xff]
      %v1494 = vld [vmem:[%s7 + $0x298] sm:$0xff]
      %v1495 = vld [vmem:[%s7 + $0x2a0] sm:$0xff]
      %v1496 = vld [vmem:[%s7 + $0x2a8] sm:$0xff]
      %v1497 = vld [vmem:[%s7 + $0x2b0] sm:$0xff]
      %v1498 = vld [vmem:[%s7 + $0x2b8] sm:$0xff]
      %v1499 = vld [vmem:[%s7 + $0x2c0] sm:$0xff]
      %v1500 = vld [vmem:[%s7 + $0x2c8] sm:$0xff]
      %v1501 = vld [vmem:[%s7 + $0x2d0] sm:$0xff]
      %v1502 = vld [vmem:[%s7 + $0x2d8] sm:$0xff]
      %v1503 = vld [vmem:[%s7 + $0x2e0] sm:$0xff]
      %v1504 = vld [vmem:[%s7 + $0x2e8] sm:$0xff]
      %v1505 = vld [vmem:[%s7 + $0x2f0] sm:$0xff]
      %v1506 = vld [vmem:[%s7 + $0x2f8] sm:$0xff]
      %v1507 = vld [vmem:[%s7 + $0x300] sm:$0xff]
      %v1508 = vld [vmem:[%s7 + $0x308] sm:$0xff]
      %v1509 = vld [vmem:[%s7 + $0x310] sm:$0xff]
      %v1510 = vld [vmem:[%s7 + $0x318] sm:$0xff]
      %v1511 = vld [vmem:[%s7 + $0x320] sm:$0xff]
      %v1512 = vld [vmem:[%s7 + $0x328] sm:$0xff]
      %v1513 = vld [vmem:[%s7 + $0x330] sm:$0xff]
      %v1514 = vld [vmem:[%s7 + $0x338] sm:$0xff]
      %v1515 = vld [vmem:[%s7 + $0x340] sm:$0xff]
      %v1516 = vld [vmem:[%s7 + $0x348] sm:$0xff]
      %v1517 = vld [vmem:[%s7 + $0x350] sm:$0xff]
      %v1518 = vld [vmem:[%s7 + $0x358] sm:$0xff]
      %v1519 = vld [vmem:[%s7 + $0x360] sm:$0xff]
      %v1520 = vld [vmem:[%s7 + $0x368] sm:$0xff]
      %v1521 = vld [vmem:[%s7 + $0x370] sm:$0xff]
      %v1522 = vld [vmem:[%s7 + $0x378] sm:$0xff]
      %v1523 = vld [vmem:[%s7 + $0x380] sm:$0xff]
      %v1524 = vld [vmem:[%s7 + $0x388] sm:$0xff]
      %v1525 = vld [vmem:[%s7 + $0x390] sm:$0xff]
      %v1526 = vld [vmem:[%s7 + $0x398] sm:$0xff]
      %v1527 = vld [vmem:[%s7 + $0x3a0] sm:$0xff]
      %v1528 = vld [vmem:[%s7 + $0x3a8] sm:$0xff]
      %v1529 = vld [vmem:[%s7 + $0x3b0] sm:$0xff]
      %v1530 = vld [vmem:[%s7 + $0x3b8] sm:$0xff]
      %v1531 = vld [vmem:[%s7 + $0x3c0] sm:$0xff]
      %v1532 = vld [vmem:[%s7 + $0x3c8] sm:$0xff]
      %v1533 = vld [vmem:[%s7 + $0x3d0] sm:$0xff]
      %v1534 = vld [vmem:[%s7 + $0x3d8] sm:$0xff]
      %v1535 = vld [vmem:[%s7 + $0x3e0] sm:$0xff]
      %v1536 = vld [vmem:[%s7 + $0x3e8] sm:$0xff]
      %v1537 = vld [vmem:[%s7 + $0x3f0] sm:$0xff]
      %v1538 = vld [vmem:[%s7 + $0x3f8] sm:$0xff]
      %v1539 = vld [vmem:[%s7 + $0x400] sm:$0xff]
      %v1540 = vld [vmem:[%s7 + $0x408] sm:$0xff]
      %v1541 = vld [vmem:[%s7 + $0x410] sm:$0xff]
      %v1542 = vld [vmem:[%s7 + $0x418] sm:$0xff]
      %v1543 = vld [vmem:[%s7 + $0x420] sm:$0xff]
      %v1544 = vld [vmem:[%s7 + $0x428] sm:$0xff]
      %v1545 = vld [vmem:[%s7 + $0x430] sm:$0xff]
      %v1546 = vld [vmem:[%s7 + $0x438] sm:$0xff]
      %v1547 = vld [vmem:[%s7 + $0x440] sm:$0xff]
      %v1548 = vld [vmem:[%s7 + $0x448] sm:$0xff]
      %v1549 = vld [vmem:[%s7 + $0x450] sm:$0xff]
      %v1550 = vld [vmem:[%s7 + $0x458] sm:$0xff]
      %v1551 = vld [vmem:[%s7 + $0x460] sm:$0xff]
      %v1552 = vld [vmem:[%s7 + $0x468] sm:$0xff]
      %v1553 = vld [vmem:[%s7 + $0x470] sm:$0xff]
      %v1554 = vld [vmem:[%s7 + $0x478] sm:$0xff]
      %v1555 = vld [vmem:[%s3 + $0x3] sm:$0x1]
      %v1556 = vlaneseq
      %v1557 = vshrl.u32 %v1556, 7
      %v1558 = vsub.s32 0, %v1557
      %v1559 = vrot.slane %v1555, %v1558
      %1560 = vmatprep.subr.mxu0 0.0
      %1561 = vmatpush1.msra.mxu0 %v1411
      %1562 = vmatprep.subr.mxu0 0.0
      %1563 = vmatpush1.msra.mxu0 %v1412
      %1564 = vmatprep.subr.mxu0 0.0
      %1565 = vmatpush1.msra.mxu0 %v1413
      %1566 = vmatprep.subr.mxu0 0.0
      %1567 = vmatpush1.msra.mxu0 %v1414
      %1568 = vmatprep.subr.mxu0 0.0
      %1569 = vmatpush1.msra.mxu0 %v1415
      %1570 = vmatprep.subr.mxu0 0.0
      %1571 = vmatpush1.msra.mxu0 %v1416
      %1572 = vmatprep.subr.mxu0 0.0
      %1573 = vmatpush1.msra.mxu0 %v1417
      %1574 = vmatprep.subr.mxu0 0.0
      %1575 = vmatpush1.msra.mxu0 %v1418
      %1576 = vmatprep.subr.mxu0 0.0
      %1577 = vmatpush1.msra.mxu0 %v1419
      %1578 = vmatprep.subr.mxu0 0.0
      %1579 = vmatpush1.msra.mxu0 %v1420
      %1580 = vmatprep.subr.mxu0 0.0
      %1581 = vmatpush1.msra.mxu0 %v1421
      %1582 = vmatprep.subr.mxu0 0.0
      %1583 = vmatpush1.msra.mxu0 %v1422
      %1584 = vmatprep.subr.mxu0 0.0
      %1585 = vmatpush1.msra.mxu0 %v1423
      %1586 = vmatprep.subr.mxu0 0.0
      %1587 = vmatpush1.msra.mxu0 %v1424
      %1588 = vmatprep.subr.mxu0 0.0
      %1589 = vmatpush1.msra.mxu0 %v1425
      %1590 = vmatprep.subr.mxu0 0.0
      %1591 = vmatpush1.msra.mxu0 %v1426
      %1592 = vmatprep.subr.mxu0 0.0
      %1593 = vmatpush1.msra.mxu0 %v1427
      %1594 = vmatprep.subr.mxu0 0.0
      %1595 = vmatpush1.msra.mxu0 %v1428
      %1596 = vmatprep.subr.mxu0 0.0
      %1597 = vmatpush1.msra.mxu0 %v1429
      %1598 = vmatprep.subr.mxu0 0.0
      %1599 = vmatpush1.msra.mxu0 %v1430
      %1600 = vmatprep.subr.mxu0 0.0
      %1601 = vmatpush1.msra.mxu0 %v1431
      %1602 = vmatprep.subr.mxu0 0.0
      %1603 = vmatpush1.msra.mxu0 %v1432
      %1604 = vmatprep.subr.mxu0 0.0
      %1605 = vmatpush1.msra.mxu0 %v1433
      %1606 = vmatprep.subr.mxu0 0.0
      %1607 = vmatpush1.msra.mxu0 %v1434
      %1608 = vmatprep.subr.mxu0 0.0
      %1609 = vmatpush1.msra.mxu0 %v1435
      %1610 = vmatprep.subr.mxu0 0.0
      %1611 = vmatpush1.msra.mxu0 %v1436
      %1612 = vmatprep.subr.mxu0 0.0
      %1613 = vmatpush1.msra.mxu0 %v1437
      %1614 = vmatprep.subr.mxu0 0.0
      %1615 = vmatpush1.msra.mxu0 %v1438
      %1616 = vmatprep.subr.mxu0 0.0
      %1617 = vmatpush1.msra.mxu0 %v1439
      %1618 = vmatprep.subr.mxu0 0.0
      %1619 = vmatpush1.msra.mxu0 %v1440
      %1620 = vmatprep.subr.mxu0 0.0
      %1621 = vmatpush1.msra.mxu0 %v1441
      %1622 = vmatprep.subr.mxu0 0.0
      %1623 = vmatpush1.msra.mxu0 %v1442
      %1624 = vmatprep.mubr.f32.mxu0 %v1346
      %1625 = vmatmul.mubr.f32.gmra.mrb[0].mxu0 %v1338
      %v1626 = vpop.f32.mrb[0].mxu0
      %v1627 = vadd.f32 %v1559, %v1626
      %v1628 = vpop.f32.mrb[0].mxu0
      %1629 = vmatprep.mubr.f32.mxu0 %v1347
      %1630 = vmatmul.mubr.f32.gmra.mrb[0].mxu0 %v1339
      %v1631 = vpop.f32.mrb[0].mxu0
      %v1632 = vadd.f32 %v1559, %v1631
      %v1633 = vpop.f32.mrb[0].mxu0
      %1634 = vmatprep.mubr.f32.mxu0 %v1348
      %1635 = vmatmul.mubr.f32.gmra.mrb[0].mxu0 %v1340
      %v1636 = vpop.f32.mrb[0].mxu0
      %v1637 = vadd.f32 %v1559, %v1636
      %v1638 = vpop.f32.mrb[0].mxu0
      %1639 = vmatprep.mubr.f32.mxu0 %v1349
      %1640 = vmatmul.mubr.f32.gmra.mrb[0].mxu0 %v1341
      %v1641 = vpop.f32.mrb[0].mxu0
      %v1642 = vadd.f32 %v1559, %v1641
      %v1643 = vpop.f32.mrb[0].mxu0
      %1644 = vmatprep.mubr.f32.mxu0 %v1350
      %1645 = vmatmul.mubr.f32.gmra.mrb[0].mxu0 %v1342
      %v1646 = vpop.f32.mrb[0].mxu0
      %v1647 = vadd.f32 %v1559, %v1646
      %v1648 = vpop.f32.mrb[0].mxu0
      %1649 = vmatprep.mubr.f32.mxu0 %v1351
      %1650 = vmatmul.mubr.f32.gmra.mrb[0].mxu0 %v1343
      %v1651 = vpop.f32.mrb[0].mxu0
      %v1652 = vadd.f32 %v1559, %v1651
      %v1653 = vpop.f32.mrb[0].mxu0
      %1654 = vmatprep.mubr.f32.mxu0 %v1352
      %1655 = vmatmul.mubr.f32.gmra.mrb[0].mxu0 %v1344
      %v1656 = vpop.f32.mrb[0].mxu0
      %v1657 = vadd.f32 %v1559, %v1656
      %v1658 = vpop.f32.mrb[0].mxu0
      %1659 = vmatprep.mubr.f32.mxu0 %v1353
      %1660 = vmatmul.mubr.f32.gmra.mrb[0].mxu0 %v1345
      %v1661 = vpop.f32.mrb[0].mxu0
      %v1662 = vadd.f32 %v1559, %v1661
      %v1663 = vpop.f32.mrb[0].mxu0
      %1664 = vdwg.mxu0
      %1665 = vmatprep.subr.mxu0 0.0
      %1666 = vmatpush1.msra.mxu0 %v1443
      %1667 = vmatprep.subr.mxu0 0.0
      %1668 = vmatpush1.msra.mxu0 %v1444
      %1669 = vmatprep.subr.mxu0 0.0
      %1670 = vmatpush1.msra.mxu0 %v1445
      %1671 = vmatprep.subr.mxu0 0.0
      %1672 = vmatpush1.msra.mxu0 %v1446
      %1673 = vmatprep.subr.mxu0 0.0
      %1674 = vmatpush1.msra.mxu0 %v1447
      %1675 = vmatprep.subr.mxu0 0.0
      %1676 = vmatpush1.msra.mxu0 %v1448
      %1677 = vmatprep.subr.mxu0 0.0
      %1678 = vmatpush1.msra.mxu0 %v1449
      %1679 = vmatprep.subr.mxu0 0.0
      %1680 = vmatpush1.msra.mxu0 %v1450
      %1681 = vmatprep.subr.mxu0 0.0
      %1682 = vmatpush1.msra.mxu0 %v1451
      %1683 = vmatprep.subr.mxu0 0.0
      %1684 = vmatpush1.msra.mxu0 %v1452
      %1685 = vmatprep.subr.mxu0 0.0
      %1686 = vmatpush1.msra.mxu0 %v1453
      %1687 = vmatprep.subr.mxu0 0.0
      %1688 = vmatpush1.msra.mxu0 %v1454
      %1689 = vmatprep.subr.mxu0 0.0
      %1690 = vmatpush1.msra.mxu0 %v1455
      %1691 = vmatprep.subr.mxu0 0.0
      %1692 = vmatpush1.msra.mxu0 %v1456
      %1693 = vmatprep.subr.mxu0 0.0
      %1694 = vmatpush1.msra.mxu0 %v1457
      %1695 = vmatprep.subr.mxu0 0.0
      %1696 = vmatpush1.msra.mxu0 %v1458
      %1697 = vmatprep.subr.mxu0 0.0
      %1698 = vmatpush1.msra.mxu0 %v1459
      %1699 = vmatprep.subr.mxu0 0.0
      %1700 = vmatpush1.msra.mxu0 %v1460
      %1701 = vmatprep.subr.mxu0 0.0
      %1702 = vmatpush1.msra.mxu0 %v1461
      %1703 = vmatprep.subr.mxu0 0.0
      %1704 = vmatpush1.msra.mxu0 %v1462
      %1705 = vmatprep.subr.mxu0 0.0
      %1706 = vmatpush1.msra.mxu0 %v1463
      %1707 = vmatprep.subr.mxu0 0.0
      %1708 = vmatpush1.msra.mxu0 %v1464
      %1709 = vmatprep.subr.mxu0 0.0
      %1710 = vmatpush1.msra.mxu0 %v1465
      %1711 = vmatprep.subr.mxu0 0.0
      %1712 = vmatpush1.msra.mxu0 %v1466
      %1713 = vmatprep.subr.mxu0 0.0
      %1714 = vmatpush1.msra.mxu0 %v1467
      %1715 = vmatprep.subr.mxu0 0.0
      %1716 = vmatpush1.msra.mxu0 %v1468
      %1717 = vmatprep.subr.mxu0 0.0
      %1718 = vmatpush1.msra.mxu0 %v1469
      %1719 = vmatprep.subr.mxu0 0.0
      %1720 = vmatpush1.msra.mxu0 %v1470
      %1721 = vmatprep.subr.mxu0 0.0
      %1722 = vmatpush1.msra.mxu0 %v1471
      %1723 = vmatprep.subr.mxu0 0.0
      %1724 = vmatpush1.msra.mxu0 %v1472
      %1725 = vmatprep.subr.mxu0 0.0
      %1726 = vmatpush1.msra.mxu0 %v1473
      %1727 = vmatprep.subr.mxu0 0.0
      %1728 = vmatpush1.msra.mxu0 %v1474
      %1729 = vmatprep.mubr.f32.mxu0 %v1362
      %1730 = vmatmul.mubr.f32.gmra.mrb[0].mxu0 %v1354
      %v1731 = vpop.f32.mrb[0].mxu0
      %v1732 = vadd.f32 %v1627, %v1731
      %v1733 = vpop.f32.mrb[0].mxu0
      %1734 = vmatprep.mubr.f32.mxu0 %v1363
      %1735 = vmatmul.mubr.f32.gmra.mrb[0].mxu0 %v1355
      %v1736 = vpop.f32.mrb[0].mxu0
      %v1737 = vadd.f32 %v1632, %v1736
      %v1738 = vpop.f32.mrb[0].mxu0
      %1739 = vmatprep.mubr.f32.mxu0 %v1364
      %1740 = vmatmul.mubr.f32.gmra.mrb[0].mxu0 %v1356
      %v1741 = vpop.f32.mrb[0].mxu0
      %v1742 = vadd.f32 %v1637, %v1741
      %v1743 = vpop.f32.mrb[0].mxu0
      %1744 = vmatprep.mubr.f32.mxu0 %v1365
      %1745 = vmatmul.mubr.f32.gmra.mrb[0].mxu0 %v1357
      %v1746 = vpop.f32.mrb[0].mxu0
      %v1747 = vadd.f32 %v1642, %v1746
      %v1748 = vpop.f32.mrb[0].mxu0
      %1749 = vmatprep.mubr.f32.mxu0 %v1366
      %1750 = vmatmul.mubr.f32.gmra.mrb[0].mxu0 %v1358
      %v1751 = vpop.f32.mrb[0].mxu0
      %v1752 = vadd.f32 %v1647, %v1751
      %v1753 = vpop.f32.mrb[0].mxu0
      %1754 = vmatprep.mubr.f32.mxu0 %v1367
      %1755 = vmatmul.mubr.f32.gmra.mrb[0].mxu0 %v1359
      %v1756 = vpop.f32.mrb[0].mxu0
      %v1757 = vadd.f32 %v1652, %v1756
      %v1758 = vpop.f32.mrb[0].mxu0
      %1759 = vmatprep.mubr.f32.mxu0 %v1368
      %1760 = vmatmul.mubr.f32.gmra.mrb[0].mxu0 %v1360
      %v1761 = vpop.f32.mrb[0].mxu0
      %v1762 = vadd.f32 %v1657, %v1761
      %v1763 = vpop.f32.mrb[0].mxu0
      %1764 = vmatprep.mubr.f32.mxu0 %v1369
      %1765 = vmatmul.mubr.f32.gmra.mrb[0].mxu0 %v1361
      %v1766 = vpop.f32.mrb[0].mxu0
      %v1767 = vadd.f32 %v1662, %v1766
      %v1768 = vpop.f32.mrb[0].mxu0
      %1769 = vdwg.mxu0
      %1770 = vmatprep.subr.mxu0 0.0
      %1771 = vmatpush1.msra.mxu0 %v1475
      %1772 = vmatprep.subr.mxu0 0.0
      %1773 = vmatpush1.msra.mxu0 %v1476
      %1774 = vmatprep.subr.mxu0 0.0
      %1775 = vmatpush1.msra.mxu0 %v1477
      %1776 = vmatprep.subr.mxu0 0.0
      %1777 = vmatpush1.msra.mxu0 %v1478
      %1778 = vmatprep.subr.mxu0 0.0
      %1779 = vmatpush1.msra.mxu0 %v1479
      %1780 = vmatprep.subr.mxu0 0.0
      %1781 = vmatpush1.msra.mxu0 %v1480
      %1782 = vmatprep.subr.mxu0 0.0
      %1783 = vmatpush1.msra.mxu0 %v1481
      %1784 = vmatprep.subr.mxu0 0.0
      %1785 = vmatpush1.msra.mxu0 %v1482
      %1786 = vmatprep.subr.mxu0 0.0
      %1787 = vmatpush1.msra.mxu0 %v1483
      %1788 = vmatprep.subr.mxu0 0.0
      %1789 = vmatpush1.msra.mxu0 %v1484
      %1790 = vmatprep.subr.mxu0 0.0
      %1791 = vmatpush1.msra.mxu0 %v1485
      %1792 = vmatprep.subr.mxu0 0.0
      %1793 = vmatpush1.msra.mxu0 %v1486
      %1794 = vmatprep.subr.mxu0 0.0
      %1795 = vmatpush1.msra.mxu0 %v1487
      %1796 = vmatprep.subr.mxu0 0.0
      %1797 = vmatpush1.msra.mxu0 %v1488
      %1798 = vmatprep.subr.mxu0 0.0
      %1799 = vmatpush1.msra.mxu0 %v1489
      %1800 = vmatprep.subr.mxu0 0.0
      %1801 = vmatpush1.msra.mxu0 %v1490
      %1802 = vmatprep.subr.mxu0 0.0
      %1803 = vmatpush1.msra.mxu0 %v1491
      %1804 = vmatprep.subr.mxu0 0.0
      %1805 = vmatpush1.msra.mxu0 %v1492
      %1806 = vmatprep.subr.mxu0 0.0
      %1807 = vmatpush1.msra.mxu0 %v1493
      %1808 = vmatprep.subr.mxu0 0.0
      %1809 = vmatpush1.msra.mxu0 %v1494
      %1810 = vmatprep.subr.mxu0 0.0
      %1811 = vmatpush1.msra.mxu0 %v1495
      %1812 = vmatprep.subr.mxu0 0.0
      %1813 = vmatpush1.msra.mxu0 %v1496
      %1814 = vmatprep.subr.mxu0 0.0
      %1815 = vmatpush1.msra.mxu0 %v1497
      %1816 = vmatprep.subr.mxu0 0.0
      %1817 = vmatpush1.msra.mxu0 %v1498
      %1818 = vmatprep.subr.mxu0 0.0
      %1819 = vmatpush1.msra.mxu0 %v1499
      %1820 = vmatprep.subr.mxu0 0.0
      %1821 = vmatpush1.msra.mxu0 %v1500
      %1822 = vmatprep.subr.mxu0 0.0
      %1823 = vmatpush1.msra.mxu0 %v1501
      %1824 = vmatprep.subr.mxu0 0.0
      %1825 = vmatpush1.msra.mxu0 %v1502
      %1826 = vmatprep.subr.mxu0 0.0
      %1827 = vmatpush1.msra.mxu0 %v1503
      %1828 = vmatprep.subr.mxu0 0.0
      %1829 = vmatpush1.msra.mxu0 %v1504
      %1830 = vmatprep.subr.mxu0 0.0
      %1831 = vmatpush1.msra.mxu0 %v1505
      %1832 = vmatprep.subr.mxu0 0.0
      %1833 = vmatpush1.msra.mxu0 %v1506
      %1834 = vmatprep.mubr.f32.mxu0 %v1378
      %1835 = vmatmul.mubr.f32.gmra.mrb[0].mxu0 %v1370
      %v1836 = vpop.f32.mrb[0].mxu0
      %v1837 = vadd.f32 %v1732, %v1836
      %v1838 = vpop.f32.mrb[0].mxu0
      %1839 = vmatprep.mubr.f32.mxu0 %v1379
      %1840 = vmatmul.mubr.f32.gmra.mrb[0].mxu0 %v1371
      %v1841 = vpop.f32.mrb[0].mxu0
      %v1842 = vadd.f32 %v1737, %v1841
      %v1843 = vpop.f32.mrb[0].mxu0
      %1844 = vmatprep.mubr.f32.mxu0 %v1380
      %1845 = vmatmul.mubr.f32.gmra.mrb[0].mxu0 %v1372
      %v1846 = vpop.f32.mrb[0].mxu0
      %v1847 = vadd.f32 %v1742, %v1846
      %v1848 = vpop.f32.mrb[0].mxu0
      %1849 = vmatprep.mubr.f32.mxu0 %v1381
      %1850 = vmatmul.mubr.f32.gmra.mrb[0].mxu0 %v1373
      %v1851 = vpop.f32.mrb[0].mxu0
      %v1852 = vadd.f32 %v1747, %v1851
      %v1853 = vpop.f32.mrb[0].mxu0
      %1854 = vmatprep.mubr.f32.mxu0 %v1382
      %1855 = vmatmul.mubr.f32.gmra.mrb[0].mxu0 %v1374
      %v1856 = vpop.f32.mrb[0].mxu0
      %v1857 = vadd.f32 %v1752, %v1856
      %v1858 = vpop.f32.mrb[0].mxu0
      %1859 = vmatprep.mubr.f32.mxu0 %v1383
      %1860 = vmatmul.mubr.f32.gmra.mrb[0].mxu0 %v1375
      %v1861 = vpop.f32.mrb[0].mxu0
      %v1862 = vadd.f32 %v1757, %v1861
      %v1863 = vpop.f32.mrb[0].mxu0
      %1864 = vmatprep.mubr.f32.mxu0 %v1384
      %1865 = vmatmul.mubr.f32.gmra.mrb[0].mxu0 %v1376
      %v1866 = vpop.f32.mrb[0].mxu0
      %v1867 = vadd.f32 %v1762, %v1866
      %v1868 = vpop.f32.mrb[0].mxu0
      %1869 = vmatprep.mubr.f32.mxu0 %v1385
      %1870 = vmatmul.mubr.f32.gmra.mrb[0].mxu0 %v1377
      %v1871 = vpop.f32.mrb[0].mxu0
      %v1872 = vadd.f32 %v1767, %v1871
      %v1873 = vpop.f32.mrb[0].mxu0
      %1874 = vdwg.mxu0
      %1875 = vmatprep.subr.mxu0 0.0
      %1876 = vmatpush1.msra.mxu0 %v1507
      %1877 = vmatprep.subr.mxu0 0.0
      %1878 = vmatpush1.msra.mxu0 %v1508
      %1879 = vmatprep.subr.mxu0 0.0
      %1880 = vmatpush1.msra.mxu0 %v1509
      %1881 = vmatprep.subr.mxu0 0.0
      %1882 = vmatpush1.msra.mxu0 %v1510
      %1883 = vmatprep.subr.mxu0 0.0
      %1884 = vmatpush1.msra.mxu0 %v1511
      %1885 = vmatprep.subr.mxu0 0.0
      %1886 = vmatpush1.msra.mxu0 %v1512
      %1887 = vmatprep.subr.mxu0 0.0
      %1888 = vmatpush1.msra.mxu0 %v1513
      %1889 = vmatprep.subr.mxu0 0.0
      %1890 = vmatpush1.msra.mxu0 %v1514
      %1891 = vmatprep.subr.mxu0 0.0
      %1892 = vmatpush1.msra.mxu0 %v1515
      %1893 = vmatprep.subr.mxu0 0.0
      %1894 = vmatpush1.msra.mxu0 %v1516
      %1895 = vmatprep.subr.mxu0 0.0
      %1896 = vmatpush1.msra.mxu0 %v1517
      %1897 = vmatprep.subr.mxu0 0.0
      %1898 = vmatpush1.msra.mxu0 %v1518
      %1899 = vmatprep.subr.mxu0 0.0
      %1900 = vmatpush1.msra.mxu0 %v1519
      %1901 = vmatprep.subr.mxu0 0.0
      %1902 = vmatpush1.msra.mxu0 %v1520
      %1903 = vmatprep.subr.mxu0 0.0
      %1904 = vmatpush1.msra.mxu0 %v1521
      %1905 = vmatprep.subr.mxu0 0.0
      %1906 = vmatpush1.msra.mxu0 %v1522
      %1907 = vmatprep.subr.mxu0 0.0
      %1908 = vmatpush1.msra.mxu0 %v1523
      %1909 = vmatprep.subr.mxu0 0.0
      %1910 = vmatpush1.msra.mxu0 %v1524
      %1911 = vmatprep.subr.mxu0 0.0
      %1912 = vmatpush1.msra.mxu0 %v1525
      %1913 = vmatprep.subr.mxu0 0.0
      %1914 = vmatpush1.msra.mxu0 %v1526
      %1915 = vmatprep.subr.mxu0 0.0
      %1916 = vmatpush1.msra.mxu0 %v1527
      %1917 = vmatprep.subr.mxu0 0.0
      %1918 = vmatpush1.msra.mxu0 %v1528
      %1919 = vmatprep.subr.mxu0 0.0
      %1920 = vmatpush1.msra.mxu0 %v1529
      %1921 = vmatprep.subr.mxu0 0.0
      %1922 = vmatpush1.msra.mxu0 %v1530
      %1923 = vmatprep.subr.mxu0 0.0
      %1924 = vmatpush1.msra.mxu0 %v1531
      %1925 = vmatprep.subr.mxu0 0.0
      %1926 = vmatpush1.msra.mxu0 %v1532
      %1927 = vmatprep.subr.mxu0 0.0
      %1928 = vmatpush1.msra.mxu0 %v1533
      %1929 = vmatprep.subr.mxu0 0.0
      %1930 = vmatpush1.msra.mxu0 %v1534
      %1931 = vmatprep.subr.mxu0 0.0
      %1932 = vmatpush1.msra.mxu0 %v1535
      %1933 = vmatprep.subr.mxu0 0.0
      %1934 = vmatpush1.msra.mxu0 %v1536
      %1935 = vmatprep.subr.mxu0 0.0
      %1936 = vmatpush1.msra.mxu0 %v1537
      %1937 = vmatprep.subr.mxu0 0.0
      %1938 = vmatpush1.msra.mxu0 %v1538
      %1939 = vmatprep.mubr.f32.mxu0 %v1395
      %1940 = vmatmul.mubr.f32.gmra.mrb[0].mxu0 %v1387
      %v1941 = vpop.f32.mrb[0].mxu0
      %v1942 = vadd.f32 %v1837, %v1941
      %v1943 = vpop.f32.mrb[0].mxu0
      %1944 = vmatprep.mubr.f32.mxu0 %v1396
      %1945 = vmatmul.mubr.f32.gmra.mrb[0].mxu0 %v1388
      %v1946 = vpop.f32.mrb[0].mxu0
      %v1947 = vadd.f32 %v1842, %v1946
      %v1948 = vpop.f32.mrb[0].mxu0
      %1949 = vmatprep.mubr.f32.mxu0 %v1397
      %1950 = vmatmul.mubr.f32.gmra.mrb[0].mxu0 %v1389
      %v1951 = vpop.f32.mrb[0].mxu0
      %v1952 = vadd.f32 %v1847, %v1951
      %v1953 = vpop.f32.mrb[0].mxu0
      %1954 = vmatprep.mubr.f32.mxu0 %v1398
      %1955 = vmatmul.mubr.f32.gmra.mrb[0].mxu0 %v1390
      %v1956 = vpop.f32.mrb[0].mxu0
      %v1957 = vadd.f32 %v1852, %v1956
      %v1958 = vpop.f32.mrb[0].mxu0
      %1959 = vmatprep.mubr.f32.mxu0 %v1399
      %1960 = vmatmul.mubr.f32.gmra.mrb[0].mxu0 %v1391
      %v1961 = vpop.f32.mrb[0].mxu0
      %v1962 = vadd.f32 %v1857, %v1961
      %v1963 = vpop.f32.mrb[0].mxu0
      %1964 = vmatprep.mubr.f32.mxu0 %v1400
      %1965 = vmatmul.mubr.f32.gmra.mrb[0].mxu0 %v1392
      %v1966 = vpop.f32.mrb[0].mxu0
      %v1967 = vadd.f32 %v1862, %v1966
      %v1968 = vpop.f32.mrb[0].mxu0
      %1969 = vmatprep.mubr.f32.mxu0 %v1401
      %1970 = vmatmul.mubr.f32.gmra.mrb[0].mxu0 %v1393
      %v1971 = vpop.f32.mrb[0].mxu0
      %v1972 = vadd.f32 %v1867, %v1971
      %v1973 = vpop.f32.mrb[0].mxu0
      %1974 = vmatprep.mubr.f32.mxu0 %v1402
      %1975 = vmatmul.mubr.f32.gmra.mrb[0].mxu0 %v1394
      %v1976 = vpop.f32.mrb[0].mxu0
      %v1977 = vadd.f32 %v1872, %v1976
      %v1978 = vpop.f32.mrb[0].mxu0
      %1979 = vdwg.mxu0
      %1980 = vmatprep.subr.mxu0 0.0
      %1981 = vmatpush1.msra.mxu0 %v1539
      %1982 = vmatprep.subr.mxu0 0.0
      %1983 = vmatpush1.msra.mxu0 %v1540
      %1984 = vmatprep.subr.mxu0 0.0
      %1985 = vmatpush1.msra.mxu0 %v1541
      %1986 = vmatprep.subr.mxu0 0.0
      %1987 = vmatpush1.msra.mxu0 %v1542
      %1988 = vmatprep.subr.mxu0 0.0
      %1989 = vmatpush1.msra.mxu0 %v1543
      %1990 = vmatprep.subr.mxu0 0.0
      %1991 = vmatpush1.msra.mxu0 %v1544
      %1992 = vmatprep.subr.mxu0 0.0
      %1993 = vmatpush1.msra.mxu0 %v1545
      %1994 = vmatprep.subr.mxu0 0.0
      %1995 = vmatpush1.msra.mxu0 %v1546
      %1996 = vmatprep.subr.mxu0 0.0
      %1997 = vmatpush1.msra.mxu0 %v1547
      %1998 = vmatprep.subr.mxu0 0.0
      %1999 = vmatpush1.msra.mxu0 %v1548
      %2000 = vmatprep.subr.mxu0 0.0
      %2001 = vmatpush1.msra.mxu0 %v1549
      %2002 = vmatprep.subr.mxu0 0.0
      %2003 = vmatpush1.msra.mxu0 %v1550
      %2004 = vmatprep.subr.mxu0 0.0
      %2005 = vmatpush1.msra.mxu0 %v1551
      %2006 = vmatprep.subr.mxu0 0.0
      %2007 = vmatpush1.msra.mxu0 %v1552
      %2008 = vmatprep.subr.mxu0 0.0
      %2009 = vmatpush1.msra.mxu0 %v1553
      %2010 = vmatprep.subr.mxu0 0.0
      %2011 = vmatpush1.msra.mxu0 %v1554
      %2012 = vmatprep.subr.mxu0 0.0
      %2013 = vmatpush1.msra.mxu0 0.0
      %2014 = vmatprep.subr.mxu0 0.0
      %2015 = vmatpush1.msra.mxu0 0.0
      %2016 = vmatprep.subr.mxu0 0.0
      %2017 = vmatpush1.msra.mxu0 0.0
      %2018 = vmatprep.subr.mxu0 0.0
      %2019 = vmatpush1.msra.mxu0 0.0
      %2020 = vmatprep.subr.mxu0 0.0
      %2021 = vmatpush1.msra.mxu0 0.0
      %2022 = vmatprep.subr.mxu0 0.0
      %2023 = vmatpush1.msra.mxu0 0.0
      %2024 = vmatprep.subr.mxu0 0.0
      %2025 = vmatpush1.msra.mxu0 0.0
      %2026 = vmatprep.subr.mxu0 0.0
      %2027 = vmatpush1.msra.mxu0 0.0
      %2028 = vmatprep.subr.mxu0 0.0
      %2029 = vmatpush1.msra.mxu0 0.0
      %2030 = vmatprep.subr.mxu0 0.0
      %2031 = vmatpush1.msra.mxu0 0.0
      %2032 = vmatprep.subr.mxu0 0.0
      %2033 = vmatpush1.msra.mxu0 0.0
      %2034 = vmatprep.subr.mxu0 0.0
      %2035 = vmatpush1.msra.mxu0 0.0
      %2036 = vmatprep.subr.mxu0 0.0
      %2037 = vmatpush1.msra.mxu0 0.0
      %2038 = vmatprep.subr.mxu0 0.0
      %2039 = vmatpush1.msra.mxu0 0.0
      %2040 = vmatprep.subr.mxu0 0.0
      %2041 = vmatpush1.msra.mxu0 0.0
      %2042 = vmatprep.subr.mxu0 0.0
      %2043 = vmatpush1.msra.mxu0 0.0
      %2044 = vmatprep.mubr.f32.mxu0 0.0
      %2045 = vmatmul.mubr.f32.gmra.mrb[0].mxu0 %v1403
      %v2046 = vpop.f32.mrb[0].mxu0
      %v2047 = vadd.f32 %v1942, %v2046
      %v2048 = vpop.f32.mrb[0].mxu0
      %2049 = vmatprep.mubr.f32.mxu0 0.0
      %2050 = vmatmul.mubr.f32.gmra.mrb[0].mxu0 %v1404
      %v2051 = vpop.f32.mrb[0].mxu0
      %v2052 = vadd.f32 %v1947, %v2051
      %v2053 = vpop.f32.mrb[0].mxu0
      %2054 = vmatprep.mubr.f32.mxu0 0.0
      %2055 = vmatmul.mubr.f32.gmra.mrb[0].mxu0 %v1405
      %v2056 = vpop.f32.mrb[0].mxu0
      %v2057 = vadd.f32 %v1952, %v2056
      %v2058 = vpop.f32.mrb[0].mxu0
      %2059 = vmatprep.mubr.f32.mxu0 0.0
      %2060 = vmatmul.mubr.f32.gmra.mrb[0].mxu0 %v1406
      %v2061 = vpop.f32.mrb[0].mxu0
      %v2062 = vadd.f32 %v1957, %v2061
      %v2063 = vpop.f32.mrb[0].mxu0
      %2064 = vmatprep.mubr.f32.mxu0 0.0
      %2065 = vmatmul.mubr.f32.gmra.mrb[0].mxu0 %v1407
      %v2066 = vpop.f32.mrb[0].mxu0
      %v2067 = vadd.f32 %v1962, %v2066
      %v2068 = vpop.f32.mrb[0].mxu0
      %2069 = vmatprep.mubr.f32.mxu0 0.0
      %2070 = vmatmul.mubr.f32.gmra.mrb[0].mxu0 %v1408
      %v2071 = vpop.f32.mrb[0].mxu0
      %v2072 = vadd.f32 %v1967, %v2071
      %v2073 = vpop.f32.mrb[0].mxu0
      %2074 = vmatprep.mubr.f32.mxu0 0.0
      %2075 = vmatmul.mubr.f32.gmra.mrb[0].mxu0 %v1409
      %v2076 = vpop.f32.mrb[0].mxu0
      %v2077 = vadd.f32 %v1972, %v2076
      %v2078 = vpop.f32.mrb[0].mxu0
      %2079 = vmatprep.mubr.f32.mxu0 0.0
      %2080 = vmatmul.mubr.f32.gmra.mrb[0].mxu0 %v1410
      %v2081 = vpop.f32.mrb[0].mxu0
      %v2082 = vadd.f32 %v1977, %v2081
      %v2083 = vpop.f32.mrb[0].mxu0
      %2084 = vdwg.mxu0
      %v2085 = vadd.f32 %v2047, %v2052
      %v2086 = vadd.f32 %v2085, %v2057
      %v2087 = vadd.f32 %v2086, %v2062
      %v2088 = vadd.f32 %v2087, %v2067
      %v2089 = vadd.f32 %v2088, %v2072
      %v2090 = vadd.f32 %v2089, %v2077
      %v2091 = vadd.f32 %v2090, %v2082
      %v2092 = vrot.slane %v2091, 4
      %v2093 = vadd.f32 %v2091, %v2092
      %v2094 = vrot.slane %v2093, 2
      %v2095 = vadd.f32 %v2093, %v2094
      %v2096 = vrot.slane %v2095, 1
      %v2097 = vadd.f32 %v2095, %v2096
      %v2098 = vmul.f32 %v2047, %v2047
      %v2099 = vmul.f32 %v2052, %v2052
      %v2100 = vmul.f32 %v2057, %v2057
      %v2101 = vmul.f32 %v2062, %v2062
      %v2102 = vmul.f32 %v2067, %v2067
      %v2103 = vmul.f32 %v2072, %v2072
      %v2104 = vmul.f32 %v2077, %v2077
      %v2105 = vmul.f32 %v2082, %v2082
      %v2106 = vadd.f32 %v2098, %v2099
      %v2107 = vadd.f32 %v2106, %v2100
      %v2108 = vadd.f32 %v2107, %v2101
      %v2109 = vadd.f32 %v2108, %v2102
      %v2110 = vadd.f32 %v2109, %v2103
      %v2111 = vadd.f32 %v2110, %v2104
      %v2112 = vadd.f32 %v2111, %v2105
      %v2113 = vrot.slane %v2112, 4
      %v2114 = vadd.f32 %v2112, %v2113
      %v2115 = vrot.slane %v2114, 2
      %v2116 = vadd.f32 %v2114, %v2115
      %v2117 = vrot.slane %v2116, 1
      %v2118 = vadd.f32 %v2116, %v2117
      %v2119 = vsel %vm754, %v2097, %v2118
      %v2120 = vld [vmem:[%s2] sm:$0xff]
      %v2121 = vld [vmem:[%s2 + $0x8] sm:$0xff]
      %v2122 = vld [vmem:[%s2 + $0x10] sm:$0xff]
      %v2123 = vld [vmem:[%s2 + $0x18] sm:$0xff]
      %v2124 = vld [vmem:[%s2 + $0x20] sm:$0xff]
      %v2125 = vld [vmem:[%s2 + $0x28] sm:$0xff]
      %v2126 = vld [vmem:[%s2 + $0x30] sm:$0xff]
      %v2127 = vld [vmem:[%s2 + $0x38] sm:$0xff]
      %v2128 = vld [vmem:[%s2 + $0x40] sm:$0xff]
      %v2129 = vld [vmem:[%s2 + $0x48] sm:$0xff]
      %v2130 = vld [vmem:[%s2 + $0x50] sm:$0xff]
      %v2131 = vld [vmem:[%s2 + $0x58] sm:$0xff]
      %v2132 = vld [vmem:[%s2 + $0x60] sm:$0xff]
      %v2133 = vld [vmem:[%s2 + $0x68] sm:$0xff]
      %v2134 = vld [vmem:[%s2 + $0x70] sm:$0xff]
      %v2135 = vld [vmem:[%s2 + $0x78] sm:$0xff]
      %2136 = vmatprep.subr.mxu0 0.0
      %2137 = vmatpush1.msra.mxu0 %v2120
      %2138 = vmatprep.subr.mxu0 0.0
      %2139 = vmatpush1.msra.mxu0 %v2121
      %2140 = vmatprep.subr.mxu0 0.0
      %2141 = vmatpush1.msra.mxu0 %v2122
      %2142 = vmatprep.subr.mxu0 0.0
      %2143 = vmatpush1.msra.mxu0 %v2123
      %2144 = vmatprep.subr.mxu0 0.0
      %2145 = vmatpush1.msra.mxu0 %v2124
      %2146 = vmatprep.subr.mxu0 0.0
      %2147 = vmatpush1.msra.mxu0 %v2125
      %2148 = vmatprep.subr.mxu0 0.0
      %2149 = vmatpush1.msra.mxu0 %v2126
      %2150 = vmatprep.subr.mxu0 0.0
      %2151 = vmatpush1.msra.mxu0 %v2127
      %2152 = vmatprep.subr.mxu0 0.0
      %2153 = vmatpush1.msra.mxu0 %v2128
      %2154 = vmatprep.subr.mxu0 0.0
      %2155 = vmatpush1.msra.mxu0 %v2129
      %2156 = vmatprep.subr.mxu0 0.0
      %2157 = vmatpush1.msra.mxu0 %v2130
      %2158 = vmatprep.subr.mxu0 0.0
      %2159 = vmatpush1.msra.mxu0 %v2131
      %2160 = vmatprep.subr.mxu0 0.0
      %2161 = vmatpush1.msra.mxu0 %v2132
      %2162 = vmatprep.subr.mxu0 0.0
      %2163 = vmatpush1.msra.mxu0 %v2133
      %2164 = vmatprep.subr.mxu0 0.0
      %2165 = vmatpush1.msra.mxu0 %v2134
      %2166 = vmatprep.subr.mxu0 0.0
      %2167 = vmatpush1.msra.mxu0 %v2135
      %2168 = vmatprep.subr.mxu0 0.0
      %2169 = vmatpush1.msra.mxu0 0.0
      %2170 = vmatprep.subr.mxu0 0.0
      %2171 = vmatpush1.msra.mxu0 0.0
      %2172 = vmatprep.subr.mxu0 0.0
      %2173 = vmatpush1.msra.mxu0 0.0
      %2174 = vmatprep.subr.mxu0 0.0
      %2175 = vmatpush1.msra.mxu0 0.0
      %2176 = vmatprep.subr.mxu0 0.0
      %2177 = vmatpush1.msra.mxu0 0.0
      %2178 = vmatprep.subr.mxu0 0.0
      %2179 = vmatpush1.msra.mxu0 0.0
      %2180 = vmatprep.subr.mxu0 0.0
      %2181 = vmatpush1.msra.mxu0 0.0
      %2182 = vmatprep.subr.mxu0 0.0
      %2183 = vmatpush1.msra.mxu0 0.0
      %2184 = vmatprep.subr.mxu0 0.0
      %2185 = vmatpush1.msra.mxu0 0.0
      %2186 = vmatprep.subr.mxu0 0.0
      %2187 = vmatpush1.msra.mxu0 0.0
      %2188 = vmatprep.subr.mxu0 0.0
      %2189 = vmatpush1.msra.mxu0 0.0
      %2190 = vmatprep.subr.mxu0 0.0
      %2191 = vmatpush1.msra.mxu0 0.0
      %2192 = vmatprep.subr.mxu0 0.0
      %2193 = vmatpush1.msra.mxu0 0.0
      %2194 = vmatprep.subr.mxu0 0.0
      %2195 = vmatpush1.msra.mxu0 0.0
      %2196 = vmatprep.subr.mxu0 0.0
      %2197 = vmatpush1.msra.mxu0 0.0
      %2198 = vmatprep.subr.mxu0 0.0
      %2199 = vmatpush1.msra.mxu0 0.0
      %2200 = vmatprep.mubr.f32.mxu0 0.0
      %2201 = vmatmul.mubr.f32.gmra.mrb[0].mxu0 %v2119
      %v2202 = vpop.f32.mrb[0].mxu0
      %v2203 = vadd.f32 0.0, %v2202
      %v2204 = vpop.f32.mrb[0].mxu0
      %2205 = vdwg.mxu0
      %v2206 = vmul.f32 %v2203, %v842
      %v2207 = vmul.f32 %v2206, %v2206
      %v2209 = vrot.slane %v2207, 7
      %v2211 = vsub.f32 %v2206, %v2209
      %v2212 = vlaneseq
      %v2213 = vshrl.u32 %v2212, 7
      %v2214 = vsub.s32 0, %v2213
      %v2215 = vrot.slane %v2206, %v2214
      %v2216 = vsub.f32 %v2047, %v2215
      %v2217 = vsub.f32 %v2052, %v2215
      %v2218 = vsub.f32 %v2057, %v2215
      %v2219 = vsub.f32 %v2062, %v2215
      %v2220 = vsub.f32 %v2067, %v2215
      %v2221 = vsub.f32 %v2072, %v2215
      %v2222 = vsub.f32 %v2077, %v2215
      %v2223 = vsub.f32 %v2082, %v2215
      %v2224 = vadd.f32 %v2211, 1e-05
      %v2225 = vrsqrt.pop %v2224
      %v2226 = vlaneseq
      %v2227 = vshrl.u32 %v2226, 7
      %v2228 = vsub.s32 1, %v2227
      %v2229 = vrot.slane %v2225, %v2228
      %v2230 = vmul.f32 %v2216, %v2229
      %v2231 = vmul.f32 %v2217, %v2229
      %v2232 = vmul.f32 %v2218, %v2229
      %v2233 = vmul.f32 %v2219, %v2229
      %v2234 = vmul.f32 %v2220, %v2229
      %v2235 = vmul.f32 %v2221, %v2229
      %v2236 = vmul.f32 %v2222, %v2229
      %v2237 = vmul.f32 %v2223, %v2229
      %v2238 = vld [vmem:[%s3 + $0x4] sm:$0x1]
      %v2239 = vlaneseq
      %v2240 = vshrl.u32 %v2239, 7
      %v2241 = vsub.s32 0, %v2240
      %v2242 = vrot.slane %v2238, %v2241
      %v2243 = vmul.f32 %v2230, %v2242
      %v2244 = vmul.f32 %v2231, %v2242
      %v2245 = vmul.f32 %v2232, %v2242
      %v2246 = vmul.f32 %v2233, %v2242
      %v2247 = vmul.f32 %v2234, %v2242
      %v2248 = vmul.f32 %v2235, %v2242
      %v2249 = vmul.f32 %v2236, %v2242
      %v2250 = vmul.f32 %v2237, %v2242
      %v2251 = vld [vmem:[%s3 + $0x5] sm:$0x1]
      %v2252 = vlaneseq
      %v2253 = vshrl.u32 %v2252, 7
      %v2254 = vsub.s32 0, %v2253
      %v2255 = vrot.slane %v2251, %v2254
      %v2256 = vadd.f32 %v2243, %v2255
      %v2257 = vadd.f32 %v2244, %v2255
      %v2258 = vadd.f32 %v2245, %v2255
      %v2259 = vadd.f32 %v2246, %v2255
      %v2260 = vadd.f32 %v2247, %v2255
      %v2261 = vadd.f32 %v2248, %v2255
      %v2262 = vadd.f32 %v2249, %v2255
      %v2263 = vadd.f32 %v2250, %v2255
      %v2264 = vadd.f32 %v2256, %v2257
      %v2265 = vadd.f32 %v2264, %v2258
      %v2266 = vadd.f32 %v2265, %v2259
      %v2267 = vadd.f32 %v2266, %v2260
      %v2268 = vadd.f32 %v2267, %v2261
      %v2269 = vadd.f32 %v2268, %v2262
      %v2270 = vadd.f32 %v2269, %v2263
      %v2271 = vrot.slane %v2270, 4
      %v2272 = vadd.f32 %v2270, %v2271
      %v2273 = vrot.slane %v2272, 2
      %v2274 = vadd.f32 %v2272, %v2273
      %v2275 = vrot.slane %v2274, 1
      %v2276 = vadd.f32 %v2274, %v2275
      %v2277 = vmax.f32 %v2256, %v2260
      %v2278 = vmax.f32 %v2257, %v2261
      %v2279 = vmax.f32 %v2258, %v2262
      %v2280 = vmax.f32 %v2259, %v2263
      %v2281 = vmax.f32 %v2277, %v2278
      %v2282 = vmax.f32 %v2279, %v2280
      %v2283 = vmax.f32 %v2281, %v2282
      %v2284 = vrot.slane %v2283, 4
      %v2285 = vmax.f32 %v2283, %v2284
      %v2286 = vrot.slane %v2285, 2
      %v2287 = vmax.f32 %v2285, %v2286
      %v2288 = vrot.slane %v2287, 1
      %v2289 = vmax.f32 %v2287, %v2288
      %2291 = vrot.lane.b32.xlu0 %v2276, 96
      %v2292 = vpop.permute.xlu0 %2291
      %v2294 = vadd.f32 %v2276, %v2292
      %2295 = vrot.lane.b32.xlu0 %v2276, 64
      %v2296 = vpop.permute.xlu0 %2295
      %v2298 = vadd.f32 %v2294, %v2296
      %2299 = vrot.lane.b32.xlu0 %v2276, 32
      %v2300 = vpop.permute.xlu0 %2299
      %v2302 = vadd.f32 %v2298, %v2300
      %v2303 = vmul.f32 %v2302, 0.00390625
      %2305 = vrot.lane.b32.xlu0 %v2289, 96
      %v2306 = vpop.permute.xlu0 %2305
      %v2308 = vmax.f32 %v2289, %v2306
      %2310 = vrot.lane.b32.xlu0 %v2308, 64
      %v2311 = vpop.permute.xlu0 %2310
      %v2313 = vmax.f32 %v2308, %v2311
      %v2315 = vrot.slane %v2313, 7
      %v2317 = vsel %vm754, %v2303, %v2315
      %v2318 = vld [vmem:[%s8] sm:$0xff]
      %v2319 = vld [vmem:[%s8 + $0x8] sm:$0xff]
      %v2320 = vld [vmem:[%s8 + $0x10] sm:$0xff]
      %v2321 = vld [vmem:[%s8 + $0x18] sm:$0xff]
      %v2322 = vld [vmem:[%s9] sm:$0x1]
      %v2324 = vlaneseq
      %v2325 = vshrl.u32 %v2324, 7
      %v2326 = vsub.s32 0, %v2325
      %v2327 = vrot.slane %v2322, %v2326
      %v2330 = vsel %vm559, %v2317, 0
      %2332 = vmatprep.subr.mxu0 0.0
      %2333 = vmatpush1.msra.mxu0 %v2318
      %2334 = vmatprep.subr.mxu0 0.0
      %2335 = vmatpush1.msra.mxu0 %v2319
      %2336 = vmatprep.subr.mxu0 0.0
      %2337 = vmatpush1.msra.mxu0 %v2320
      %2338 = vmatprep.subr.mxu0 0.0
      %2339 = vmatpush1.msra.mxu0 %v2321
      %2340 = vmatprep.subr.mxu0 0.0
      %2341 = vmatpush1.msra.mxu0 0.0
      %2342 = vmatprep.subr.mxu0 0.0
      %2343 = vmatpush1.msra.mxu0 0.0
      %2344 = vmatprep.subr.mxu0 0.0
      %2345 = vmatpush1.msra.mxu0 0.0
      %2346 = vmatprep.subr.mxu0 0.0
      %2347 = vmatpush1.msra.mxu0 0.0
      %2348 = vmatprep.subr.mxu0 0.0
      %2349 = vmatpush1.msra.mxu0 0.0
      %2350 = vmatprep.subr.mxu0 0.0
      %2351 = vmatpush1.msra.mxu0 0.0
      %2352 = vmatprep.subr.mxu0 0.0
      %2353 = vmatpush1.msra.mxu0 0.0
      %2354 = vmatprep.subr.mxu0 0.0
      %2355 = vmatpush1.msra.mxu0 0.0
      %2356 = vmatprep.subr.mxu0 0.0
      %2357 = vmatpush1.msra.mxu0 0.0
      %2358 = vmatprep.subr.mxu0 0.0
      %2359 = vmatpush1.msra.mxu0 0.0
      %2360 = vmatprep.subr.mxu0 0.0
      %2361 = vmatpush1.msra.mxu0 0.0
      %2362 = vmatprep.subr.mxu0 0.0
      %2363 = vmatpush1.msra.mxu0 0.0
      %2364 = vmatprep.subr.mxu0 0.0
      %2365 = vmatpush1.msra.mxu0 0.0
      %2366 = vmatprep.subr.mxu0 0.0
      %2367 = vmatpush1.msra.mxu0 0.0
      %2368 = vmatprep.subr.mxu0 0.0
      %2369 = vmatpush1.msra.mxu0 0.0
      %2370 = vmatprep.subr.mxu0 0.0
      %2371 = vmatpush1.msra.mxu0 0.0
      %2372 = vmatprep.subr.mxu0 0.0
      %2373 = vmatpush1.msra.mxu0 0.0
      %2374 = vmatprep.subr.mxu0 0.0
      %2375 = vmatpush1.msra.mxu0 0.0
      %2376 = vmatprep.subr.mxu0 0.0
      %2377 = vmatpush1.msra.mxu0 0.0
      %2378 = vmatprep.subr.mxu0 0.0
      %2379 = vmatpush1.msra.mxu0 0.0
      %2380 = vmatprep.subr.mxu0 0.0
      %2381 = vmatpush1.msra.mxu0 0.0
      %2382 = vmatprep.subr.mxu0 0.0
      %2383 = vmatpush1.msra.mxu0 0.0
      %2384 = vmatprep.subr.mxu0 0.0
      %2385 = vmatpush1.msra.mxu0 0.0
      %2386 = vmatprep.subr.mxu0 0.0
      %2387 = vmatpush1.msra.mxu0 0.0
      %2388 = vmatprep.subr.mxu0 0.0
      %2389 = vmatpush1.msra.mxu0 0.0
      %2390 = vmatprep.subr.mxu0 0.0
      %2391 = vmatpush1.msra.mxu0 0.0
      %2392 = vmatprep.subr.mxu0 0.0
      %2393 = vmatpush1.msra.mxu0 0.0
      %2394 = vmatprep.subr.mxu0 0.0
      %2395 = vmatpush1.msra.mxu0 0.0
      %2396 = vmatprep.mubr.f32.mxu0 0.0
      %2397 = vmatmul.mubr.f32.gmra.mrb[0].mxu0 %v2330
      %v2398 = vpop.f32.mrb[0].mxu0
      %v2399 = vadd.f32 %v2327, %v2398
      %v2400 = vpop.f32.mrb[0].mxu0
      %2401 = vdwg.mxu0
      %v2402 = vmax.f32 %v2399, 0.0
      %v2403 = vld [vmem:[%s10] sm:$0xf]
      %v2404 = vld [vmem:[%s6 + $0x3] sm:$0x1]
      %v2405 = vlaneseq
      %v2406 = vshrl.u32 %v2405, 7
      %v2407 = vsub.s32 0, %v2406
      %v2408 = vrot.slane %v2404, %v2407
      %vm2409 = vcmask 31744
      %v2411 = vsel %vm2409, %v2402, 0
      %vm2413 = vcmask 1043456
      %v2415 = vsel %vm2413, %v2403, 0
      %2417 = vmatprep.subr.mxu0 0.0
      %2418 = vmatpush1.msra.mxu0 %v2415
      %2419 = vmatprep.subr.mxu0 0.0
      %2420 = vmatpush1.msra.mxu0 0.0
      %2421 = vmatprep.subr.mxu0 0.0
      %2422 = vmatpush1.msra.mxu0 0.0
      %2423 = vmatprep.subr.mxu0 0.0
      %2424 = vmatpush1.msra.mxu0 0.0
      %2425 = vmatprep.subr.mxu0 0.0
      %2426 = vmatpush1.msra.mxu0 0.0
      %2427 = vmatprep.subr.mxu0 0.0
      %2428 = vmatpush1.msra.mxu0 0.0
      %2429 = vmatprep.subr.mxu0 0.0
      %2430 = vmatpush1.msra.mxu0 0.0
      %2431 = vmatprep.subr.mxu0 0.0
      %2432 = vmatpush1.msra.mxu0 0.0
      %2433 = vmatprep.subr.mxu0 0.0
      %2434 = vmatpush1.msra.mxu0 0.0
      %2435 = vmatprep.subr.mxu0 0.0
      %2436 = vmatpush1.msra.mxu0 0.0
      %2437 = vmatprep.subr.mxu0 0.0
      %2438 = vmatpush1.msra.mxu0 0.0
      %2439 = vmatprep.subr.mxu0 0.0
      %2440 = vmatpush1.msra.mxu0 0.0
      %2441 = vmatprep.subr.mxu0 0.0
      %2442 = vmatpush1.msra.mxu0 0.0
      %2443 = vmatprep.subr.mxu0 0.0
      %2444 = vmatpush1.msra.mxu0 0.0
      %2445 = vmatprep.subr.mxu0 0.0
      %2446 = vmatpush1.msra.mxu0 0.0
      %2447 = vmatprep.subr.mxu0 0.0
      %2448 = vmatpush1.msra.mxu0 0.0
      %2449 = vmatprep.subr.mxu0 0.0
      %2450 = vmatpush1.msra.mxu0 0.0
      %2451 = vmatprep.subr.mxu0 0.0
      %2452 = vmatpush1.msra.mxu0 0.0
      %2453 = vmatprep.subr.mxu0 0.0
      %2454 = vmatpush1.msra.mxu0 0.0
      %2455 = vmatprep.subr.mxu0 0.0
      %2456 = vmatpush1.msra.mxu0 0.0
      %2457 = vmatprep.subr.mxu0 0.0
      %2458 = vmatpush1.msra.mxu0 0.0
      %2459 = vmatprep.subr.mxu0 0.0
      %2460 = vmatpush1.msra.mxu0 0.0
      %2461 = vmatprep.subr.mxu0 0.0
      %2462 = vmatpush1.msra.mxu0 0.0
      %2463 = vmatprep.subr.mxu0 0.0
      %2464 = vmatpush1.msra.mxu0 0.0
      %2465 = vmatprep.subr.mxu0 0.0
      %2466 = vmatpush1.msra.mxu0 0.0
      %2467 = vmatprep.subr.mxu0 0.0
      %2468 = vmatpush1.msra.mxu0 0.0
      %2469 = vmatprep.subr.mxu0 0.0
      %2470 = vmatpush1.msra.mxu0 0.0
      %2471 = vmatprep.subr.mxu0 0.0
      %2472 = vmatpush1.msra.mxu0 0.0
      %2473 = vmatprep.subr.mxu0 0.0
      %2474 = vmatpush1.msra.mxu0 0.0
      %2475 = vmatprep.subr.mxu0 0.0
      %2476 = vmatpush1.msra.mxu0 0.0
      %2477 = vmatprep.subr.mxu0 0.0
      %2478 = vmatpush1.msra.mxu0 0.0
      %2479 = vmatprep.subr.mxu0 0.0
      %2480 = vmatpush1.msra.mxu0 0.0
      %2481 = vmatprep.mubr.f32.mxu0 0.0
      %2482 = vmatmul.mubr.f32.gmra.mrb[0].mxu0 %v2411
      %v2483 = vpop.f32.mrb[0].mxu0
      %v2484 = vadd.f32 %v2408, %v2483
      %v2485 = vpop.f32.mrb[0].mxu0
      %2486 = vdwg.mxu0
      %v2488 = vrot.slane %v2484, 1
      %v2490 = vadd.f32 %v2484, %v2488
      %v2491 = vxor.u32 %v2490, 2147483648
      %v2492 = vmul.f32 %v2491, 1.442695
      %v2493 = vpow.pop %v2492
      %v2494 = vadd.f32 %v2493, 1.0
      %v2495 = vrcp.pop %v2494
      %v2496 = vmul.f32 1.0, %v2495
      %2498 = vrot.lane.b32.xlu0 %v2496, 32
      %v2499 = vpop.permute.xlu0 %2498
      %2501 = vrot.lane.b32.xlu0 %v2496, 64
      %v2502 = vpop.permute.xlu0 %2501
      %2504 = vrot.lane.b32.xlu0 %v2496, 96
      %v2505 = vpop.permute.xlu0 %2504
      %v2507 = vsel %vm559, %v2496, %v2499
      %v2508 = vsel %vm590, %v2507, %v2502
      %v2509 = vsel %vm1299, %v2508, %v2505
      %v2510 = vlaneseq
      %v2511 = vshrl.u32 %v2510, 7
      %v2512 = vsub.s32 0, %v2511
      %v2513 = vrot.slane %v2509, %v2512
      %v2514 = vmul.f32 %v2256, %v2513
      %v2515 = vmul.f32 %v2257, %v2513
      %v2516 = vmul.f32 %v2258, %v2513
      %v2517 = vmul.f32 %v2259, %v2513
      %v2518 = vmul.f32 %v2260, %v2513
      %v2519 = vmul.f32 %v2261, %v2513
      %v2520 = vmul.f32 %v2262, %v2513
      %v2521 = vmul.f32 %v2263, %v2513
      %v2522 = vsel %vm559, %v2514, 0.0
      %2523 = vadd.xlane.f32.xlu0 %v2522
      %v2524 = vpop.xlane.xlu0 %2523
      %v2525 = vsel %vm559, %v2515, 0.0
      %2526 = vadd.xlane.f32.xlu0 %v2525
      %v2527 = vpop.xlane.xlu0 %2526
      %v2528 = vsel %vm559, %v2516, 0.0
      %2529 = vadd.xlane.f32.xlu0 %v2528
      %v2530 = vpop.xlane.xlu0 %2529
      %v2531 = vsel %vm559, %v2517, 0.0
      %2532 = vadd.xlane.f32.xlu0 %v2531
      %v2533 = vpop.xlane.xlu0 %2532
      %v2534 = vsel %vm559, %v2518, 0.0
      %2535 = vadd.xlane.f32.xlu0 %v2534
      %v2536 = vpop.xlane.xlu0 %2535
      %v2537 = vsel %vm559, %v2519, 0.0
      %2538 = vadd.xlane.f32.xlu0 %v2537
      %v2539 = vpop.xlane.xlu0 %2538
      %v2540 = vsel %vm559, %v2520, 0.0
      %2541 = vadd.xlane.f32.xlu0 %v2540
      %v2542 = vpop.xlane.xlu0 %2541
      %v2543 = vsel %vm559, %v2521, 0.0
      %2544 = vadd.xlane.f32.xlu0 %v2543
      %v2545 = vpop.xlane.xlu0 %2544
      %v2546 = vrcp.pop 32.0
      %v2547 = vmul.f32 %v2524, %v2546
      %v2548 = vmul.f32 %v2527, %v2546
      %v2549 = vmul.f32 %v2530, %v2546
      %v2550 = vmul.f32 %v2533, %v2546
      %v2551 = vmul.f32 %v2536, %v2546
      %v2552 = vmul.f32 %v2539, %v2546
      %v2553 = vmul.f32 %v2542, %v2546
      %v2554 = vmul.f32 %v2545, %v2546
      %2563 = vrot.lane.b32.xlu0 %v2514, 96
      %v2564 = vpop.permute.xlu0 %2563
      %2565 = vrot.lane.b32.xlu0 %v2515, 96
      %v2566 = vpop.permute.xlu0 %2565
      %2567 = vrot.lane.b32.xlu0 %v2516, 96
      %v2568 = vpop.permute.xlu0 %2567
      %2569 = vrot.lane.b32.xlu0 %v2517, 96
      %v2570 = vpop.permute.xlu0 %2569
      %2571 = vrot.lane.b32.xlu0 %v2518, 96
      %v2572 = vpop.permute.xlu0 %2571
      %2573 = vrot.lane.b32.xlu0 %v2519, 96
      %v2574 = vpop.permute.xlu0 %2573
      %2575 = vrot.lane.b32.xlu0 %v2520, 96
      %v2576 = vpop.permute.xlu0 %2575
      %2577 = vrot.lane.b32.xlu0 %v2521, 96
      %v2578 = vpop.permute.xlu0 %2577
      %v2587 = vsel %vm559, %v2564, 0.0
      %2588 = vadd.xlane.f32.xlu0 %v2587
      %v2589 = vpop.xlane.xlu0 %2588
      %v2590 = vsel %vm559, %v2566, 0.0
      %2591 = vadd.xlane.f32.xlu0 %v2590
      %v2592 = vpop.xlane.xlu0 %2591
      %v2593 = vsel %vm559, %v2568, 0.0
      %2594 = vadd.xlane.f32.xlu0 %v2593
      %v2595 = vpop.xlane.xlu0 %2594
      %v2596 = vsel %vm559, %v2570, 0.0
      %2597 = vadd.xlane.f32.xlu0 %v2596
      %v2598 = vpop.xlane.xlu0 %2597
      %v2599 = vsel %vm559, %v2572, 0.0
      %2600 = vadd.xlane.f32.xlu0 %v2599
      %v2601 = vpop.xlane.xlu0 %2600
      %v2602 = vsel %vm559, %v2574, 0.0
      %2603 = vadd.xlane.f32.xlu0 %v2602
      %v2604 = vpop.xlane.xlu0 %2603
      %v2605 = vsel %vm559, %v2576, 0.0
      %2606 = vadd.xlane.f32.xlu0 %v2605
      %v2607 = vpop.xlane.xlu0 %2606
      %v2608 = vsel %vm559, %v2578, 0.0
      %2609 = vadd.xlane.f32.xlu0 %v2608
      %v2610 = vpop.xlane.xlu0 %2609
      %v2611 = vmul.f32 %v2589, %v2546
      %v2612 = vmul.f32 %v2592, %v2546
      %v2613 = vmul.f32 %v2595, %v2546
      %v2614 = vmul.f32 %v2598, %v2546
      %v2615 = vmul.f32 %v2601, %v2546
      %v2616 = vmul.f32 %v2604, %v2546
      %v2617 = vmul.f32 %v2607, %v2546
      %v2618 = vmul.f32 %v2610, %v2546
      %2619 = vrot.lane.b32.xlu0 %v2514, 64
      %v2620 = vpop.permute.xlu0 %2619
      %2621 = vrot.lane.b32.xlu0 %v2515, 64
      %v2622 = vpop.permute.xlu0 %2621
      %2623 = vrot.lane.b32.xlu0 %v2516, 64
      %v2624 = vpop.permute.xlu0 %2623
      %2625 = vrot.lane.b32.xlu0 %v2517, 64
      %v2626 = vpop.permute.xlu0 %2625
      %2627 = vrot.lane.b32.xlu0 %v2518, 64
      %v2628 = vpop.permute.xlu0 %2627
      %2629 = vrot.lane.b32.xlu0 %v2519, 64
      %v2630 = vpop.permute.xlu0 %2629
      %2631 = vrot.lane.b32.xlu0 %v2520, 64
      %v2632 = vpop.permute.xlu0 %2631
      %2633 = vrot.lane.b32.xlu0 %v2521, 64
      %v2634 = vpop.permute.xlu0 %2633
      %v2643 = vsel %vm559, %v2620, 0.0
      %2644 = vadd.xlane.f32.xlu0 %v2643
      %v2645 = vpop.xlane.xlu0 %2644
      %v2646 = vsel %vm559, %v2622, 0.0
      %2647 = vadd.xlane.f32.xlu0 %v2646
      %v2648 = vpop.xlane.xlu0 %2647
      %v2649 = vsel %vm559, %v2624, 0.0
      %2650 = vadd.xlane.f32.xlu0 %v2649
      %v2651 = vpop.xlane.xlu0 %2650
      %v2652 = vsel %vm559, %v2626, 0.0
      %2653 = vadd.xlane.f32.xlu0 %v2652
      %v2654 = vpop.xlane.xlu0 %2653
      %v2655 = vsel %vm559, %v2628, 0.0
      %2656 = vadd.xlane.f32.xlu0 %v2655
      %v2657 = vpop.xlane.xlu0 %2656
      %v2658 = vsel %vm559, %v2630, 0.0
      %2659 = vadd.xlane.f32.xlu0 %v2658
      %v2660 = vpop.xlane.xlu0 %2659
      %v2661 = vsel %vm559, %v2632, 0.0
      %2662 = vadd.xlane.f32.xlu0 %v2661
      %v2663 = vpop.xlane.xlu0 %2662
      %v2664 = vsel %vm559, %v2634, 0.0
      %2665 = vadd.xlane.f32.xlu0 %v2664
      %v2666 = vpop.xlane.xlu0 %2665
      %v2667 = vmul.f32 %v2645, %v2546
      %v2668 = vmul.f32 %v2648, %v2546
      %v2669 = vmul.f32 %v2651, %v2546
      %v2670 = vmul.f32 %v2654, %v2546
      %v2671 = vmul.f32 %v2657, %v2546
      %v2672 = vmul.f32 %v2660, %v2546
      %v2673 = vmul.f32 %v2663, %v2546
      %v2674 = vmul.f32 %v2666, %v2546
      %2675 = vrot.lane.b32.xlu0 %v2514, 32
      %v2676 = vpop.permute.xlu0 %2675
      %2677 = vrot.lane.b32.xlu0 %v2515, 32
      %v2678 = vpop.permute.xlu0 %2677
      %2679 = vrot.lane.b32.xlu0 %v2516, 32
      %v2680 = vpop.permute.xlu0 %2679
      %2681 = vrot.lane.b32.xlu0 %v2517, 32
      %v2682 = vpop.permute.xlu0 %2681
      %2683 = vrot.lane.b32.xlu0 %v2518, 32
      %v2684 = vpop.permute.xlu0 %2683
      %2685 = vrot.lane.b32.xlu0 %v2519, 32
      %v2686 = vpop.permute.xlu0 %2685
      %2687 = vrot.lane.b32.xlu0 %v2520, 32
      %v2688 = vpop.permute.xlu0 %2687
      %2689 = vrot.lane.b32.xlu0 %v2521, 32
      %v2690 = vpop.permute.xlu0 %2689
      %v2699 = vsel %vm559, %v2676, 0.0
      %2700 = vadd.xlane.f32.xlu0 %v2699
      %v2701 = vpop.xlane.xlu0 %2700
      %v2702 = vsel %vm559, %v2678, 0.0
      %2703 = vadd.xlane.f32.xlu0 %v2702
      %v2704 = vpop.xlane.xlu0 %2703
      %v2705 = vsel %vm559, %v2680, 0.0
      %2706 = vadd.xlane.f32.xlu0 %v2705
      %v2707 = vpop.xlane.xlu0 %2706
      %v2708 = vsel %vm559, %v2682, 0.0
      %2709 = vadd.xlane.f32.xlu0 %v2708
      %v2710 = vpop.xlane.xlu0 %2709
      %v2711 = vsel %vm559, %v2684, 0.0
      %2712 = vadd.xlane.f32.xlu0 %v2711
      %v2713 = vpop.xlane.xlu0 %2712
      %v2714 = vsel %vm559, %v2686, 0.0
      %2715 = vadd.xlane.f32.xlu0 %v2714
      %v2716 = vpop.xlane.xlu0 %2715
      %v2717 = vsel %vm559, %v2688, 0.0
      %2718 = vadd.xlane.f32.xlu0 %v2717
      %v2719 = vpop.xlane.xlu0 %2718
      %v2720 = vsel %vm559, %v2690, 0.0
      %2721 = vadd.xlane.f32.xlu0 %v2720
      %v2722 = vpop.xlane.xlu0 %2721
      %v2723 = vmul.f32 %v2701, %v2546
      %v2724 = vmul.f32 %v2704, %v2546
      %v2725 = vmul.f32 %v2707, %v2546
      %v2726 = vmul.f32 %v2710, %v2546
      %v2727 = vmul.f32 %v2713, %v2546
      %v2728 = vmul.f32 %v2716, %v2546
      %v2729 = vmul.f32 %v2719, %v2546
      %v2730 = vmul.f32 %v2722, %v2546
      %v2731 = vsel %vm559, %v2514, -inf
      %2732 = vmax.xlane.f32.xlu0 %v2731
      %v2733 = vpop.xlane.xlu0 %2732
      %v2734 = vsel %vm559, %v2515, -inf
      %2735 = vmax.xlane.f32.xlu0 %v2734
      %v2736 = vpop.xlane.xlu0 %2735
      %v2737 = vsel %vm559, %v2516, -inf
      %2738 = vmax.xlane.f32.xlu0 %v2737
      %v2739 = vpop.xlane.xlu0 %2738
      %v2740 = vsel %vm559, %v2517, -inf
      %2741 = vmax.xlane.f32.xlu0 %v2740
      %v2742 = vpop.xlane.xlu0 %2741
      %v2743 = vsel %vm559, %v2518, -inf
      %2744 = vmax.xlane.f32.xlu0 %v2743
      %v2745 = vpop.xlane.xlu0 %2744
      %v2746 = vsel %vm559, %v2519, -inf
      %2747 = vmax.xlane.f32.xlu0 %v2746
      %v2748 = vpop.xlane.xlu0 %2747
      %v2749 = vsel %vm559, %v2520, -inf
      %2750 = vmax.xlane.f32.xlu0 %v2749
      %v2751 = vpop.xlane.xlu0 %2750
      %v2752 = vsel %vm559, %v2521, -inf
      %2753 = vmax.xlane.f32.xlu0 %v2752
      %v2754 = vpop.xlane.xlu0 %2753
      %vm2755 = vcmask 523520
      %v2756 = vsel %vm2755, %v2514, -inf
      %2757 = vmax.xlane.f32.xlu0 %v2756
      %v2758 = vpop.xlane.xlu0 %2757
      %v2759 = vsel %vm2755, %v2515, -inf
      %2760 = vmax.xlane.f32.xlu0 %v2759
      %v2761 = vpop.xlane.xlu0 %2760
      %v2762 = vsel %vm2755, %v2516, -inf
      %2763 = vmax.xlane.f32.xlu0 %v2762
      %v2764 = vpop.xlane.xlu0 %2763
      %v2765 = vsel %vm2755, %v2517, -inf
      %2766 = vmax.xlane.f32.xlu0 %v2765
      %v2767 = vpop.xlane.xlu0 %2766
      %v2768 = vsel %vm2755, %v2518, -inf
      %2769 = vmax.xlane.f32.xlu0 %v2768
      %v2770 = vpop.xlane.xlu0 %2769
      %v2771 = vsel %vm2755, %v2519, -inf
      %2772 = vmax.xlane.f32.xlu0 %v2771
      %v2773 = vpop.xlane.xlu0 %2772
      %v2774 = vsel %vm2755, %v2520, -inf
      %2775 = vmax.xlane.f32.xlu0 %v2774
      %v2776 = vpop.xlane.xlu0 %2775
      %v2777 = vsel %vm2755, %v2521, -inf
      %2778 = vmax.xlane.f32.xlu0 %v2777
      %v2779 = vpop.xlane.xlu0 %2778
      %vm2780 = vcmask 785920
      %v2781 = vsel %vm2780, %v2514, -inf
      %2782 = vmax.xlane.f32.xlu0 %v2781
      %v2783 = vpop.xlane.xlu0 %2782
      %v2784 = vsel %vm2780, %v2515, -inf
      %2785 = vmax.xlane.f32.xlu0 %v2784
      %v2786 = vpop.xlane.xlu0 %2785
      %v2787 = vsel %vm2780, %v2516, -inf
      %2788 = vmax.xlane.f32.xlu0 %v2787
      %v2789 = vpop.xlane.xlu0 %2788
      %v2790 = vsel %vm2780, %v2517, -inf
      %2791 = vmax.xlane.f32.xlu0 %v2790
      %v2792 = vpop.xlane.xlu0 %2791
      %v2793 = vsel %vm2780, %v2518, -inf
      %2794 = vmax.xlane.f32.xlu0 %v2793
      %v2795 = vpop.xlane.xlu0 %2794
      %v2796 = vsel %vm2780, %v2519, -inf
      %2797 = vmax.xlane.f32.xlu0 %v2796
      %v2798 = vpop.xlane.xlu0 %2797
      %v2799 = vsel %vm2780, %v2520, -inf
      %2800 = vmax.xlane.f32.xlu0 %v2799
      %v2801 = vpop.xlane.xlu0 %2800
      %v2802 = vsel %vm2780, %v2521, -inf
      %2803 = vmax.xlane.f32.xlu0 %v2802
      %v2804 = vpop.xlane.xlu0 %2803
      %vm2805 = vcmask 1048320
      %v2806 = vsel %vm2805, %v2514, -inf
      %2807 = vmax.xlane.f32.xlu0 %v2806
      %v2808 = vpop.xlane.xlu0 %2807
      %v2809 = vsel %vm2805, %v2515, -inf
      %2810 = vmax.xlane.f32.xlu0 %v2809
      %v2811 = vpop.xlane.xlu0 %2810
      %v2812 = vsel %vm2805, %v2516, -inf
      %2813 = vmax.xlane.f32.xlu0 %v2812
      %v2814 = vpop.xlane.xlu0 %2813
      %v2815 = vsel %vm2805, %v2517, -inf
      %2816 = vmax.xlane.f32.xlu0 %v2815
      %v2817 = vpop.xlane.xlu0 %2816
      %v2818 = vsel %vm2805, %v2518, -inf
      %2819 = vmax.xlane.f32.xlu0 %v2818
      %v2820 = vpop.xlane.xlu0 %2819
      %v2821 = vsel %vm2805, %v2519, -inf
      %2822 = vmax.xlane.f32.xlu0 %v2821
      %v2823 = vpop.xlane.xlu0 %2822
      %v2824 = vsel %vm2805, %v2520, -inf
      %2825 = vmax.xlane.f32.xlu0 %v2824
      %v2826 = vpop.xlane.xlu0 %2825
      %v2827 = vsel %vm2805, %v2521, -inf
      %2828 = vmax.xlane.f32.xlu0 %v2827
      %v2829 = vpop.xlane.xlu0 %2828
      %vm2830 = vcmask 7168
      %v2831 = vsel %vm2830, %v2547, %v2611
      %v2832 = vsel %vm2830, %v2548, %v2612
      %v2833 = vsel %vm2830, %v2549, %v2613
      %v2834 = vsel %vm2830, %v2550, %v2614
      %v2835 = vsel %vm2830, %v2551, %v2615
      %v2836 = vsel %vm2830, %v2552, %v2616
      %v2837 = vsel %vm2830, %v2553, %v2617
      %v2838 = vsel %vm2830, %v2554, %v2618
      %vm2839 = vcmask 15360
      %v2840 = vsel %vm2839, %v2831, %v2667
      %v2841 = vsel %vm2839, %v2832, %v2668
      %v2842 = vsel %vm2839, %v2833, %v2669
      %v2843 = vsel %vm2839, %v2834, %v2670
      %v2844 = vsel %vm2839, %v2835, %v2671
      %v2845 = vsel %vm2839, %v2836, %v2672
      %v2846 = vsel %vm2839, %v2837, %v2673
      %v2847 = vsel %vm2839, %v2838, %v2674
      %vm2848 = vcmask 23552
      %v2849 = vsel %vm2848, %v2840, %v2723
      %v2850 = vsel %vm2848, %v2841, %v2724
      %v2851 = vsel %vm2848, %v2842, %v2725
      %v2852 = vsel %vm2848, %v2843, %v2726
      %v2853 = vsel %vm2848, %v2844, %v2727
      %v2854 = vsel %vm2848, %v2845, %v2728
      %v2855 = vsel %vm2848, %v2846, %v2729
      %v2856 = vsel %vm2848, %v2847, %v2730
      %v2857 = vsel %vm2409, %v2849, %v2733
      %v2858 = vsel %vm2409, %v2850, %v2736
      %v2859 = vsel %vm2409, %v2851, %v2739
      %v2860 = vsel %vm2409, %v2852, %v2742
      %v2861 = vsel %vm2409, %v2853, %v2745
      %v2862 = vsel %vm2409, %v2854, %v2748
      %v2863 = vsel %vm2409, %v2855, %v2751
      %v2864 = vsel %vm2409, %v2856, %v2754
      %vm2865 = vcmask 39936
      %v2866 = vsel %vm2865, %v2857, %v2758
      %v2867 = vsel %vm2865, %v2858, %v2761
      %v2868 = vsel %vm2865, %v2859, %v2764
      %v2869 = vsel %vm2865, %v2860, %v2767
      %v2870 = vsel %vm2865, %v2861, %v2770
      %v2871 = vsel %vm2865, %v2862, %v2773
      %v2872 = vsel %vm2865, %v2863, %v2776
      %v2873 = vsel %vm2865, %v2864, %v2779
      %vm2874 = vcmask 48128
      %v2875 = vsel %vm2874, %v2866, %v2783
      %v2876 = vsel %vm2874, %v2867, %v2786
      %v2877 = vsel %vm2874, %v2868, %v2789
      %v2878 = vsel %vm2874, %v2869, %v2792
      %v2879 = vsel %vm2874, %v2870, %v2795
      %v2880 = vsel %vm2874, %v2871, %v2798
      %v2881 = vsel %vm2874, %v2872, %v2801
      %v2882 = vsel %vm2874, %v2873, %v2804
      %vm2883 = vcmask 56320
      %v2884 = vsel %vm2883, %v2875, %v2808
      %v2885 = vsel %vm2883, %v2876, %v2811
      %v2886 = vsel %vm2883, %v2877, %v2814
      %v2887 = vsel %vm2883, %v2878, %v2817
      %v2888 = vsel %vm2883, %v2879, %v2820
      %v2889 = vsel %vm2883, %v2880, %v2823
      %v2890 = vsel %vm2883, %v2881, %v2826
      %v2891 = vsel %vm2883, %v2882, %v2829
      %vm2892 = vcmask 64512
      %2893 = vst.msk [vmem:[#allocation3] sm:$0xff] %vm2892, 0.0
      %vm2894 = vcmask 60416
      %2895 = vst.msk [vmem:[#allocation3 + $0x8] sm:$0xf] %vm2894, 0.0
      %2896 = vst.msk [vmem:[#allocation3 + $0x10] sm:$0xff] %vm2892, 0.0
      %2897 = vst.msk [vmem:[#allocation3 + $0x18] sm:$0xf] %vm2894, 0.0
      %s2898 = scalar_lea.vmem [#allocation3], 160
      %2899 = vst.msk [vmem:[%s2898] sm:$0xff] %vm2892, 0.0
      %2900 = vst.msk [vmem:[%s2898 + $0x8] sm:$0xf] %vm2894, 0.0
      %2901 = vst.msk [vmem:[%s2898 + $0x10] sm:$0xff] %vm2892, 0.0
      %2902 = vst.msk [vmem:[%s2898 + $0x18] sm:$0xf] %vm2894, 0.0
      %s2903 = scalar_lea.vmem [#allocation3], 32
      %vm2904 = vcmask 58368
      %2905 = vst.msk [vmem:[%s2903] sm:$0x3] %vm2904, 0.0
      %2906 = vst.msk [vmem:[%s2903 + $0x10] sm:$0x3] %vm2904, 0.0
      %2907 = vst.msk [vmem:[%s2903 + $0x20] sm:$0x3] %vm2904, 0.0
      %2908 = vst.msk [vmem:[%s2903 + $0x30] sm:$0x3] %vm2904, 0.0
      %2909 = vst.msk [vmem:[%s2903 + $0x40] sm:$0x3] %vm2904, 0.0
      %2910 = vst.msk [vmem:[%s2903 + $0x50] sm:$0x3] %vm2904, 0.0
      %2911 = vst.msk [vmem:[%s2903 + $0x60] sm:$0x3] %vm2904, 0.0
      %2912 = vst.msk [vmem:[%s2903 + $0x70] sm:$0x3] %vm2904, 0.0
      %2913 = vst.msk [vmem:[%s2903 + $0xa] sm:$0x3] %vm2904, 0.0
      %2914 = vst.msk [vmem:[%s2903 + $0x1a] sm:$0x3] %vm2904, 0.0
      %2915 = vst.msk [vmem:[%s2903 + $0x2a] sm:$0x3] %vm2904, 0.0
      %2916 = vst.msk [vmem:[%s2903 + $0x3a] sm:$0x3] %vm2904, 0.0
      %2917 = vst.msk [vmem:[%s2903 + $0x4a] sm:$0x3] %vm2904, 0.0
      %2918 = vst.msk [vmem:[%s2903 + $0x5a] sm:$0x3] %vm2904, 0.0
      %2919 = vst.msk [vmem:[%s2903 + $0x6a] sm:$0x3] %vm2904, 0.0
      %2920 = vst.msk [vmem:[%s2903 + $0x7a] sm:$0x3] %vm2904, 0.0
      %2921 = vst.msk [vmem:[%s2903 + $0x2] sm:$0xff] %vm2892, %v2884
      %2922 = vst.msk [vmem:[%s2903 + $0x12] sm:$0xff] %vm2892, %v2885
      %2923 = vst.msk [vmem:[%s2903 + $0x22] sm:$0xff] %vm2892, %v2886
      %2924 = vst.msk [vmem:[%s2903 + $0x32] sm:$0xff] %vm2892, %v2887
      %2925 = vst.msk [vmem:[%s2903 + $0x42] sm:$0xff] %vm2892, %v2888
      %2926 = vst.msk [vmem:[%s2903 + $0x52] sm:$0xff] %vm2892, %v2889
      %2927 = vst.msk [vmem:[%s2903 + $0x62] sm:$0xff] %vm2892, %v2890
      %2928 = vst.msk [vmem:[%s2903 + $0x72] sm:$0xff] %vm2892, %v2891
      %v2929 = vld [vmem:[#allocation3] sm:$0xff]
      %v2930 = vld [vmem:[#allocation3 + $0x10] sm:$0xff]
      %v2931 = vld [vmem:[#allocation3 + $0x20] sm:$0xff]
      %v2932 = vld [vmem:[#allocation3 + $0x30] sm:$0xff]
      %v2933 = vld [vmem:[#allocation3 + $0x40] sm:$0xff]
      %v2934 = vld [vmem:[#allocation3 + $0x50] sm:$0xff]
      %v2935 = vld [vmem:[#allocation3 + $0x60] sm:$0xff]
      %v2936 = vld [vmem:[#allocation3 + $0x70] sm:$0xff]
      %v2937 = vld [vmem:[#allocation3 + $0x1] sm:$0xff]
      %v2938 = vld [vmem:[#allocation3 + $0x11] sm:$0xff]
      %v2939 = vld [vmem:[#allocation3 + $0x21] sm:$0xff]
      %v2940 = vld [vmem:[#allocation3 + $0x31] sm:$0xff]
      %v2941 = vld [vmem:[#allocation3 + $0x41] sm:$0xff]
      %v2942 = vld [vmem:[#allocation3 + $0x51] sm:$0xff]
      %v2943 = vld [vmem:[#allocation3 + $0x61] sm:$0xff]
      %v2944 = vld [vmem:[#allocation3 + $0x71] sm:$0xff]
      %v2945 = vld [vmem:[#allocation3 + $0x2] sm:$0xff]
      %v2946 = vld [vmem:[#allocation3 + $0x12] sm:$0xff]
      %v2947 = vld [vmem:[#allocation3 + $0x22] sm:$0xff]
      %v2948 = vld [vmem:[#allocation3 + $0x32] sm:$0xff]
      %v2949 = vld [vmem:[#allocation3 + $0x42] sm:$0xff]
      %v2950 = vld [vmem:[#allocation3 + $0x52] sm:$0xff]
      %v2951 = vld [vmem:[#allocation3 + $0x62] sm:$0xff]
      %v2952 = vld [vmem:[#allocation3 + $0x72] sm:$0xff]
      %v2953 = vld [vmem:[#allocation3 + $0x3] sm:$0xff]
      %v2954 = vld [vmem:[#allocation3 + $0x13] sm:$0xff]
      %v2955 = vld [vmem:[#allocation3 + $0x23] sm:$0xff]
      %v2956 = vld [vmem:[#allocation3 + $0x33] sm:$0xff]
      %v2957 = vld [vmem:[#allocation3 + $0x43] sm:$0xff]
      %v2958 = vld [vmem:[#allocation3 + $0x53] sm:$0xff]
      %v2959 = vld [vmem:[#allocation3 + $0x63] sm:$0xff]
      %v2960 = vld [vmem:[#allocation3 + $0x73] sm:$0xff]
      %v2961 = vld [vmem:[#allocation3 + $0x4] sm:$0xff]
      %v2962 = vld [vmem:[#allocation3 + $0x14] sm:$0xff]
      %v2963 = vld [vmem:[#allocation3 + $0x24] sm:$0xff]
      %v2964 = vld [vmem:[#allocation3 + $0x34] sm:$0xff]
      %v2965 = vld [vmem:[#allocation3 + $0x44] sm:$0xff]
      %v2966 = vld [vmem:[#allocation3 + $0x54] sm:$0xff]
      %v2967 = vld [vmem:[#allocation3 + $0x64] sm:$0xff]
      %v2968 = vld [vmem:[#allocation3 + $0x74] sm:$0xff]
      %s2969 = scalar_lea.vmem [#allocation3], 16
      %v2970 = vld [vmem:[%s2969] sm:$0xff]
      %v2971 = vld [vmem:[%s2969 + $0x10] sm:$0xff]
      %v2972 = vld [vmem:[%s2969 + $0x20] sm:$0xff]
      %v2973 = vld [vmem:[%s2969 + $0x30] sm:$0xff]
      %v2974 = vld [vmem:[%s2969 + $0x40] sm:$0xff]
      %v2975 = vld [vmem:[%s2969 + $0x50] sm:$0xff]
      %v2976 = vld [vmem:[%s2969 + $0x60] sm:$0xff]
      %v2977 = vld [vmem:[%s2969 + $0x70] sm:$0xff]
      %v2978 = vld [vmem:[%s2969 + $0x1] sm:$0xff]
      %v2979 = vld [vmem:[%s2969 + $0x11] sm:$0xff]
      %v2980 = vld [vmem:[%s2969 + $0x21] sm:$0xff]
      %v2981 = vld [vmem:[%s2969 + $0x31] sm:$0xff]
      %v2982 = vld [vmem:[%s2969 + $0x41] sm:$0xff]
      %v2983 = vld [vmem:[%s2969 + $0x51] sm:$0xff]
      %v2984 = vld [vmem:[%s2969 + $0x61] sm:$0xff]
      %v2985 = vld [vmem:[%s2969 + $0x71] sm:$0xff]
      %v2986 = vld [vmem:[%s2969 + $0x2] sm:$0xff]
      %v2987 = vld [vmem:[%s2969 + $0x12] sm:$0xff]
      %v2988 = vld [vmem:[%s2969 + $0x22] sm:$0xff]
      %v2989 = vld [vmem:[%s2969 + $0x32] sm:$0xff]
      %v2990 = vld [vmem:[%s2969 + $0x42] sm:$0xff]
      %v2991 = vld [vmem:[%s2969 + $0x52] sm:$0xff]
      %v2992 = vld [vmem:[%s2969 + $0x62] sm:$0xff]
      %v2993 = vld [vmem:[%s2969 + $0x72] sm:$0xff]
      %v2994 = vld [vmem:[%s2969 + $0x3] sm:$0xff]
      %v2995 = vld [vmem:[%s2969 + $0x13] sm:$0xff]
      %v2996 = vld [vmem:[%s2969 + $0x23] sm:$0xff]
      %v2997 = vld [vmem:[%s2969 + $0x33] sm:$0xff]
      %v2998 = vld [vmem:[%s2969 + $0x43] sm:$0xff]
      %v2999 = vld [vmem:[%s2969 + $0x53] sm:$0xff]
      %v3000 = vld [vmem:[%s2969 + $0x63] sm:$0xff]
      %v3001 = vld [vmem:[%s2969 + $0x73] sm:$0xff]
      %v3002 = vld [vmem:[%s2969 + $0x4] sm:$0xff]
      %v3003 = vld [vmem:[%s2969 + $0x14] sm:$0xff]
      %v3004 = vld [vmem:[%s2969 + $0x24] sm:$0xff]
      %v3005 = vld [vmem:[%s2969 + $0x34] sm:$0xff]
      %v3006 = vld [vmem:[%s2969 + $0x44] sm:$0xff]
      %v3007 = vld [vmem:[%s2969 + $0x54] sm:$0xff]
      %v3008 = vld [vmem:[%s2969 + $0x64] sm:$0xff]
      %v3009 = vld [vmem:[%s2969 + $0x74] sm:$0xff]
      %v3010 = vld [vmem:[%s2903] sm:$0xff]
      %v3011 = vld [vmem:[%s2903 + $0x10] sm:$0xff]
      %v3012 = vld [vmem:[%s2903 + $0x20] sm:$0xff]
      %v3013 = vld [vmem:[%s2903 + $0x30] sm:$0xff]
      %v3014 = vld [vmem:[%s2903 + $0x40] sm:$0xff]
      %v3015 = vld [vmem:[%s2903 + $0x50] sm:$0xff]
      %v3016 = vld [vmem:[%s2903 + $0x60] sm:$0xff]
      %v3017 = vld [vmem:[%s2903 + $0x70] sm:$0xff]
      %v3018 = vld [vmem:[%s2903 + $0x1] sm:$0xff]
      %v3019 = vld [vmem:[%s2903 + $0x11] sm:$0xff]
      %v3020 = vld [vmem:[%s2903 + $0x21] sm:$0xff]
      %v3021 = vld [vmem:[%s2903 + $0x31] sm:$0xff]
      %v3022 = vld [vmem:[%s2903 + $0x41] sm:$0xff]
      %v3023 = vld [vmem:[%s2903 + $0x51] sm:$0xff]
      %v3024 = vld [vmem:[%s2903 + $0x61] sm:$0xff]
      %v3025 = vld [vmem:[%s2903 + $0x71] sm:$0xff]
      %v3026 = vld [vmem:[%s2903 + $0x2] sm:$0xff]
      %v3027 = vld [vmem:[%s2903 + $0x12] sm:$0xff]
      %v3028 = vld [vmem:[%s2903 + $0x22] sm:$0xff]
      %v3029 = vld [vmem:[%s2903 + $0x32] sm:$0xff]
      %v3030 = vld [vmem:[%s2903 + $0x42] sm:$0xff]
      %v3031 = vld [vmem:[%s2903 + $0x52] sm:$0xff]
      %v3032 = vld [vmem:[%s2903 + $0x62] sm:$0xff]
      %v3033 = vld [vmem:[%s2903 + $0x72] sm:$0xff]
      %v3034 = vld [vmem:[%s2903 + $0x3] sm:$0xff]
      %v3035 = vld [vmem:[%s2903 + $0x13] sm:$0xff]
      %v3036 = vld [vmem:[%s2903 + $0x23] sm:$0xff]
      %v3037 = vld [vmem:[%s2903 + $0x33] sm:$0xff]
      %v3038 = vld [vmem:[%s2903 + $0x43] sm:$0xff]
      %v3039 = vld [vmem:[%s2903 + $0x53] sm:$0xff]
      %v3040 = vld [vmem:[%s2903 + $0x63] sm:$0xff]
      %v3041 = vld [vmem:[%s2903 + $0x73] sm:$0xff]
      %v3042 = vld [vmem:[%s2903 + $0x4] sm:$0xff]
      %v3043 = vld [vmem:[%s2903 + $0x14] sm:$0xff]
      %v3044 = vld [vmem:[%s2903 + $0x24] sm:$0xff]
      %v3045 = vld [vmem:[%s2903 + $0x34] sm:$0xff]
      %v3046 = vld [vmem:[%s2903 + $0x44] sm:$0xff]
      %v3047 = vld [vmem:[%s2903 + $0x54] sm:$0xff]
      %v3048 = vld [vmem:[%s2903 + $0x64] sm:$0xff]
      %v3049 = vld [vmem:[%s2903 + $0x74] sm:$0xff]
      %s3050 = scalar_lea.vmem [#allocation3], 48
      %v3051 = vld [vmem:[%s3050] sm:$0xff]
      %v3052 = vld [vmem:[%s3050 + $0x10] sm:$0xff]
      %v3053 = vld [vmem:[%s3050 + $0x20] sm:$0xff]
      %v3054 = vld [vmem:[%s3050 + $0x30] sm:$0xff]
      %v3055 = vld [vmem:[%s3050 + $0x40] sm:$0xff]
      %v3056 = vld [vmem:[%s3050 + $0x50] sm:$0xff]
      %v3057 = vld [vmem:[%s3050 + $0x60] sm:$0xff]
      %v3058 = vld [vmem:[%s3050 + $0x70] sm:$0xff]
      %v3059 = vld [vmem:[%s3050 + $0x1] sm:$0xff]
      %v3060 = vld [vmem:[%s3050 + $0x11] sm:$0xff]
      %v3061 = vld [vmem:[%s3050 + $0x21] sm:$0xff]
      %v3062 = vld [vmem:[%s3050 + $0x31] sm:$0xff]
      %v3063 = vld [vmem:[%s3050 + $0x41] sm:$0xff]
      %v3064 = vld [vmem:[%s3050 + $0x51] sm:$0xff]
      %v3065 = vld [vmem:[%s3050 + $0x61] sm:$0xff]
      %v3066 = vld [vmem:[%s3050 + $0x71] sm:$0xff]
      %v3067 = vld [vmem:[%s3050 + $0x2] sm:$0xff]
      %v3068 = vld [vmem:[%s3050 + $0x12] sm:$0xff]
      %v3069 = vld [vmem:[%s3050 + $0x22] sm:$0xff]
      %v3070 = vld [vmem:[%s3050 + $0x32] sm:$0xff]
      %v3071 = vld [vmem:[%s3050 + $0x42] sm:$0xff]
      %v3072 = vld [vmem:[%s3050 + $0x52] sm:$0xff]
      %v3073 = vld [vmem:[%s3050 + $0x62] sm:$0xff]
      %v3074 = vld [vmem:[%s3050 + $0x72] sm:$0xff]
      %v3075 = vld [vmem:[%s3050 + $0x3] sm:$0xff]
      %v3076 = vld [vmem:[%s3050 + $0x13] sm:$0xff]
      %v3077 = vld [vmem:[%s3050 + $0x23] sm:$0xff]
      %v3078 = vld [vmem:[%s3050 + $0x33] sm:$0xff]
      %v3079 = vld [vmem:[%s3050 + $0x43] sm:$0xff]
      %v3080 = vld [vmem:[%s3050 + $0x53] sm:$0xff]
      %v3081 = vld [vmem:[%s3050 + $0x63] sm:$0xff]
      %v3082 = vld [vmem:[%s3050 + $0x73] sm:$0xff]
      %v3083 = vld [vmem:[%s3050 + $0x4] sm:$0xff]
      %v3084 = vld [vmem:[%s3050 + $0x14] sm:$0xff]
      %v3085 = vld [vmem:[%s3050 + $0x24] sm:$0xff]
      %v3086 = vld [vmem:[%s3050 + $0x34] sm:$0xff]
      %v3087 = vld [vmem:[%s3050 + $0x44] sm:$0xff]
      %v3088 = vld [vmem:[%s3050 + $0x54] sm:$0xff]
      %v3089 = vld [vmem:[%s3050 + $0x64] sm:$0xff]
      %v3090 = vld [vmem:[%s3050 + $0x74] sm:$0xff]
      %s3091 = scalar_lea.vmem [#allocation3], 64
      %v3092 = vld [vmem:[%s3091] sm:$0xff]
      %v3093 = vld [vmem:[%s3091 + $0x10] sm:$0xff]
      %v3094 = vld [vmem:[%s3091 + $0x20] sm:$0xff]
      %v3095 = vld [vmem:[%s3091 + $0x30] sm:$0xff]
      %v3096 = vld [vmem:[%s3091 + $0x40] sm:$0xff]
      %v3097 = vld [vmem:[%s3091 + $0x50] sm:$0xff]
      %v3098 = vld [vmem:[%s3091 + $0x60] sm:$0xff]
      %v3099 = vld [vmem:[%s3091 + $0x70] sm:$0xff]
      %v3100 = vld [vmem:[%s3091 + $0x1] sm:$0xff]
      %v3101 = vld [vmem:[%s3091 + $0x11] sm:$0xff]
      %v3102 = vld [vmem:[%s3091 + $0x21] sm:$0xff]
      %v3103 = vld [vmem:[%s3091 + $0x31] sm:$0xff]
      %v3104 = vld [vmem:[%s3091 + $0x41] sm:$0xff]
      %v3105 = vld [vmem:[%s3091 + $0x51] sm:$0xff]
      %v3106 = vld [vmem:[%s3091 + $0x61] sm:$0xff]
      %v3107 = vld [vmem:[%s3091 + $0x71] sm:$0xff]
      %v3108 = vld [vmem:[%s3091 + $0x2] sm:$0xff]
      %v3109 = vld [vmem:[%s3091 + $0x12] sm:$0xff]
      %v3110 = vld [vmem:[%s3091 + $0x22] sm:$0xff]
      %v3111 = vld [vmem:[%s3091 + $0x32] sm:$0xff]
      %v3112 = vld [vmem:[%s3091 + $0x42] sm:$0xff]
      %v3113 = vld [vmem:[%s3091 + $0x52] sm:$0xff]
      %v3114 = vld [vmem:[%s3091 + $0x62] sm:$0xff]
      %v3115 = vld [vmem:[%s3091 + $0x72] sm:$0xff]
      %v3116 = vld [vmem:[%s3091 + $0x3] sm:$0xff]
      %v3117 = vld [vmem:[%s3091 + $0x13] sm:$0xff]
      %v3118 = vld [vmem:[%s3091 + $0x23] sm:$0xff]
      %v3119 = vld [vmem:[%s3091 + $0x33] sm:$0xff]
      %v3120 = vld [vmem:[%s3091 + $0x43] sm:$0xff]
      %v3121 = vld [vmem:[%s3091 + $0x53] sm:$0xff]
      %v3122 = vld [vmem:[%s3091 + $0x63] sm:$0xff]
      %v3123 = vld [vmem:[%s3091 + $0x73] sm:$0xff]
      %v3124 = vld [vmem:[%s3091 + $0x4] sm:$0xff]
      %v3125 = vld [vmem:[%s3091 + $0x14] sm:$0xff]
      %v3126 = vld [vmem:[%s3091 + $0x24] sm:$0xff]
      %v3127 = vld [vmem:[%s3091 + $0x34] sm:$0xff]
      %v3128 = vld [vmem:[%s3091 + $0x44] sm:$0xff]
      %v3129 = vld [vmem:[%s3091 + $0x54] sm:$0xff]
      %v3130 = vld [vmem:[%s3091 + $0x64] sm:$0xff]
      %v3131 = vld [vmem:[%s3091 + $0x74] sm:$0xff]
      %3140 = vrot.lane.b32.xlu0 %v2937, 8
      %v3141 = vpop.permute.xlu0 %3140
      %3142 = vrot.lane.b32.xlu0 %v2938, 8
      %v3143 = vpop.permute.xlu0 %3142
      %3144 = vrot.lane.b32.xlu0 %v2939, 8
      %v3145 = vpop.permute.xlu0 %3144
      %3146 = vrot.lane.b32.xlu0 %v2940, 8
      %v3147 = vpop.permute.xlu0 %3146
      %3148 = vrot.lane.b32.xlu0 %v2941, 8
      %v3149 = vpop.permute.xlu0 %3148
      %3150 = vrot.lane.b32.xlu0 %v2942, 8
      %v3151 = vpop.permute.xlu0 %3150
      %3152 = vrot.lane.b32.xlu0 %v2943, 8
      %v3153 = vpop.permute.xlu0 %3152
      %3154 = vrot.lane.b32.xlu0 %v2944, 8
      %v3155 = vpop.permute.xlu0 %3154
      %3172 = vrot.lane.b32.xlu0 %v2945, 16
      %v3173 = vpop.permute.xlu0 %3172
      %3174 = vrot.lane.b32.xlu0 %v2946, 16
      %v3175 = vpop.permute.xlu0 %3174
      %3176 = vrot.lane.b32.xlu0 %v2947, 16
      %v3177 = vpop.permute.xlu0 %3176
      %3178 = vrot.lane.b32.xlu0 %v2948, 16
      %v3179 = vpop.permute.xlu0 %3178
      %3180 = vrot.lane.b32.xlu0 %v2949, 16
      %v3181 = vpop.permute.xlu0 %3180
      %3182 = vrot.lane.b32.xlu0 %v2950, 16
      %v3183 = vpop.permute.xlu0 %3182
      %3184 = vrot.lane.b32.xlu0 %v2951, 16
      %v3185 = vpop.permute.xlu0 %3184
      %3186 = vrot.lane.b32.xlu0 %v2952, 16
      %v3187 = vpop.permute.xlu0 %3186
      %3204 = vrot.lane.b32.xlu0 %v2953, 24
      %v3205 = vpop.permute.xlu0 %3204
      %3206 = vrot.lane.b32.xlu0 %v2954, 24
      %v3207 = vpop.permute.xlu0 %3206
      %3208 = vrot.lane.b32.xlu0 %v2955, 24
      %v3209 = vpop.permute.xlu0 %3208
      %3210 = vrot.lane.b32.xlu0 %v2956, 24
      %v3211 = vpop.permute.xlu0 %3210
      %3212 = vrot.lane.b32.xlu0 %v2957, 24
      %v3213 = vpop.permute.xlu0 %3212
      %3214 = vrot.lane.b32.xlu0 %v2958, 24
      %v3215 = vpop.permute.xlu0 %3214
      %3216 = vrot.lane.b32.xlu0 %v2959, 24
      %v3217 = vpop.permute.xlu0 %3216
      %3218 = vrot.lane.b32.xlu0 %v2960, 24
      %v3219 = vpop.permute.xlu0 %3218
      %3236 = vrot.lane.b32.xlu0 %v2961, 32
      %v3237 = vpop.permute.xlu0 %3236
      %3238 = vrot.lane.b32.xlu0 %v2962, 32
      %v3239 = vpop.permute.xlu0 %3238
      %3240 = vrot.lane.b32.xlu0 %v2963, 32
      %v3241 = vpop.permute.xlu0 %3240
      %3242 = vrot.lane.b32.xlu0 %v2964, 32
      %v3243 = vpop.permute.xlu0 %3242
      %3244 = vrot.lane.b32.xlu0 %v2965, 32
      %v3245 = vpop.permute.xlu0 %3244
      %3246 = vrot.lane.b32.xlu0 %v2966, 32
      %v3247 = vpop.permute.xlu0 %3246
      %3248 = vrot.lane.b32.xlu0 %v2967, 32
      %v3249 = vpop.permute.xlu0 %3248
      %3250 = vrot.lane.b32.xlu0 %v2968, 32
      %v3251 = vpop.permute.xlu0 %3250
      %3268 = vrot.lane.b32.xlu0 %v2970, 40
      %v3269 = vpop.permute.xlu0 %3268
      %3270 = vrot.lane.b32.xlu0 %v2971, 40
      %v3271 = vpop.permute.xlu0 %3270
      %3272 = vrot.lane.b32.xlu0 %v2972, 40
      %v3273 = vpop.permute.xlu0 %3272
      %3274 = vrot.lane.b32.xlu0 %v2973, 40
      %v3275 = vpop.permute.xlu0 %3274
      %3276 = vrot.lane.b32.xlu0 %v2974, 40
      %v3277 = vpop.permute.xlu0 %3276
      %3278 = vrot.lane.b32.xlu0 %v2975, 40
      %v3279 = vpop.permute.xlu0 %3278
      %3280 = vrot.lane.b32.xlu0 %v2976, 40
      %v3281 = vpop.permute.xlu0 %3280
      %3282 = vrot.lane.b32.xlu0 %v2977, 40
      %v3283 = vpop.permute.xlu0 %3282
      %3300 = vrot.lane.b32.xlu0 %v2978, 48
      %v3301 = vpop.permute.xlu0 %3300
      %3302 = vrot.lane.b32.xlu0 %v2979, 48
      %v3303 = vpop.permute.xlu0 %3302
      %3304 = vrot.lane.b32.xlu0 %v2980, 48
      %v3305 = vpop.permute.xlu0 %3304
      %3306 = vrot.lane.b32.xlu0 %v2981, 48
      %v3307 = vpop.permute.xlu0 %3306
      %3308 = vrot.lane.b32.xlu0 %v2982, 48
      %v3309 = vpop.permute.xlu0 %3308
      %3310 = vrot.lane.b32.xlu0 %v2983, 48
      %v3311 = vpop.permute.xlu0 %3310
      %3312 = vrot.lane.b32.xlu0 %v2984, 48
      %v3313 = vpop.permute.xlu0 %3312
      %3314 = vrot.lane.b32.xlu0 %v2985, 48
      %v3315 = vpop.permute.xlu0 %3314
      %3332 = vrot.lane.b32.xlu0 %v2986, 56
      %v3333 = vpop.permute.xlu0 %3332
      %3334 = vrot.lane.b32.xlu0 %v2987, 56
      %v3335 = vpop.permute.xlu0 %3334
      %3336 = vrot.lane.b32.xlu0 %v2988, 56
      %v3337 = vpop.permute.xlu0 %3336
      %3338 = vrot.lane.b32.xlu0 %v2989, 56
      %v3339 = vpop.permute.xlu0 %3338
      %3340 = vrot.lane.b32.xlu0 %v2990, 56
      %v3341 = vpop.permute.xlu0 %3340
      %3342 = vrot.lane.b32.xlu0 %v2991, 56
      %v3343 = vpop.permute.xlu0 %3342
      %3344 = vrot.lane.b32.xlu0 %v2992, 56
      %v3345 = vpop.permute.xlu0 %3344
      %3346 = vrot.lane.b32.xlu0 %v2993, 56
      %v3347 = vpop.permute.xlu0 %3346
      %3364 = vrot.lane.b32.xlu0 %v2994, 64
      %v3365 = vpop.permute.xlu0 %3364
      %3366 = vrot.lane.b32.xlu0 %v2995, 64
      %v3367 = vpop.permute.xlu0 %3366
      %3368 = vrot.lane.b32.xlu0 %v2996, 64
      %v3369 = vpop.permute.xlu0 %3368
      %3370 = vrot.lane.b32.xlu0 %v2997, 64
      %v3371 = vpop.permute.xlu0 %3370
      %3372 = vrot.lane.b32.xlu0 %v2998, 64
      %v3373 = vpop.permute.xlu0 %3372
      %3374 = vrot.lane.b32.xlu0 %v2999, 64
      %v3375 = vpop.permute.xlu0 %3374
      %3376 = vrot.lane.b32.xlu0 %v3000, 64
      %v3377 = vpop.permute.xlu0 %3376
      %3378 = vrot.lane.b32.xlu0 %v3001, 64
      %v3379 = vpop.permute.xlu0 %3378
      %3396 = vrot.lane.b32.xlu0 %v3002, 72
      %v3397 = vpop.permute.xlu0 %3396
      %3398 = vrot.lane.b32.xlu0 %v3003, 72
      %v3399 = vpop.permute.xlu0 %3398
      %3400 = vrot.lane.b32.xlu0 %v3004, 72
      %v3401 = vpop.permute.xlu0 %3400
      %3402 = vrot.lane.b32.xlu0 %v3005, 72
      %v3403 = vpop.permute.xlu0 %3402
      %3404 = vrot.lane.b32.xlu0 %v3006, 72
      %v3405 = vpop.permute.xlu0 %3404
      %3406 = vrot.lane.b32.xlu0 %v3007, 72
      %v3407 = vpop.permute.xlu0 %3406
      %3408 = vrot.lane.b32.xlu0 %v3008, 72
      %v3409 = vpop.permute.xlu0 %3408
      %3410 = vrot.lane.b32.xlu0 %v3009, 72
      %v3411 = vpop.permute.xlu0 %3410
      %3428 = vrot.lane.b32.xlu0 %v3010, 80
      %v3429 = vpop.permute.xlu0 %3428
      %3430 = vrot.lane.b32.xlu0 %v3011, 80
      %v3431 = vpop.permute.xlu0 %3430
      %3432 = vrot.lane.b32.xlu0 %v3012, 80
      %v3433 = vpop.permute.xlu0 %3432
      %3434 = vrot.lane.b32.xlu0 %v3013, 80
      %v3435 = vpop.permute.xlu0 %3434
      %3436 = vrot.lane.b32.xlu0 %v3014, 80
      %v3437 = vpop.permute.xlu0 %3436
      %3438 = vrot.lane.b32.xlu0 %v3015, 80
      %v3439 = vpop.permute.xlu0 %3438
      %3440 = vrot.lane.b32.xlu0 %v3016, 80
      %v3441 = vpop.permute.xlu0 %3440
      %3442 = vrot.lane.b32.xlu0 %v3017, 80
      %v3443 = vpop.permute.xlu0 %3442
      %3460 = vrot.lane.b32.xlu0 %v3018, 88
      %v3461 = vpop.permute.xlu0 %3460
      %3462 = vrot.lane.b32.xlu0 %v3019, 88
      %v3463 = vpop.permute.xlu0 %3462
      %3464 = vrot.lane.b32.xlu0 %v3020, 88
      %v3465 = vpop.permute.xlu0 %3464
      %3466 = vrot.lane.b32.xlu0 %v3021, 88
      %v3467 = vpop.permute.xlu0 %3466
      %3468 = vrot.lane.b32.xlu0 %v3022, 88
      %v3469 = vpop.permute.xlu0 %3468
      %3470 = vrot.lane.b32.xlu0 %v3023, 88
      %v3471 = vpop.permute.xlu0 %3470
      %3472 = vrot.lane.b32.xlu0 %v3024, 88
      %v3473 = vpop.permute.xlu0 %3472
      %3474 = vrot.lane.b32.xlu0 %v3025, 88
      %v3475 = vpop.permute.xlu0 %3474
      %3492 = vrot.lane.b32.xlu0 %v3026, 96
      %v3493 = vpop.permute.xlu0 %3492
      %3494 = vrot.lane.b32.xlu0 %v3027, 96
      %v3495 = vpop.permute.xlu0 %3494
      %3496 = vrot.lane.b32.xlu0 %v3028, 96
      %v3497 = vpop.permute.xlu0 %3496
      %3498 = vrot.lane.b32.xlu0 %v3029, 96
      %v3499 = vpop.permute.xlu0 %3498
      %3500 = vrot.lane.b32.xlu0 %v3030, 96
      %v3501 = vpop.permute.xlu0 %3500
      %3502 = vrot.lane.b32.xlu0 %v3031, 96
      %v3503 = vpop.permute.xlu0 %3502
      %3504 = vrot.lane.b32.xlu0 %v3032, 96
      %v3505 = vpop.permute.xlu0 %3504
      %3506 = vrot.lane.b32.xlu0 %v3033, 96
      %v3507 = vpop.permute.xlu0 %3506
      %3524 = vrot.lane.b32.xlu0 %v3034, 104
      %v3525 = vpop.permute.xlu0 %3524
      %3526 = vrot.lane.b32.xlu0 %v3035, 104
      %v3527 = vpop.permute.xlu0 %3526
      %3528 = vrot.lane.b32.xlu0 %v3036, 104
      %v3529 = vpop.permute.xlu0 %3528
      %3530 = vrot.lane.b32.xlu0 %v3037, 104
      %v3531 = vpop.permute.xlu0 %3530
      %3532 = vrot.lane.b32.xlu0 %v3038, 104
      %v3533 = vpop.permute.xlu0 %3532
      %3534 = vrot.lane.b32.xlu0 %v3039, 104
      %v3535 = vpop.permute.xlu0 %3534
      %3536 = vrot.lane.b32.xlu0 %v3040, 104
      %v3537 = vpop.permute.xlu0 %3536
      %3538 = vrot.lane.b32.xlu0 %v3041, 104
      %v3539 = vpop.permute.xlu0 %3538
      %3556 = vrot.lane.b32.xlu0 %v3042, 112
      %v3557 = vpop.permute.xlu0 %3556
      %3558 = vrot.lane.b32.xlu0 %v3043, 112
      %v3559 = vpop.permute.xlu0 %3558
      %3560 = vrot.lane.b32.xlu0 %v3044, 112
      %v3561 = vpop.permute.xlu0 %3560
      %3562 = vrot.lane.b32.xlu0 %v3045, 112
      %v3563 = vpop.permute.xlu0 %3562
      %3564 = vrot.lane.b32.xlu0 %v3046, 112
      %v3565 = vpop.permute.xlu0 %3564
      %3566 = vrot.lane.b32.xlu0 %v3047, 112
      %v3567 = vpop.permute.xlu0 %3566
      %3568 = vrot.lane.b32.xlu0 %v3048, 112
      %v3569 = vpop.permute.xlu0 %3568
      %3570 = vrot.lane.b32.xlu0 %v3049, 112
      %v3571 = vpop.permute.xlu0 %3570
      %3588 = vrot.lane.b32.xlu0 %v3051, 120
      %v3589 = vpop.permute.xlu0 %3588
      %3590 = vrot.lane.b32.xlu0 %v3052, 120
      %v3591 = vpop.permute.xlu0 %3590
      %3592 = vrot.lane.b32.xlu0 %v3053, 120
      %v3593 = vpop.permute.xlu0 %3592
      %3594 = vrot.lane.b32.xlu0 %v3054, 120
      %v3595 = vpop.permute.xlu0 %3594
      %3596 = vrot.lane.b32.xlu0 %v3055, 120
      %v3597 = vpop.permute.xlu0 %3596
      %3598 = vrot.lane.b32.xlu0 %v3056, 120
      %v3599 = vpop.permute.xlu0 %3598
      %3600 = vrot.lane.b32.xlu0 %v3057, 120
      %v3601 = vpop.permute.xlu0 %3600
      %3602 = vrot.lane.b32.xlu0 %v3058, 120
      %v3603 = vpop.permute.xlu0 %3602
      %v3612 = vsel %vm2892, %v2929, %v3141
      %v3613 = vsel %vm2892, %v2930, %v3143
      %v3614 = vsel %vm2892, %v2931, %v3145
      %v3615 = vsel %vm2892, %v2932, %v3147
      %v3616 = vsel %vm2892, %v2933, %v3149
      %v3617 = vsel %vm2892, %v2934, %v3151
      %v3618 = vsel %vm2892, %v2935, %v3153
      %v3619 = vsel %vm2892, %v2936, %v3155
      %v3620 = vsel %vm550, %v3612, %v3173
      %v3621 = vsel %vm550, %v3613, %v3175
      %v3622 = vsel %vm550, %v3614, %v3177
      %v3623 = vsel %vm550, %v3615, %v3179
      %v3624 = vsel %vm550, %v3616, %v3181
      %v3625 = vsel %vm550, %v3617, %v3183
      %v3626 = vsel %vm550, %v3618, %v3185
      %v3627 = vsel %vm550, %v3619, %v3187
      %vm3628 = vcmask 195584
      %v3629 = vsel %vm3628, %v3620, %v3205
      %v3630 = vsel %vm3628, %v3621, %v3207
      %v3631 = vsel %vm3628, %v3622, %v3209
      %v3632 = vsel %vm3628, %v3623, %v3211
      %v3633 = vsel %vm3628, %v3624, %v3213
      %v3634 = vsel %vm3628, %v3625, %v3215
      %v3635 = vsel %vm3628, %v3626, %v3217
      %v3636 = vsel %vm3628, %v3627, %v3219
      %v3637 = vsel %vm559, %v3629, %v3237
      %v3638 = vsel %vm559, %v3630, %v3239
      %v3639 = vsel %vm559, %v3631, %v3241
      %v3640 = vsel %vm559, %v3632, %v3243
      %v3641 = vsel %vm559, %v3633, %v3245
      %v3642 = vsel %vm559, %v3634, %v3247
      %v3643 = vsel %vm559, %v3635, %v3249
      %v3644 = vsel %vm559, %v3636, %v3251
      %vm3645 = vcmask 326656
      %v3646 = vsel %vm3645, %v3637, %v3269
      %v3647 = vsel %vm3645, %v3638, %v3271
      %v3648 = vsel %vm3645, %v3639, %v3273
      %v3649 = vsel %vm3645, %v3640, %v3275
      %v3650 = vsel %vm3645, %v3641, %v3277
      %v3651 = vsel %vm3645, %v3642, %v3279
      %v3652 = vsel %vm3645, %v3643, %v3281
      %v3653 = vsel %vm3645, %v3644, %v3283
      %v3654 = vsel %vm568, %v3646, %v3301
      %v3655 = vsel %vm568, %v3647, %v3303
      %v3656 = vsel %vm568, %v3648, %v3305
      %v3657 = vsel %vm568, %v3649, %v3307
      %v3658 = vsel %vm568, %v3650, %v3309
      %v3659 = vsel %vm568, %v3651, %v3311
      %v3660 = vsel %vm568, %v3652, %v3313
      %v3661 = vsel %vm568, %v3653, %v3315
      %vm3662 = vcmask 457728
      %v3663 = vsel %vm3662, %v3654, %v3333
      %v3664 = vsel %vm3662, %v3655, %v3335
      %v3665 = vsel %vm3662, %v3656, %v3337
      %v3666 = vsel %vm3662, %v3657, %v3339
      %v3667 = vsel %vm3662, %v3658, %v3341
      %v3668 = vsel %vm3662, %v3659, %v3343
      %v3669 = vsel %vm3662, %v3660, %v3345
      %v3670 = vsel %vm3662, %v3661, %v3347
      %v3671 = vsel %vm590, %v3663, %v3365
      %v3672 = vsel %vm590, %v3664, %v3367
      %v3673 = vsel %vm590, %v3665, %v3369
      %v3674 = vsel %vm590, %v3666, %v3371
      %v3675 = vsel %vm590, %v3667, %v3373
      %v3676 = vsel %vm590, %v3668, %v3375
      %v3677 = vsel %vm590, %v3669, %v3377
      %v3678 = vsel %vm590, %v3670, %v3379
      %vm3679 = vcmask 588800
      %v3680 = vsel %vm3679, %v3671, %v3397
      %v3681 = vsel %vm3679, %v3672, %v3399
      %v3682 = vsel %vm3679, %v3673, %v3401
      %v3683 = vsel %vm3679, %v3674, %v3403
      %v3684 = vsel %vm3679, %v3675, %v3405
      %v3685 = vsel %vm3679, %v3676, %v3407
      %v3686 = vsel %vm3679, %v3677, %v3409
      %v3687 = vsel %vm3679, %v3678, %v3411
      %vm3688 = vcmask 654336
      %v3689 = vsel %vm3688, %v3680, %v3429
      %v3690 = vsel %vm3688, %v3681, %v3431
      %v3691 = vsel %vm3688, %v3682, %v3433
      %v3692 = vsel %vm3688, %v3683, %v3435
      %v3693 = vsel %vm3688, %v3684, %v3437
      %v3694 = vsel %vm3688, %v3685, %v3439
      %v3695 = vsel %vm3688, %v3686, %v3441
      %v3696 = vsel %vm3688, %v3687, %v3443
      %vm3697 = vcmask 719872
      %v3698 = vsel %vm3697, %v3689, %v3461
      %v3699 = vsel %vm3697, %v3690, %v3463
      %v3700 = vsel %vm3697, %v3691, %v3465
      %v3701 = vsel %vm3697, %v3692, %v3467
      %v3702 = vsel %vm3697, %v3693, %v3469
      %v3703 = vsel %vm3697, %v3694, %v3471
      %v3704 = vsel %vm3697, %v3695, %v3473
      %v3705 = vsel %vm3697, %v3696, %v3475
      %v3706 = vsel %vm1299, %v3698, %v3493
      %v3707 = vsel %vm1299, %v3699, %v3495
      %v3708 = vsel %vm1299, %v3700, %v3497
      %v3709 = vsel %vm1299, %v3701, %v3499
      %v3710 = vsel %vm1299, %v3702, %v3501
      %v3711 = vsel %vm1299, %v3703, %v3503
      %v3712 = vsel %vm1299, %v3704, %v3505
      %v3713 = vsel %vm1299, %v3705, %v3507
      %vm3714 = vcmask 850944
      %v3715 = vsel %vm3714, %v3706, %v3525
      %v3716 = vsel %vm3714, %v3707, %v3527
      %v3717 = vsel %vm3714, %v3708, %v3529
      %v3718 = vsel %vm3714, %v3709, %v3531
      %v3719 = vsel %vm3714, %v3710, %v3533
      %v3720 = vsel %vm3714, %v3711, %v3535
      %v3721 = vsel %vm3714, %v3712, %v3537
      %v3722 = vsel %vm3714, %v3713, %v3539
      %vm3723 = vcmask 916480
      %v3724 = vsel %vm3723, %v3715, %v3557
      %v3725 = vsel %vm3723, %v3716, %v3559
      %v3726 = vsel %vm3723, %v3717, %v3561
      %v3727 = vsel %vm3723, %v3718, %v3563
      %v3728 = vsel %vm3723, %v3719, %v3565
      %v3729 = vsel %vm3723, %v3720, %v3567
      %v3730 = vsel %vm3723, %v3721, %v3569
      %v3731 = vsel %vm3723, %v3722, %v3571
      %vm3732 = vcmask 982016
      %v3733 = vsel %vm3732, %v3724, %v3589
      %v3734 = vsel %vm3732, %v3725, %v3591
      %v3735 = vsel %vm3732, %v3726, %v3593
      %v3736 = vsel %vm3732, %v3727, %v3595
      %v3737 = vsel %vm3732, %v3728, %v3597
      %v3738 = vsel %vm3732, %v3729, %v3599
      %v3739 = vsel %vm3732, %v3730, %v3601
      %v3740 = vsel %vm3732, %v3731, %v3603
      %3749 = vrot.lane.b32.xlu0 %v3067, 8
      %v3750 = vpop.permute.xlu0 %3749
      %3751 = vrot.lane.b32.xlu0 %v3068, 8
      %v3752 = vpop.permute.xlu0 %3751
      %3753 = vrot.lane.b32.xlu0 %v3069, 8
      %v3754 = vpop.permute.xlu0 %3753
      %3755 = vrot.lane.b32.xlu0 %v3070, 8
      %v3756 = vpop.permute.xlu0 %3755
      %3757 = vrot.lane.b32.xlu0 %v3071, 8
      %v3758 = vpop.permute.xlu0 %3757
      %3759 = vrot.lane.b32.xlu0 %v3072, 8
      %v3760 = vpop.permute.xlu0 %3759
      %3761 = vrot.lane.b32.xlu0 %v3073, 8
      %v3762 = vpop.permute.xlu0 %3761
      %3763 = vrot.lane.b32.xlu0 %v3074, 8
      %v3764 = vpop.permute.xlu0 %3763
      %3781 = vrot.lane.b32.xlu0 %v3075, 16
      %v3782 = vpop.permute.xlu0 %3781
      %3783 = vrot.lane.b32.xlu0 %v3076, 16
      %v3784 = vpop.permute.xlu0 %3783
      %3785 = vrot.lane.b32.xlu0 %v3077, 16
      %v3786 = vpop.permute.xlu0 %3785
      %3787 = vrot.lane.b32.xlu0 %v3078, 16
      %v3788 = vpop.permute.xlu0 %3787
      %3789 = vrot.lane.b32.xlu0 %v3079, 16
      %v3790 = vpop.permute.xlu0 %3789
      %3791 = vrot.lane.b32.xlu0 %v3080, 16
      %v3792 = vpop.permute.xlu0 %3791
      %3793 = vrot.lane.b32.xlu0 %v3081, 16
      %v3794 = vpop.permute.xlu0 %3793
      %3795 = vrot.lane.b32.xlu0 %v3082, 16
      %v3796 = vpop.permute.xlu0 %3795
      %3813 = vrot.lane.b32.xlu0 %v3083, 24
      %v3814 = vpop.permute.xlu0 %3813
      %3815 = vrot.lane.b32.xlu0 %v3084, 24
      %v3816 = vpop.permute.xlu0 %3815
      %3817 = vrot.lane.b32.xlu0 %v3085, 24
      %v3818 = vpop.permute.xlu0 %3817
      %3819 = vrot.lane.b32.xlu0 %v3086, 24
      %v3820 = vpop.permute.xlu0 %3819
      %3821 = vrot.lane.b32.xlu0 %v3087, 24
      %v3822 = vpop.permute.xlu0 %3821
      %3823 = vrot.lane.b32.xlu0 %v3088, 24
      %v3824 = vpop.permute.xlu0 %3823
      %3825 = vrot.lane.b32.xlu0 %v3089, 24
      %v3826 = vpop.permute.xlu0 %3825
      %3827 = vrot.lane.b32.xlu0 %v3090, 24
      %v3828 = vpop.permute.xlu0 %3827
      %3845 = vrot.lane.b32.xlu0 %v3092, 32
      %v3846 = vpop.permute.xlu0 %3845
      %3847 = vrot.lane.b32.xlu0 %v3093, 32
      %v3848 = vpop.permute.xlu0 %3847
      %3849 = vrot.lane.b32.xlu0 %v3094, 32
      %v3850 = vpop.permute.xlu0 %3849
      %3851 = vrot.lane.b32.xlu0 %v3095, 32
      %v3852 = vpop.permute.xlu0 %3851
      %3853 = vrot.lane.b32.xlu0 %v3096, 32
      %v3854 = vpop.permute.xlu0 %3853
      %3855 = vrot.lane.b32.xlu0 %v3097, 32
      %v3856 = vpop.permute.xlu0 %3855
      %3857 = vrot.lane.b32.xlu0 %v3098, 32
      %v3858 = vpop.permute.xlu0 %3857
      %3859 = vrot.lane.b32.xlu0 %v3099, 32
      %v3860 = vpop.permute.xlu0 %3859
      %3877 = vrot.lane.b32.xlu0 %v3100, 40
      %v3878 = vpop.permute.xlu0 %3877
      %3879 = vrot.lane.b32.xlu0 %v3101, 40
      %v3880 = vpop.permute.xlu0 %3879
      %3881 = vrot.lane.b32.xlu0 %v3102, 40
      %v3882 = vpop.permute.xlu0 %3881
      %3883 = vrot.lane.b32.xlu0 %v3103, 40
      %v3884 = vpop.permute.xlu0 %3883
      %3885 = vrot.lane.b32.xlu0 %v3104, 40
      %v3886 = vpop.permute.xlu0 %3885
      %3887 = vrot.lane.b32.xlu0 %v3105, 40
      %v3888 = vpop.permute.xlu0 %3887
      %3889 = vrot.lane.b32.xlu0 %v3106, 40
      %v3890 = vpop.permute.xlu0 %3889
      %3891 = vrot.lane.b32.xlu0 %v3107, 40
      %v3892 = vpop.permute.xlu0 %3891
      %3909 = vrot.lane.b32.xlu0 %v3108, 48
      %v3910 = vpop.permute.xlu0 %3909
      %3911 = vrot.lane.b32.xlu0 %v3109, 48
      %v3912 = vpop.permute.xlu0 %3911
      %3913 = vrot.lane.b32.xlu0 %v3110, 48
      %v3914 = vpop.permute.xlu0 %3913
      %3915 = vrot.lane.b32.xlu0 %v3111, 48
      %v3916 = vpop.permute.xlu0 %3915
      %3917 = vrot.lane.b32.xlu0 %v3112, 48
      %v3918 = vpop.permute.xlu0 %3917
      %3919 = vrot.lane.b32.xlu0 %v3113, 48
      %v3920 = vpop.permute.xlu0 %3919
      %3921 = vrot.lane.b32.xlu0 %v3114, 48
      %v3922 = vpop.permute.xlu0 %3921
      %3923 = vrot.lane.b32.xlu0 %v3115, 48
      %v3924 = vpop.permute.xlu0 %3923
      %3941 = vrot.lane.b32.xlu0 %v3116, 56
      %v3942 = vpop.permute.xlu0 %3941
      %3943 = vrot.lane.b32.xlu0 %v3117, 56
      %v3944 = vpop.permute.xlu0 %3943
      %3945 = vrot.lane.b32.xlu0 %v3118, 56
      %v3946 = vpop.permute.xlu0 %3945
      %3947 = vrot.lane.b32.xlu0 %v3119, 56
      %v3948 = vpop.permute.xlu0 %3947
      %3949 = vrot.lane.b32.xlu0 %v3120, 56
      %v3950 = vpop.permute.xlu0 %3949
      %3951 = vrot.lane.b32.xlu0 %v3121, 56
      %v3952 = vpop.permute.xlu0 %3951
      %3953 = vrot.lane.b32.xlu0 %v3122, 56
      %v3954 = vpop.permute.xlu0 %3953
      %3955 = vrot.lane.b32.xlu0 %v3123, 56
      %v3956 = vpop.permute.xlu0 %3955
      %3973 = vrot.lane.b32.xlu0 %v3124, 64
      %v3974 = vpop.permute.xlu0 %3973
      %3975 = vrot.lane.b32.xlu0 %v3125, 64
      %v3976 = vpop.permute.xlu0 %3975
      %3977 = vrot.lane.b32.xlu0 %v3126, 64
      %v3978 = vpop.permute.xlu0 %3977
      %3979 = vrot.lane.b32.xlu0 %v3127, 64
      %v3980 = vpop.permute.xlu0 %3979
      %3981 = vrot.lane.b32.xlu0 %v3128, 64
      %v3982 = vpop.permute.xlu0 %3981
      %3983 = vrot.lane.b32.xlu0 %v3129, 64
      %v3984 = vpop.permute.xlu0 %3983
      %3985 = vrot.lane.b32.xlu0 %v3130, 64
      %v3986 = vpop.permute.xlu0 %3985
      %3987 = vrot.lane.b32.xlu0 %v3131, 64
      %v3988 = vpop.permute.xlu0 %3987
      %v3997 = vsel %vm2892, %v3059, %v3750
      %v3998 = vsel %vm2892, %v3060, %v3752
      %v3999 = vsel %vm2892, %v3061, %v3754
      %v4000 = vsel %vm2892, %v3062, %v3756
      %v4001 = vsel %vm2892, %v3063, %v3758
      %v4002 = vsel %vm2892, %v3064, %v3760
      %v4003 = vsel %vm2892, %v3065, %v3762
      %v4004 = vsel %vm2892, %v3066, %v3764
      %v4005 = vsel %vm550, %v3997, %v3782
      %v4006 = vsel %vm550, %v3998, %v3784
      %v4007 = vsel %vm550, %v3999, %v3786
      %v4008 = vsel %vm550, %v4000, %v3788
      %v4009 = vsel %vm550, %v4001, %v3790
      %v4010 = vsel %vm550, %v4002, %v3792
      %v4011 = vsel %vm550, %v4003, %v3794
      %v4012 = vsel %vm550, %v4004, %v3796
      %v4013 = vsel %vm3628, %v4005, %v3814
      %v4014 = vsel %vm3628, %v4006, %v3816
      %v4015 = vsel %vm3628, %v4007, %v3818
      %v4016 = vsel %vm3628, %v4008, %v3820
      %v4017 = vsel %vm3628, %v4009, %v3822
      %v4018 = vsel %vm3628, %v4010, %v3824
      %v4019 = vsel %vm3628, %v4011, %v3826
      %v4020 = vsel %vm3628, %v4012, %v3828
      %v4021 = vsel %vm559, %v4013, %v3846
      %v4022 = vsel %vm559, %v4014, %v3848
      %v4023 = vsel %vm559, %v4015, %v3850
      %v4024 = vsel %vm559, %v4016, %v3852
      %v4025 = vsel %vm559, %v4017, %v3854
      %v4026 = vsel %vm559, %v4018, %v3856
      %v4027 = vsel %vm559, %v4019, %v3858
      %v4028 = vsel %vm559, %v4020, %v3860
      %v4029 = vsel %vm3645, %v4021, %v3878
      %v4030 = vsel %vm3645, %v4022, %v3880
      %v4031 = vsel %vm3645, %v4023, %v3882
      %v4032 = vsel %vm3645, %v4024, %v3884
      %v4033 = vsel %vm3645, %v4025, %v3886
      %v4034 = vsel %vm3645, %v4026, %v3888
      %v4035 = vsel %vm3645, %v4027, %v3890
      %v4036 = vsel %vm3645, %v4028, %v3892
      %v4037 = vsel %vm568, %v4029, %v3910
      %v4038 = vsel %vm568, %v4030, %v3912
      %v4039 = vsel %vm568, %v4031, %v3914
      %v4040 = vsel %vm568, %v4032, %v3916
      %v4041 = vsel %vm568, %v4033, %v3918
      %v4042 = vsel %vm568, %v4034, %v3920
      %v4043 = vsel %vm568, %v4035, %v3922
      %v4044 = vsel %vm568, %v4036, %v3924
      %v4045 = vsel %vm3662, %v4037, %v3942
      %v4046 = vsel %vm3662, %v4038, %v3944
      %v4047 = vsel %vm3662, %v4039, %v3946
      %v4048 = vsel %vm3662, %v4040, %v3948
      %v4049 = vsel %vm3662, %v4041, %v3950
      %v4050 = vsel %vm3662, %v4042, %v3952
      %v4051 = vsel %vm3662, %v4043, %v3954
      %v4052 = vsel %vm3662, %v4044, %v3956
      %v4053 = vsel %vm590, %v4045, %v3974
      %v4054 = vsel %vm590, %v4046, %v3976
      %v4055 = vsel %vm590, %v4047, %v3978
      %v4056 = vsel %vm590, %v4048, %v3980
      %v4057 = vsel %vm590, %v4049, %v3982
      %v4058 = vsel %vm590, %v4050, %v3984
      %v4059 = vsel %vm590, %v4051, %v3986
      %v4060 = vsel %vm590, %v4052, %v3988
      %v4061 = vsel %vm3679, %v4053, 1.0
      %v4062 = vsel %vm3679, %v4054, 1.0
      %v4063 = vsel %vm3679, %v4055, 1.0
      %v4064 = vsel %vm3679, %v4056, 1.0
      %v4065 = vsel %vm3679, %v4057, 1.0
      %v4066 = vsel %vm3679, %v4058, 1.0
      %v4067 = vsel %vm3679, %v4059, 1.0
      %v4068 = vsel %vm3679, %v4060, 1.0
      %v4069 = vld [vmem:[%s11] sm:$0xff]
      %v4070 = vld [vmem:[%s11 + $0x8] sm:$0xff]
      %v4071 = vld [vmem:[%s11 + $0x10] sm:$0xff]
      %v4072 = vld [vmem:[%s11 + $0x18] sm:$0xff]
      %v4073 = vld [vmem:[%s11 + $0x20] sm:$0xff]
      %v4074 = vld [vmem:[%s11 + $0x28] sm:$0xff]
      %v4075 = vld [vmem:[%s11 + $0x30] sm:$0xff]
      %v4076 = vld [vmem:[%s11 + $0x38] sm:$0xff]
      %v4077 = vld [vmem:[%s11 + $0x40] sm:$0xff]
      %v4078 = vld [vmem:[%s11 + $0x48] sm:$0xff]
      %v4079 = vld [vmem:[%s11 + $0x50] sm:$0xff]
      %v4080 = vld [vmem:[%s11 + $0x58] sm:$0xff]
      %v4081 = vld [vmem:[%s11 + $0x60] sm:$0xff]
      %v4082 = vld [vmem:[%s11 + $0x68] sm:$0xff]
      %v4083 = vld [vmem:[%s11 + $0x70] sm:$0xff]
      %v4084 = vld [vmem:[%s11 + $0x78] sm:$0xff]
      %v4085 = vld [vmem:[%s11 + $0x80] sm:$0xff]
      %v4086 = vld [vmem:[%s11 + $0x88] sm:$0xff]
      %v4087 = vld [vmem:[%s11 + $0x90] sm:$0xff]
      %v4088 = vld [vmem:[%s11 + $0x98] sm:$0xff]
      %v4089 = vld [vmem:[%s11 + $0xa0] sm:$0xff]
      %v4090 = vld [vmem:[%s11 + $0xa8] sm:$0xff]
      %v4091 = vld [vmem:[%s11 + $0xb0] sm:$0xff]
      %v4092 = vld [vmem:[%s11 + $0xb8] sm:$0xff]
      %v4093 = vld [vmem:[%s11 + $0xc0] sm:$0xff]
      %v4094 = vld [vmem:[%s11 + $0xc8] sm:$0x1]
      %vm4095 = vcmask 596992
      %v4097 = vsel %vm4095, %v4061, 0
      %v4100 = vsel %vm4095, %v4062, 0
      %v4103 = vsel %vm4095, %v4063, 0
      %v4106 = vsel %vm4095, %v4064, 0
      %v4109 = vsel %vm4095, %v4065, 0
      %v4112 = vsel %vm4095, %v4066, 0
      %v4115 = vsel %vm4095, %v4067, 0
      %v4118 = vsel %vm4095, %v4068, 0
      %v4121 = vsel %vm754, %v4094, 0
      %4123 = vmatprep.subr.mxu0 0.0
      %4124 = vmatpush1.msra.mxu0 %v4069
      %4125 = vmatprep.subr.mxu0 0.0
      %4126 = vmatpush1.msra.mxu0 %v4070
      %4127 = vmatprep.subr.mxu0 0.0
      %4128 = vmatpush1.msra.mxu0 %v4071
      %4129 = vmatprep.subr.mxu0 0.0
      %4130 = vmatpush1.msra.mxu0 %v4072
      %4131 = vmatprep.subr.mxu0 0.0
      %4132 = vmatpush1.msra.mxu0 %v4073
      %4133 = vmatprep.subr.mxu0 0.0
      %4134 = vmatpush1.msra.mxu0 %v4074
      %4135 = vmatprep.subr.mxu0 0.0
      %4136 = vmatpush1.msra.mxu0 %v4075
      %4137 = vmatprep.subr.mxu0 0.0
      %4138 = vmatpush1.msra.mxu0 %v4076
      %4139 = vmatprep.subr.mxu0 0.0
      %4140 = vmatpush1.msra.mxu0 %v4077
      %4141 = vmatprep.subr.mxu0 0.0
      %4142 = vmatpush1.msra.mxu0 %v4078
      %4143 = vmatprep.subr.mxu0 0.0
      %4144 = vmatpush1.msra.mxu0 %v4079
      %4145 = vmatprep.subr.mxu0 0.0
      %4146 = vmatpush1.msra.mxu0 %v4080
      %4147 = vmatprep.subr.mxu0 0.0
      %4148 = vmatpush1.msra.mxu0 %v4081
      %4149 = vmatprep.subr.mxu0 0.0
      %4150 = vmatpush1.msra.mxu0 %v4082
      %4151 = vmatprep.subr.mxu0 0.0
      %4152 = vmatpush1.msra.mxu0 %v4083
      %4153 = vmatprep.subr.mxu0 0.0
      %4154 = vmatpush1.msra.mxu0 %v4084
      %4155 = vmatprep.subr.mxu0 0.0
      %4156 = vmatpush1.msra.mxu0 %v4085
      %4157 = vmatprep.subr.mxu0 0.0
      %4158 = vmatpush1.msra.mxu0 %v4086
      %4159 = vmatprep.subr.mxu0 0.0
      %4160 = vmatpush1.msra.mxu0 %v4087
      %4161 = vmatprep.subr.mxu0 0.0
      %4162 = vmatpush1.msra.mxu0 %v4088
      %4163 = vmatprep.subr.mxu0 0.0
      %4164 = vmatpush1.msra.mxu0 %v4089
      %4165 = vmatprep.subr.mxu0 0.0
      %4166 = vmatpush1.msra.mxu0 %v4090
      %4167 = vmatprep.subr.mxu0 0.0
      %4168 = vmatpush1.msra.mxu0 %v4091
      %4169 = vmatprep.subr.mxu0 0.0
      %4170 = vmatpush1.msra.mxu0 %v4092
      %4171 = vmatprep.subr.mxu0 0.0
      %4172 = vmatpush1.msra.mxu0 %v4093
      %4173 = vmatprep.subr.mxu0 0.0
      %4174 = vmatpush1.msra.mxu0 %v4121
      %4175 = vmatprep.subr.mxu0 0.0
      %4176 = vmatpush1.msra.mxu0 0.0
      %4177 = vmatprep.subr.mxu0 0.0
      %4178 = vmatpush1.msra.mxu0 0.0
      %4179 = vmatprep.subr.mxu0 0.0
      %4180 = vmatpush1.msra.mxu0 0.0
      %4181 = vmatprep.subr.mxu0 0.0
      %4182 = vmatpush1.msra.mxu0 0.0
      %4183 = vmatprep.subr.mxu0 0.0
      %4184 = vmatpush1.msra.mxu0 0.0
      %4185 = vmatprep.subr.mxu0 0.0
      %4186 = vmatpush1.msra.mxu0 0.0
      %4187 = vmatprep.mubr.f32.mxu0 %v4097
      %4188 = vmatmul.mubr.f32.gmra.mrb[0].mxu0 %v3733
      %v4189 = vpop.f32.mrb[0].mxu0
      %v4190 = vadd.f32 0.0, %v4189
      %v4191 = vpop.f32.mrb[0].mxu0
      %4192 = vmatprep.mubr.f32.mxu0 %v4100
      %4193 = vmatmul.mubr.f32.gmra.mrb[0].mxu0 %v3734
      %v4194 = vpop.f32.mrb[0].mxu0
      %v4195 = vadd.f32 0.0, %v4194
      %v4196 = vpop.f32.mrb[0].mxu0
      %4197 = vmatprep.mubr.f32.mxu0 %v4103
      %4198 = vmatmul.mubr.f32.gmra.mrb[0].mxu0 %v3735
      %v4199 = vpop.f32.mrb[0].mxu0
      %v4200 = vadd.f32 0.0, %v4199
      %v4201 = vpop.f32.mrb[0].mxu0
      %4202 = vmatprep.mubr.f32.mxu0 %v4106
      %4203 = vmatmul.mubr.f32.gmra.mrb[0].mxu0 %v3736
      %v4204 = vpop.f32.mrb[0].mxu0
      %v4205 = vadd.f32 0.0, %v4204
      %v4206 = vpop.f32.mrb[0].mxu0
      %4207 = vmatprep.mubr.f32.mxu0 %v4109
      %4208 = vmatmul.mubr.f32.gmra.mrb[0].mxu0 %v3737
      %v4209 = vpop.f32.mrb[0].mxu0
      %v4210 = vadd.f32 0.0, %v4209
      %v4211 = vpop.f32.mrb[0].mxu0
      %4212 = vmatprep.mubr.f32.mxu0 %v4112
      %4213 = vmatmul.mubr.f32.gmra.mrb[0].mxu0 %v3738
      %v4214 = vpop.f32.mrb[0].mxu0
      %v4215 = vadd.f32 0.0, %v4214
      %v4216 = vpop.f32.mrb[0].mxu0
      %4217 = vmatprep.mubr.f32.mxu0 %v4115
      %4218 = vmatmul.mubr.f32.gmra.mrb[0].mxu0 %v3739
      %v4219 = vpop.f32.mrb[0].mxu0
      %v4220 = vadd.f32 0.0, %v4219
      %v4221 = vpop.f32.mrb[0].mxu0
      %4222 = vmatprep.mubr.f32.mxu0 %v4118
      %4223 = vmatmul.mubr.f32.gmra.mrb[0].mxu0 %v3740
      %v4224 = vpop.f32.mrb[0].mxu0
      %v4225 = vadd.f32 0.0, %v4224
      %v4226 = vpop.f32.mrb[0].mxu0
      %4227 = vdwg.mxu0
      %v4228 = vxor.u32 %v4190, 2147483648
      %v4229 = vxor.u32 %v4195, 2147483648
      %v4230 = vxor.u32 %v4200, 2147483648
      %v4231 = vxor.u32 %v4205, 2147483648
      %v4232 = vxor.u32 %v4210, 2147483648
      %v4233 = vxor.u32 %v4215, 2147483648
      %v4234 = vxor.u32 %v4220, 2147483648
      %v4235 = vxor.u32 %v4225, 2147483648
      %v4236 = vmul.f32 %v4228, 1.442695
      %v4237 = vpow.pop %v4236
      %v4238 = vmul.f32 %v4229, 1.442695
      %v4239 = vpow.pop %v4238
      %v4240 = vmul.f32 %v4230, 1.442695
      %v4241 = vpow.pop %v4240
      %v4242 = vmul.f32 %v4231, 1.442695
      %v4243 = vpow.pop %v4242
      %v4244 = vmul.f32 %v4232, 1.442695
      %v4245 = vpow.pop %v4244
      %v4246 = vmul.f32 %v4233, 1.442695
      %v4247 = vpow.pop %v4246
      %v4248 = vmul.f32 %v4234, 1.442695
      %v4249 = vpow.pop %v4248
      %v4250 = vmul.f32 %v4235, 1.442695
      %v4251 = vpow.pop %v4250
      %v4252 = vadd.f32 %v4237, 1.0
      %v4253 = vadd.f32 %v4239, 1.0
      %v4254 = vadd.f32 %v4241, 1.0
      %v4255 = vadd.f32 %v4243, 1.0
      %v4256 = vadd.f32 %v4245, 1.0
      %v4257 = vadd.f32 %v4247, 1.0
      %v4258 = vadd.f32 %v4249, 1.0
      %v4259 = vadd.f32 %v4251, 1.0
      %v4260 = vrcp.pop %v4252
      %v4261 = vmul.f32 1.0, %v4260
      %v4262 = vrcp.pop %v4253
      %v4263 = vmul.f32 1.0, %v4262
      %v4264 = vrcp.pop %v4254
      %v4265 = vmul.f32 1.0, %v4264
      %v4266 = vrcp.pop %v4255
      %v4267 = vmul.f32 1.0, %v4266
      %v4268 = vrcp.pop %v4256
      %v4269 = vmul.f32 1.0, %v4268
      %v4270 = vrcp.pop %v4257
      %v4271 = vmul.f32 1.0, %v4270
      %v4272 = vrcp.pop %v4258
      %v4273 = vmul.f32 1.0, %v4272
      %v4274 = vrcp.pop %v4259
      %v4275 = vmul.f32 1.0, %v4274
      %v4276 = vxor.u32 %v4261, 2147483648
      %v4277 = vxor.u32 %v4263, 2147483648
      %v4278 = vxor.u32 %v4265, 2147483648
      %v4279 = vxor.u32 %v4267, 2147483648
      %v4280 = vxor.u32 %v4269, 2147483648
      %v4281 = vxor.u32 %v4271, 2147483648
      %v4282 = vxor.u32 %v4273, 2147483648
      %v4283 = vxor.u32 %v4275, 2147483648
      %v4284 = vmul.f32 %v4276, 1.442695
      %v4285 = vpow.pop %v4284
      %v4286 = vmul.f32 %v4277, 1.442695
      %v4287 = vpow.pop %v4286
      %v4288 = vmul.f32 %v4278, 1.442695
      %v4289 = vpow.pop %v4288
      %v4290 = vmul.f32 %v4279, 1.442695
      %v4291 = vpow.pop %v4290
      %v4292 = vmul.f32 %v4280, 1.442695
      %v4293 = vpow.pop %v4292
      %v4294 = vmul.f32 %v4281, 1.442695
      %v4295 = vpow.pop %v4294
      %v4296 = vmul.f32 %v4282, 1.442695
      %v4297 = vpow.pop %v4296
      %v4298 = vmul.f32 %v4283, 1.442695
      %v4299 = vpow.pop %v4298
      %v4300 = vadd.f32 %v4285, 1.0
      %v4301 = vadd.f32 %v4287, 1.0
      %v4302 = vadd.f32 %v4289, 1.0
      %v4303 = vadd.f32 %v4291, 1.0
      %v4304 = vadd.f32 %v4293, 1.0
      %v4305 = vadd.f32 %v4295, 1.0
      %v4306 = vadd.f32 %v4297, 1.0
      %v4307 = vadd.f32 %v4299, 1.0
      %v4308 = vrcp.pop %v4300
      %v4309 = vmul.f32 1.0, %v4308
      %v4310 = vrcp.pop %v4301
      %v4311 = vmul.f32 1.0, %v4310
      %v4312 = vrcp.pop %v4302
      %v4313 = vmul.f32 1.0, %v4312
      %v4314 = vrcp.pop %v4303
      %v4315 = vmul.f32 1.0, %v4314
      %v4316 = vrcp.pop %v4304
      %v4317 = vmul.f32 1.0, %v4316
      %v4318 = vrcp.pop %v4305
      %v4319 = vmul.f32 1.0, %v4318
      %v4320 = vrcp.pop %v4306
      %v4321 = vmul.f32 1.0, %v4320
      %v4322 = vrcp.pop %v4307
      %v4323 = vmul.f32 1.0, %v4322
      %4325 = vset.pattern.permute.xlu0 0
      %4326 = vperm.xlu0 %4325, %v4309
      %v4327 = vpop.permute.xlu0 %4326
      %4330 = vset.pattern.permute.xlu0 0
      %4331 = vperm.xlu0 %4330, %v4311
      %v4332 = vpop.permute.xlu0 %4331
      %4335 = vset.pattern.permute.xlu0 0
      %4336 = vperm.xlu0 %4335, %v4313
      %v4337 = vpop.permute.xlu0 %4336
      %4340 = vset.pattern.permute.xlu0 0
      %4341 = vperm.xlu0 %4340, %v4315
      %v4342 = vpop.permute.xlu0 %4341
      %4345 = vset.pattern.permute.xlu0 0
      %4346 = vperm.xlu0 %4345, %v4317
      %v4347 = vpop.permute.xlu0 %4346
      %4350 = vset.pattern.permute.xlu0 0
      %4351 = vperm.xlu0 %4350, %v4319
      %v4352 = vpop.permute.xlu0 %4351
      %4355 = vset.pattern.permute.xlu0 0
      %4356 = vperm.xlu0 %4355, %v4321
      %v4357 = vpop.permute.xlu0 %4356
      %4360 = vset.pattern.permute.xlu0 0
      %4361 = vperm.xlu0 %4360, %v4323
      %v4362 = vpop.permute.xlu0 %4361
      %v4364 = vmul.f32 %v2514, %v4327
      %v4365 = vmul.f32 %v2515, %v4332
      %v4366 = vmul.f32 %v2516, %v4337
      %v4367 = vmul.f32 %v2517, %v4342
      %v4368 = vmul.f32 %v2518, %v4347
      %v4369 = vmul.f32 %v2519, %v4352
      %v4370 = vmul.f32 %v2520, %v4357
      %v4371 = vmul.f32 %v2521, %v4362
      %4372 = vset.pattern.permute.xlu0 1
      %4373 = vperm.xlu0 %4372, %v4309
      %v4374 = vpop.permute.xlu0 %4373
      %4376 = vset.pattern.permute.xlu0 1
      %4377 = vperm.xlu0 %4376, %v4311
      %v4378 = vpop.permute.xlu0 %4377
      %4380 = vset.pattern.permute.xlu0 1
      %4381 = vperm.xlu0 %4380, %v4313
      %v4382 = vpop.permute.xlu0 %4381
      %4384 = vset.pattern.permute.xlu0 1
      %4385 = vperm.xlu0 %4384, %v4315
      %v4386 = vpop.permute.xlu0 %4385
      %4388 = vset.pattern.permute.xlu0 1
      %4389 = vperm.xlu0 %4388, %v4317
      %v4390 = vpop.permute.xlu0 %4389
      %4392 = vset.pattern.permute.xlu0 1
      %4393 = vperm.xlu0 %4392, %v4319
      %v4394 = vpop.permute.xlu0 %4393
      %4396 = vset.pattern.permute.xlu0 1
      %4397 = vperm.xlu0 %4396, %v4321
      %v4398 = vpop.permute.xlu0 %4397
      %4400 = vset.pattern.permute.xlu0 1
      %4401 = vperm.xlu0 %4400, %v4323
      %v4402 = vpop.permute.xlu0 %4401
      %v4404 = vmul.f32 %v2514, %v4374
      %v4405 = vmul.f32 %v2515, %v4378
      %v4406 = vmul.f32 %v2516, %v4382
      %v4407 = vmul.f32 %v2517, %v4386
      %v4408 = vmul.f32 %v2518, %v4390
      %v4409 = vmul.f32 %v2519, %v4394
      %v4410 = vmul.f32 %v2520, %v4398
      %v4411 = vmul.f32 %v2521, %v4402
      %4412 = vset.pattern.permute.xlu0 2
      %4413 = vperm.xlu0 %4412, %v4309
      %v4414 = vpop.permute.xlu0 %4413
      %4416 = vset.pattern.permute.xlu0 2
      %4417 = vperm.xlu0 %4416, %v4311
      %v4418 = vpop.permute.xlu0 %4417
      %4420 = vset.pattern.permute.xlu0 2
      %4421 = vperm.xlu0 %4420, %v4313
      %v4422 = vpop.permute.xlu0 %4421
      %4424 = vset.pattern.permute.xlu0 2
      %4425 = vperm.xlu0 %4424, %v4315
      %v4426 = vpop.permute.xlu0 %4425
      %4428 = vset.pattern.permute.xlu0 2
      %4429 = vperm.xlu0 %4428, %v4317
      %v4430 = vpop.permute.xlu0 %4429
      %4432 = vset.pattern.permute.xlu0 2
      %4433 = vperm.xlu0 %4432, %v4319
      %v4434 = vpop.permute.xlu0 %4433
      %4436 = vset.pattern.permute.xlu0 2
      %4437 = vperm.xlu0 %4436, %v4321
      %v4438 = vpop.permute.xlu0 %4437
      %4440 = vset.pattern.permute.xlu0 2
      %4441 = vperm.xlu0 %4440, %v4323
      %v4442 = vpop.permute.xlu0 %4441
      %v4444 = vmul.f32 %v2514, %v4414
      %v4445 = vmul.f32 %v2515, %v4418
      %v4446 = vmul.f32 %v2516, %v4422
      %v4447 = vmul.f32 %v2517, %v4426
      %v4448 = vmul.f32 %v2518, %v4430
      %v4449 = vmul.f32 %v2519, %v4434
      %v4450 = vmul.f32 %v2520, %v4438
      %v4451 = vmul.f32 %v2521, %v4442
      %4452 = vset.pattern.permute.xlu0 3
      %4453 = vperm.xlu0 %4452, %v4309
      %v4454 = vpop.permute.xlu0 %4453
      %4456 = vset.pattern.permute.xlu0 3
      %4457 = vperm.xlu0 %4456, %v4311
      %v4458 = vpop.permute.xlu0 %4457
      %4460 = vset.pattern.permute.xlu0 3
      %4461 = vperm.xlu0 %4460, %v4313
      %v4462 = vpop.permute.xlu0 %4461
      %4464 = vset.pattern.permute.xlu0 3
      %4465 = vperm.xlu0 %4464, %v4315
      %v4466 = vpop.permute.xlu0 %4465
      %4468 = vset.pattern.permute.xlu0 3
      %4469 = vperm.xlu0 %4468, %v4317
      %v4470 = vpop.permute.xlu0 %4469
      %4472 = vset.pattern.permute.xlu0 3
      %4473 = vperm.xlu0 %4472, %v4319
      %v4474 = vpop.permute.xlu0 %4473
      %4476 = vset.pattern.permute.xlu0 3
      %4477 = vperm.xlu0 %4476, %v4321
      %v4478 = vpop.permute.xlu0 %4477
      %4480 = vset.pattern.permute.xlu0 3
      %4481 = vperm.xlu0 %4480, %v4323
      %v4482 = vpop.permute.xlu0 %4481
      %v4484 = vmul.f32 %v2514, %v4454
      %v4485 = vmul.f32 %v2515, %v4458
      %v4486 = vmul.f32 %v2516, %v4462
      %v4487 = vmul.f32 %v2517, %v4466
      %v4488 = vmul.f32 %v2518, %v4470
      %v4489 = vmul.f32 %v2519, %v4474
      %v4490 = vmul.f32 %v2520, %v4478
      %v4491 = vmul.f32 %v2521, %v4482
      %v4492 = vsel %vm559, %v4364, %v4404
      %v4493 = vsel %vm559, %v4365, %v4405
      %v4494 = vsel %vm559, %v4366, %v4406
      %v4495 = vsel %vm559, %v4367, %v4407
      %v4496 = vsel %vm559, %v4368, %v4408
      %v4497 = vsel %vm559, %v4369, %v4409
      %v4498 = vsel %vm559, %v4370, %v4410
      %v4499 = vsel %vm559, %v4371, %v4411
      %v4500 = vsel %vm590, %v4492, %v4444
      %v4501 = vsel %vm590, %v4493, %v4445
      %v4502 = vsel %vm590, %v4494, %v4446
      %v4503 = vsel %vm590, %v4495, %v4447
      %v4504 = vsel %vm590, %v4496, %v4448
      %v4505 = vsel %vm590, %v4497, %v4449
      %v4506 = vsel %vm590, %v4498, %v4450
      %v4507 = vsel %vm590, %v4499, %v4451
      %v4508 = vsel %vm1299, %v4500, %v4484
      %v4509 = vsel %vm1299, %v4501, %v4485
      %v4510 = vsel %vm1299, %v4502, %v4486
      %v4511 = vsel %vm1299, %v4503, %v4487
      %v4512 = vsel %vm1299, %v4504, %v4488
      %v4513 = vsel %vm1299, %v4505, %v4489
      %v4514 = vsel %vm1299, %v4506, %v4490
      %v4515 = vsel %vm1299, %v4507, %v4491
      %v4516 = vadd.f32 %v4508, %v1300
      %v4517 = vadd.f32 %v4509, %v1301
      %v4518 = vadd.f32 %v4510, %v1302
      %v4519 = vadd.f32 %v4511, %v1303
      %v4520 = vadd.f32 %v4512, %v1304
      %v4521 = vadd.f32 %v4513, %v1305
      %v4522 = vadd.f32 %v4514, %v1306
      %v4523 = vadd.f32 %v4515, %v1307
      %v4524 = vmul.f32 %v4516, 0.5
      %v4525 = vmul.f32 %v4517, 0.5
      %v4526 = vmul.f32 %v4518, 0.5
      %v4527 = vmul.f32 %v4519, 0.5
      %v4528 = vmul.f32 %v4520, 0.5
      %v4529 = vmul.f32 %v4521, 0.5
      %v4530 = vmul.f32 %v4522, 0.5
      %v4531 = vmul.f32 %v4523, 0.5
      %v4532 = vmul.f32 %v4516, 0.70710677
      %v4533 = vmul.f32 %v4517, 0.70710677
      %v4534 = vmul.f32 %v4518, 0.70710677
      %v4535 = vmul.f32 %v4519, 0.70710677
      %v4536 = vmul.f32 %v4520, 0.70710677
      %v4537 = vmul.f32 %v4521, 0.70710677
      %v4538 = vmul.f32 %v4522, 0.70710677
      %v4539 = vmul.f32 %v4523, 0.70710677
      %v4540 = verf.f32.pop %v4532
      %v4541 = verf.f32.pop %v4533
      %v4542 = verf.f32.pop %v4534
      %v4543 = verf.f32.pop %v4535
      %v4544 = verf.f32.pop %v4536
      %v4545 = verf.f32.pop %v4537
      %v4546 = verf.f32.pop %v4538
      %v4547 = verf.f32.pop %v4539
      %v4548 = vadd.f32 %v4540, 1.0
      %v4549 = vadd.f32 %v4541, 1.0
      %v4550 = vadd.f32 %v4542, 1.0
      %v4551 = vadd.f32 %v4543, 1.0
      %v4552 = vadd.f32 %v4544, 1.0
      %v4553 = vadd.f32 %v4545, 1.0
      %v4554 = vadd.f32 %v4546, 1.0
      %v4555 = vadd.f32 %v4547, 1.0
      %v4556 = vmul.f32 %v4524, %v4548
      %v4557 = vmul.f32 %v4525, %v4549
      %v4558 = vmul.f32 %v4526, %v4550
      %v4559 = vmul.f32 %v4527, %v4551
      %v4560 = vmul.f32 %v4528, %v4552
      %v4561 = vmul.f32 %v4529, %v4553
      %v4562 = vmul.f32 %v4530, %v4554
      %v4563 = vmul.f32 %v4531, %v4555
      %4564 = vst [vmem:[%s413] sm:$0xff] %v4556
      %4565 = vst [vmem:[%s413 + $0x8] sm:$0xff] %v4557
      %4566 = vst [vmem:[%s413 + $0x10] sm:$0xff] %v4558
      %4567 = vst [vmem:[%s413 + $0x18] sm:$0xff] %v4559
      %4568 = vst [vmem:[%s413 + $0x20] sm:$0xff] %v4560
      %4569 = vst [vmem:[%s413 + $0x28] sm:$0xff] %v4561
      %4570 = vst [vmem:[%s413 + $0x30] sm:$0xff] %v4562
      %4571 = vst [vmem:[%s413 + $0x38] sm:$0xff] %v4563
      %p4572 = scmp.lt.s32.totalorder %s23, 1
      %s4573 = scalar_select %p4572, %s23, 1
      %s4574 = smul.addr %s4573, 8
      %s4575 = smul.addr %s4574, 8
      %s4576 = scalar_lea.vmem %s12, %s4575
      // Predicated region
      $region69: #{enhanced_conv_transpose2d_block.1} parent=67 // pred_check
        %p4577 = pneg %p298
      $region70: #{enhanced_conv_transpose2d_block.1} parent=67 // pred_check_branch
        %4579 = sbr.rel (%p4577) target = $region72
      $region71: #{enhanced_conv_transpose2d_block.1} parent=67 // pred_region
        _
      $region72: #{enhanced_conv_transpose2d_block.1} parent=67 // pred_fallthru
        _
    $region68: #{enhanced_conv_transpose2d_block.1} parent=5 // pred_fallthru
      _
    %p4580 = scmp.le.s32.totalorder 2, %s18
    // Predicated region
    $region73: #{enhanced_conv_transpose2d_block.1} parent=5 // pred_check
      %p4581 = pneg %p4580
    $region74: #{enhanced_conv_transpose2d_block.1} parent=5 // pred_check_branch
      %4583 = sbr.rel (%p4581) target = $region76
    $region75: #{enhanced_conv_transpose2d_block.1} parent=5 // pred_region
      %s4584 = ssub.s32 %s18, 2
      // Predicated region
      $region77: #{enhanced_conv_transpose2d_block.1} parent=75 // pred_check
        %p4585 = pneg %p304
      $region78: #{enhanced_conv_transpose2d_block.1} parent=75 // pred_check_branch
        %4587 = sbr.rel (%p4585) target = $region80
      $region79: #{enhanced_conv_transpose2d_block.1} parent=75 // pred_region
        %p4588 = scmp.lt.s32.totalorder %s24, 1
        %s4589 = scalar_select %p4588, %s24, 1
        %s4590 = smul.addr %s4589, 8
        %s4591 = smul.addr %s4590, 8
        %s4592 = scalar_lea.vmem %s12, %s4591
      $region80: #{enhanced_conv_transpose2d_block.1} parent=75 // pred_fallthru
        _
    $region76: #{enhanced_conv_transpose2d_block.1} parent=5 // pred_fallthru
      _
  $region6: #{enhanced_conv_transpose2d_block.1} parent=0 // loop_footer
    %s22 = sadd.s32 1, %s18
  $region7: #{enhanced_conv_transpose2d_block.1} parent=0 // loop_footer_branch
    %17 = sbr.rel target = $region3
  $region8: #{enhanced_conv_transpose2d_block.1} parent=0 // loop_exit
    _

</llo_original>
